<compile_context>
chip_gen: v6e
topology: v6e:2x2x1
jax: 0.10.0
libtpu: 0.0.40
codegen_flags: <defaults>
</compile_context>

<pallas_src>
import functools
import math

import jax
import jax.numpy as jnp
from jax.experimental import pallas as pl
from jax.experimental.pallas import tpu as pltpu


def _mxu_dot(a, b):
    """bf16 operands -> f32 accumulation (native MXU path on v5e/v6e/v7x)."""
    return jnp.dot(a.astype(jnp.bfloat16), b.astype(jnp.bfloat16),
                   preferred_element_type=jnp.float32)


# ----------------------------------------------------------------------------
# Fused whole-model kernel: grid axis = layer index ("arbitrary" / sequential)
# ----------------------------------------------------------------------------

def _gcm_kernel(xs_ref, xt_ref,
                sg_s_ref, md_s_ref, ea_s_ref,
                sg_t_ref, md_t_ref, ea_t_ref,
                bs_col_ref, bt_row_ref,
                boh_s_ref, boh_t_ref,
                w1_ref, b1_ref, w2_ref, b2_ref,
                wqkv_ref, bqkv_ref, wo_ref, bo_ref,
                ln_g_ref, ln_b_ref,
                wg_ref, bg_ref, wc_ref, bc_ref,
                out_ref,
                xs_state, xt_state, attn_slab,
                *, num_heads):
    layer = pl.program_id(0)
    n_layers = pl.num_programs(0)
    Ns, D = xs_state.shape
    Nt = xt_state.shape[0]
    H = num_heads
    dh = D // H

    # Layer 0: load the HBM node features into the resident VMEM state.
    @pl.when(layer == 0)
    def _():
        xs_state[...] = xs_ref[...]
        xt_state[...] = xt_ref[...]

    # Current layer's weights (stacked on a leading axis, streamed per step).
    w1 = w1_ref[0]
    b1 = b1_ref[0]
    w2 = w2_ref[0]
    b2 = b2_ref[0]
    wqkv = wqkv_ref[0]
    bqkv = bqkv_ref[0]
    wo = wo_ref[0]
    bo = bo_ref[0]
    ln_g = ln_g_ref[0]
    ln_b = ln_b_ref[0]

    # ---------------- GENConv message + per-destination softmax aggregation
    def genconv_aggr(x, sgather, mdst, eattr):
        # In-kernel edge gather x[edge_src] as a one-hot (E, N) bf16 matmul.
        xg = jnp.dot(sgather, x.astype(jnp.bfloat16),
                     preferred_element_type=jnp.float32)          # (E, D)
        msg = jnp.maximum(xg + eattr, 0.0) + 1e-7                  # (E, D), > 0
        # Per-dst softmax weights.  msg >= 0, so exp(msg) >= 1 for every edge:
        # no underflow for any destination with >=1 incoming edge (this replaces
        # the previous global-max shift which could underflow low-magnitude
        # destinations to zero).  Clamp the exponent so overflow is impossible.
        e = jnp.exp(jnp.minimum(msg, 70.0))                        # (E, D)
        # One scatter matmul produces both denominator and numerator.
        stacked = jnp.concatenate([e, e * msg], axis=-1).astype(jnp.bfloat16)  # (E, 2D)
        agg = jnp.dot(mdst, stacked, preferred_element_type=jnp.float32)       # (N, 2D)
        denom, numer = agg[:, :D], agg[:, D:]
        aggr = numer / jnp.maximum(denom, 1e-16)   # zero in-degree -> 0, never 0/0
        return aggr + x                            # GENConv residual with x_dst

    hs = genconv_aggr(xs_state[...], sg_s_ref[...], md_s_ref[...], ea_s_ref[...])
    ht = genconv_aggr(xt_state[...], sg_t_ref[...], md_t_ref[...], ea_t_ref[...])

    # ---------------- shared-weight MLP + fused QKV on the [src; tgt] row slab
    h = jnp.concatenate([hs, ht], axis=0)                          # (Ns+Nt, D)
    h1 = jnp.maximum(_mxu_dot(h, w1) + b1, 0.0)                    # GENConv MLP hidden
    hmlp = _mxu_dot(h1, w2) + b2                                   # GENConv output
    qkv = _mxu_dot(hmlp, wqkv) + bqkv                              # (Ns+Nt, 3D); Q pre-scaled
    qkv_s = qkv[:Ns]
    qkv_t = qkv[Ns:]

    # ---------------- cross-graph masks built in-kernel from batch ids
    mask_st = jnp.where(bs_col_ref[...] != bt_row_ref[...],
                        jnp.float32(-1e30), jnp.float32(0.0))      # (Ns, Nt)
    mask_ts = mask_st.T                                            # (Nt, Ns)

    # ---------------- all heads, both directions, written into one (Ns+Nt, D) slab
    def mha_into_slab(row0, nq, q_rows, kv_rows, mask_add):
        for hd in range(H):
            q = q_rows[:, hd * dh:(hd + 1) * dh]                   # scale already folded in
            k = kv_rows[:, D + hd * dh:D + (hd + 1) * dh]
            v = kv_rows[:, 2 * D + hd * dh:2 * D + (hd + 1) * dh]
            s = jax.lax.dot_general(q.astype(jnp.bfloat16), k.astype(jnp.bfloat16),
                                    (((1,), (1,)), ((), ())),
                                    preferred_element_type=jnp.float32)
            s = s + mask_add
            s = s - jnp.max(s, axis=-1, keepdims=True)
            p = jnp.exp(s)
            p = p * pl.reciprocal(jnp.sum(p, axis=-1, keepdims=True), approx=True)
            pv = jnp.dot(p.astype(jnp.bfloat16), v.astype(jnp.bfloat16),
                         preferred_element_type=jnp.float32)
            attn_slab[row0:row0 + nq, hd * dh:(hd + 1) * dh] = pv  # static slab write

    mha_into_slab(0, Ns, qkv_s, qkv_t, mask_st)    # query = src, key/value = tgt
    mha_into_slab(Ns, Nt, qkv_t, qkv_s, mask_ts)   # query = tgt, key/value = src

    # ---------------- shared output projection + LayerNorm (f32), update state
    a = _mxu_dot(attn_slab[...], wo) + bo                          # (Ns+Nt, D)
    mu = jnp.mean(a, axis=-1, keepdims=True)
    var = jnp.mean(jnp.square(a - mu), axis=-1, keepdims=True)
    y = (a - mu) * jax.lax.rsqrt(var + 1e-5) * ln_g + ln_b
    xs_state[...] = y[:Ns]
    xt_state[...] = y[Ns:]

    # ---------------- last layer: GlobalAttention pool + cls head + softmax
    @pl.when(layer == n_layers - 1)
    def _():
        wg = wg_ref[...]                                           # (1, D) gate row
        bg = bg_ref[...]                                           # (1, 1)

        def pool(x, boh):
            # gate = sigmoid(Linear(x, 1)) as a VPU lane reduction (no 1-lane matmul)
            gate = jax.nn.sigmoid(jnp.sum(x * wg, axis=-1, keepdims=True) + bg)  # (N, 1)
            eg = jnp.exp(gate)                       # gate in (0,1): no shift needed
            denom = jnp.dot(boh, eg.astype(jnp.bfloat16),
                            preferred_element_type=jnp.float32)                  # (G, 1)
            numer = jnp.dot(boh, (eg * x).astype(jnp.bfloat16),
                            preferred_element_type=jnp.float32)                  # (G, D)
            return numer / jnp.maximum(denom, 1e-16)

        ps = pool(xs_state[...], boh_s_ref[...])
        pt = pool(xt_state[...], boh_t_ref[...])
        z = _mxu_dot(jnp.concatenate([ps, pt], axis=-1), wc_ref[...]) + bc_ref[...]
        z = z - jnp.max(z, axis=-1, keepdims=True)
        ez = jnp.exp(z)
        out_ref[...] = ez / jnp.sum(ez, axis=-1, keepdims=True)    # exact f32 softmax


# ----------------------------------------------------------------------------
# Wrapper: one pallas_call, grid over layers, weights streamed per layer
# ----------------------------------------------------------------------------

def _const_index_map(ndim):
    return lambda l: (0,) * ndim


def _layer_index_map(ndim):
    return lambda l: (l,) + (0,) * ndim


def gcm_forward(params, src, tgt):
    xs, xt = src["x"], tgt["x"]
    Ns, D = xs.shape
    Nt = xt.shape[0]
    Es = src["edge_attr"].shape[0]
    Et = tgt["edge_attr"].shape[0]
    G = src["batch_onehot"].shape[0]
    L = params["num_layers"]
    H = params["num_heads"]

    def full(shape):
        return pl.BlockSpec(shape, _const_index_map(len(shape)))

    def per_layer(shape):  # shape without the leading layer axis
        return pl.BlockSpec((1,) + shape, _layer_index_map(len(shape)))

    in_specs = [
        full((Ns, D)), full((Nt, D)),
        full((Es, Ns)), full((Ns, Es)), full((Es, D)),
        full((Et, Nt)), full((Nt, Et)), full((Et, D)),
        full((Ns, 1)), full((1, Nt)),
        full((G, Ns)), full((G, Nt)),
        per_layer((D, 2 * D)), per_layer((1, 2 * D)),
        per_layer((2 * D, D)), per_layer((1, D)),
        per_layer((D, 3 * D)), per_layer((1, 3 * D)),
        per_layer((D, D)), per_layer((1, D)),
        per_layer((1, D)), per_layer((1, D)),
        full((1, D)), full((1, 1)), full((2 * D, 2)), full((1, 2)),
    ]

    kernel = functools.partial(_gcm_kernel, num_heads=H)
    return pl.pallas_call(
        kernel,
        grid=(L,),
        in_specs=in_specs,
        out_specs=pl.BlockSpec((G, 2), lambda l: (0, 0)),
        out_shape=jax.ShapeDtypeStruct((G, 2), jnp.float32),
        scratch_shapes=[
            pltpu.VMEM((Ns, D), jnp.float32),        # resident src activations
            pltpu.VMEM((Nt, D), jnp.float32),        # resident tgt activations
            pltpu.VMEM((Ns + Nt, D), jnp.float32),   # packed per-head attention slab
        ],
        compiler_params=pltpu.CompilerParams(
            dimension_semantics=("arbitrary",),       # layers are sequential
            vmem_limit_bytes=32 * 1024 * 1024),
    )(xs, xt,
      src["src_onehot"], src["dst_onehot"], src["edge_attr"],
      tgt["src_onehot"], tgt["dst_onehot"], tgt["edge_attr"],
      src["batch_col"], tgt["batch_row"],
      src["batch_onehot"], tgt["batch_onehot"],
      params["w1"], params["b1"], params["w2"], params["b2"],
      params["wqkv"], params["bqkv"], params["wo"], params["bo"],
      params["ln_g"], params["ln_b"],
      params["wg"], params["bg"], params["wc"], params["bc"])


# ----------------------------------------------------------------------------
# Deterministic synthetic parameters / inputs
# ----------------------------------------------------------------------------

def init_params(key, hidden_dim, num_layers, num_heads):
    D = hidden_dim
    dh = D // num_heads
    scale = 1.0 / math.sqrt(dh)

    def nrm(k, shape, s=0.1):
        return (s * jax.random.normal(k, shape)).astype(jnp.float32)

    w1, w2, wqkv, wo = [], [], [], []
    for i in range(num_layers):
        ks = jax.random.split(jax.random.fold_in(key, i), 4)
        w1.append(nrm(ks[0], (D, 2 * D)))
        w2.append(nrm(ks[1], (2 * D, D)))
        wq = nrm(ks[2], (D, 3 * D))
        # Fold the 1/sqrt(head_dim) softmax scale into the Q columns (the Q bias
        # is zero here, otherwise it would be scaled too).
        wq = wq.at[:, :D].multiply(scale)
        wqkv.append(wq)
        wo.append(nrm(ks[3], (D, D)))

    kg, kc = jax.random.split(jax.random.fold_in(key, 1000))
    L = num_layers
    return dict(
        num_layers=num_layers, num_heads=num_heads,
        # GENConv MLP [D -> 2D -> D], stacked over layers
        w1=jnp.stack(w1), b1=jnp.zeros((L, 1, 2 * D), jnp.float32),
        w2=jnp.stack(w2), b2=jnp.zeros((L, 1, D), jnp.float32),
        # fused Q/K/V projection (Q pre-scaled) + attention output projection
        wqkv=jnp.stack(wqkv), bqkv=jnp.zeros((L, 1, 3 * D), jnp.float32),
        wo=jnp.stack(wo), bo=jnp.zeros((L, 1, D), jnp.float32),
        # LayerNorm affine
        ln_g=jnp.ones((L, 1, D), jnp.float32), ln_b=jnp.zeros((L, 1, D), jnp.float32),
        # GlobalAttention gate + classification head
        wg=nrm(kg, (1, D)),
        bg=jnp.zeros((1, 1), jnp.float32),
        wc=nrm(kc, (2 * D, 2)),
        bc=jnp.zeros((1, 2), jnp.float32))


def make_graph(key, num_nodes, num_edges, num_graphs, dim):
    k1, k2, k3, k4 = jax.random.split(key, 4)
    x = jax.random.normal(k1, (num_nodes, dim), jnp.float32)
    edge_src = jax.random.randint(k2, (num_edges,), 0, num_nodes)
    edge_dst = jax.random.randint(k3, (num_edges,), 0, num_nodes)
    edge_attr = jax.random.normal(k4, (num_edges, dim), jnp.float32)
    per = num_nodes // num_graphs
    batch = jnp.repeat(jnp.arange(num_graphs, dtype=jnp.int32), per)
    # One-hot gather (E, N) / scatter (N, E) / pooling (G, N) matrices in bf16:
    # 0/1 is exact in bf16 and keeps the in-kernel dots on the native MXU path.
    src_onehot = (jnp.arange(num_nodes)[None, :] == edge_src[:, None]).astype(jnp.bfloat16)
    dst_onehot = (jnp.arange(num_nodes)[:, None] == edge_dst[None, :]).astype(jnp.bfloat16)
    batch_onehot = (jnp.arange(num_graphs)[:, None] == batch[None, :]).astype(jnp.bfloat16)
    return dict(x=x, edge_attr=edge_attr,
                src_onehot=src_onehot, dst_onehot=dst_onehot,
                batch_col=batch.reshape(num_nodes, 1),
                batch_row=batch.reshape(1, num_nodes),
                batch_onehot=batch_onehot)


if __name__ == "__main__":
    # hidden_dim = 128 matches the module default and keeps every vreg lane-dense.
    hidden_dim, num_layers, num_heads, num_graphs = 128, 2, 4, 2
    n_nodes, n_edges = 16, 32

    key = jax.random.PRNGKey(0)
    kp, ksrc, ktgt = jax.random.split(key, 3)
    params = init_params(kp, hidden_dim, num_layers, num_heads)
    src = make_graph(ksrc, n_nodes, n_edges, num_graphs, hidden_dim)
    tgt = make_graph(ktgt, n_nodes, n_edges, num_graphs, hidden_dim)

    out = gcm_forward(params, src, tgt)
    out = jax.block_until_ready(out)

    assert out.shape == (num_graphs, 2)
    assert bool(jnp.all(jnp.isfinite(out)))
    assert bool(jnp.allclose(jnp.sum(out, axis=-1), 1.0, atol=1e-5))
    print("KERNEL_OK")
</pallas_src>

<mosaic_0001>
module attributes {stable_mosaic.version = 11 : i64} {
  func.func @_gcm_kernel(%arg0: i32, %arg1: memref<16x128xf32, #tpu.memory_space<vmem>>, %arg2: memref<16x128xf32, #tpu.memory_space<vmem>>, %arg3: memref<32x16xbf16, #tpu.memory_space<vmem>>, %arg4: memref<16x32xbf16, #tpu.memory_space<vmem>>, %arg5: memref<32x128xf32, #tpu.memory_space<vmem>>, %arg6: memref<32x16xbf16, #tpu.memory_space<vmem>>, %arg7: memref<16x32xbf16, #tpu.memory_space<vmem>>, %arg8: memref<32x128xf32, #tpu.memory_space<vmem>>, %arg9: memref<16x1xi32, #tpu.memory_space<vmem>>, %arg10: memref<1x16xi32, #tpu.memory_space<vmem>>, %arg11: memref<2x16xbf16, #tpu.memory_space<vmem>>, %arg12: memref<2x16xbf16, #tpu.memory_space<vmem>>, %arg13: memref<1x128x256xf32, #tpu.memory_space<vmem>>, %arg14: memref<1x1x256xf32, #tpu.memory_space<vmem>>, %arg15: memref<1x256x128xf32, #tpu.memory_space<vmem>>, %arg16: memref<1x1x128xf32, #tpu.memory_space<vmem>>, %arg17: memref<1x128x384xf32, #tpu.memory_space<vmem>>, %arg18: memref<1x1x384xf32, #tpu.memory_space<vmem>>, %arg19: memref<1x128x128xf32, #tpu.memory_space<vmem>>, %arg20: memref<1x1x128xf32, #tpu.memory_space<vmem>>, %arg21: memref<1x1x128xf32, #tpu.memory_space<vmem>>, %arg22: memref<1x1x128xf32, #tpu.memory_space<vmem>>, %arg23: memref<1x128xf32, #tpu.memory_space<vmem>>, %arg24: memref<1x1xf32, #tpu.memory_space<vmem>>, %arg25: memref<256x2xf32, #tpu.memory_space<vmem>>, %arg26: memref<1x2xf32, #tpu.memory_space<vmem>>, %arg27: memref<2x2xf32, #tpu.memory_space<vmem>>, %arg28: memref<16x128xf32, #tpu.memory_space<vmem>>, %arg29: memref<16x128xf32, #tpu.memory_space<vmem>>, %arg30: memref<32x128xf32, #tpu.memory_space<vmem>>) attributes {dimension_semantics = [#tpu.dimension_semantics<arbitrary>], iteration_bounds = array<i64: 2>, scalar_prefetch = 0 : i64, scratch_operands = 3 : i64, tpu.core_type = #tpu.core_type<tc>, window_params = [{pipeline_mode = #tpu.pipeline_mode<synchronous>, transform_indices = @transform_0, window_bounds = array<i64: 16, 128>}, {pipeline_mode = #tpu.pipeline_mode<synchronous>, transform_indices = @transform_1, window_bounds = array<i64: 16, 128>}, {pipeline_mode = #tpu.pipeline_mode<synchronous>, transform_indices = @transform_2, window_bounds = array<i64: 32, 16>}, {pipeline_mode = #tpu.pipeline_mode<synchronous>, transform_indices = @transform_3, window_bounds = array<i64: 16, 32>}, {pipeline_mode = #tpu.pipeline_mode<synchronous>, transform_indices = @transform_4, window_bounds = array<i64: 32, 128>}, {pipeline_mode = #tpu.pipeline_mode<synchronous>, transform_indices = @transform_5, window_bounds = array<i64: 32, 16>}, {pipeline_mode = #tpu.pipeline_mode<synchronous>, transform_indices = @transform_6, window_bounds = array<i64: 16, 32>}, {pipeline_mode = #tpu.pipeline_mode<synchronous>, transform_indices = @transform_7, window_bounds = array<i64: 32, 128>}, {pipeline_mode = #tpu.pipeline_mode<synchronous>, transform_indices = @transform_8, window_bounds = array<i64: 16, 1>}, {pipeline_mode = #tpu.pipeline_mode<synchronous>, transform_indices = @transform_9, window_bounds = array<i64: 1, 16>}, {pipeline_mode = #tpu.pipeline_mode<synchronous>, transform_indices = @transform_10, window_bounds = array<i64: 2, 16>}, {pipeline_mode = #tpu.pipeline_mode<synchronous>, transform_indices = @transform_11, window_bounds = array<i64: 2, 16>}, {transform_indices = @transform_12, window_bounds = array<i64: 1, 128, 256>}, {transform_indices = @transform_13, window_bounds = array<i64: 1, 1, 256>}, {transform_indices = @transform_14, window_bounds = array<i64: 1, 256, 128>}, {transform_indices = @transform_15, window_bounds = array<i64: 1, 1, 128>}, {transform_indices = @transform_16, window_bounds = array<i64: 1, 128, 384>}, {transform_indices = @transform_17, window_bounds = array<i64: 1, 1, 384>}, {transform_indices = @transform_18, window_bounds = array<i64: 1, 128, 128>}, {transform_indices = @transform_19, window_bounds = array<i64: 1, 1, 128>}, {transform_indices = @transform_20, window_bounds = array<i64: 1, 1, 128>}, {transform_indices = @transform_21, window_bounds = array<i64: 1, 1, 128>}, {pipeline_mode = #tpu.pipeline_mode<synchronous>, transform_indices = @transform_22, window_bounds = array<i64: 1, 128>}, {pipeline_mode = #tpu.pipeline_mode<synchronous>, transform_indices = @transform_23, window_bounds = array<i64: 1, 1>}, {pipeline_mode = #tpu.pipeline_mode<synchronous>, transform_indices = @transform_24, window_bounds = array<i64: 256, 2>}, {pipeline_mode = #tpu.pipeline_mode<synchronous>, transform_indices = @transform_25, window_bounds = array<i64: 1, 2>}, {pipeline_mode = #tpu.pipeline_mode<synchronous>, transform_indices = @transform_26, window_bounds = array<i64: 2, 2>}]} {
    %c0_i32 = arith.constant 0 : i32
    %0 = arith.cmpi eq, %arg0, %c0_i32 : i32
    %1 = arith.extui %0 : i1 to i32
    %c0_i32_0 = arith.constant 0 : i32
    %2 = arith.cmpi ne, %1, %c0_i32_0 : i32
    scf.if %2 {
      %c0_124 = arith.constant 0 : index
      %c0_125 = arith.constant 0 : index
      %303 = vector.load %arg1[%c0_124, %c0_125] : memref<16x128xf32, #tpu.memory_space<vmem>>, vector<16x128xf32>
      %c0_126 = arith.constant 0 : index
      %c0_127 = arith.constant 0 : index
      %304 = vector.load %arg28[%c0_126, %c0_127] : memref<16x128xf32, #tpu.memory_space<vmem>>, vector<16x128xf32>
      tpu.vector_store %arg28[%c0_126, %c0_127], %303 {strides = array<i32>} : memref<16x128xf32, #tpu.memory_space<vmem>>, vector<16x128xf32>,
      %c0_128 = arith.constant 0 : index
      %c0_129 = arith.constant 0 : index
      %305 = vector.load %arg2[%c0_128, %c0_129] : memref<16x128xf32, #tpu.memory_space<vmem>>, vector<16x128xf32>
      %c0_130 = arith.constant 0 : index
      %c0_131 = arith.constant 0 : index
      %306 = vector.load %arg29[%c0_130, %c0_131] : memref<16x128xf32, #tpu.memory_space<vmem>>, vector<16x128xf32>
      tpu.vector_store %arg29[%c0_130, %c0_131], %305 {strides = array<i32>} : memref<16x128xf32, #tpu.memory_space<vmem>>, vector<16x128xf32>,
    } else {
    }
    %c0 = arith.constant 0 : index
    %c0_1 = arith.constant 0 : index
    %c0_2 = arith.constant 0 : index
    %3 = vector.load %arg13[%c0, %c0_1, %c0_2] : memref<1x128x256xf32, #tpu.memory_space<vmem>>, vector<1x128x256xf32>
    %4 = vector.shape_cast %3 : vector<1x128x256xf32> to vector<128x256xf32>
    %c0_3 = arith.constant 0 : index
    %c0_4 = arith.constant 0 : index
    %c0_5 = arith.constant 0 : index
    %5 = vector.load %arg14[%c0_3, %c0_4, %c0_5] : memref<1x1x256xf32, #tpu.memory_space<vmem>>, vector<1x1x256xf32>
    %6 = vector.shape_cast %5 : vector<1x1x256xf32> to vector<1x256xf32>
    %c0_6 = arith.constant 0 : index
    %c0_7 = arith.constant 0 : index
    %c0_8 = arith.constant 0 : index
    %7 = vector.load %arg15[%c0_6, %c0_7, %c0_8] : memref<1x256x128xf32, #tpu.memory_space<vmem>>, vector<1x256x128xf32>
    %8 = vector.shape_cast %7 : vector<1x256x128xf32> to vector<256x128xf32>
    %c0_9 = arith.constant 0 : index
    %c0_10 = arith.constant 0 : index
    %c0_11 = arith.constant 0 : index
    %9 = vector.load %arg16[%c0_9, %c0_10, %c0_11] : memref<1x1x128xf32, #tpu.memory_space<vmem>>, vector<1x1x128xf32>
    %10 = vector.shape_cast %9 : vector<1x1x128xf32> to vector<1x128xf32>
    %c0_12 = arith.constant 0 : index
    %c0_13 = arith.constant 0 : index
    %c0_14 = arith.constant 0 : index
    %11 = vector.load %arg17[%c0_12, %c0_13, %c0_14] : memref<1x128x384xf32, #tpu.memory_space<vmem>>, vector<1x128x384xf32>
    %12 = vector.shape_cast %11 : vector<1x128x384xf32> to vector<128x384xf32>
    %c0_15 = arith.constant 0 : index
    %c0_16 = arith.constant 0 : index
    %c0_17 = arith.constant 0 : index
    %13 = vector.load %arg18[%c0_15, %c0_16, %c0_17] : memref<1x1x384xf32, #tpu.memory_space<vmem>>, vector<1x1x384xf32>
    %14 = vector.shape_cast %13 : vector<1x1x384xf32> to vector<1x384xf32>
    %c0_18 = arith.constant 0 : index
    %c0_19 = arith.constant 0 : index
    %c0_20 = arith.constant 0 : index
    %15 = vector.load %arg19[%c0_18, %c0_19, %c0_20] : memref<1x128x128xf32, #tpu.memory_space<vmem>>, vector<1x128x128xf32>
    %16 = vector.shape_cast %15 : vector<1x128x128xf32> to vector<128x128xf32>
    %c0_21 = arith.constant 0 : index
    %c0_22 = arith.constant 0 : index
    %c0_23 = arith.constant 0 : index
    %17 = vector.load %arg20[%c0_21, %c0_22, %c0_23] : memref<1x1x128xf32, #tpu.memory_space<vmem>>, vector<1x1x128xf32>
    %18 = vector.shape_cast %17 : vector<1x1x128xf32> to vector<1x128xf32>
    %c0_24 = arith.constant 0 : index
    %c0_25 = arith.constant 0 : index
    %c0_26 = arith.constant 0 : index
    %19 = vector.load %arg21[%c0_24, %c0_25, %c0_26] : memref<1x1x128xf32, #tpu.memory_space<vmem>>, vector<1x1x128xf32>
    %20 = vector.shape_cast %19 : vector<1x1x128xf32> to vector<1x128xf32>
    %c0_27 = arith.constant 0 : index
    %c0_28 = arith.constant 0 : index
    %c0_29 = arith.constant 0 : index
    %21 = vector.load %arg22[%c0_27, %c0_28, %c0_29] : memref<1x1x128xf32, #tpu.memory_space<vmem>>, vector<1x1x128xf32>
    %22 = vector.shape_cast %21 : vector<1x1x128xf32> to vector<1x128xf32>
    %c0_30 = arith.constant 0 : index
    %c0_31 = arith.constant 0 : index
    %23 = vector.load %arg28[%c0_30, %c0_31] : memref<16x128xf32, #tpu.memory_space<vmem>>, vector<16x128xf32>
    %c0_32 = arith.constant 0 : index
    %c0_33 = arith.constant 0 : index
    %24 = vector.load %arg3[%c0_32, %c0_33] : memref<32x16xbf16, #tpu.memory_space<vmem>>, vector<32x16xbf16>
    %c0_34 = arith.constant 0 : index
    %c0_35 = arith.constant 0 : index
    %25 = vector.load %arg4[%c0_34, %c0_35] : memref<16x32xbf16, #tpu.memory_space<vmem>>, vector<16x32xbf16>
    %c0_36 = arith.constant 0 : index
    %c0_37 = arith.constant 0 : index
    %26 = vector.load %arg5[%c0_36, %c0_37] : memref<32x128xf32, #tpu.memory_space<vmem>>, vector<32x128xf32>
    %27 = arith.truncf %23 : vector<16x128xf32> to vector<16x128xbf16>
    %cst = arith.constant dense<0.000000e+00> : vector<32x128xf32>
    %28 = tpu.matmul %24, %27, %cst {dimension_numbers = #tpu.dot_dimension_numbers<[1], [0], [0], [1], [0, 0, 1, 1], [], []>} : vector<32x16xbf16>, vector<16x128xbf16>, vector<32x128xf32> -> vector<32x128xf32>
    %29 = arith.addf %28, %26 : vector<32x128xf32>
    %cst_38 = arith.constant 0.000000e+00 : f32
    %30 = vector.broadcast %cst_38 : f32 to vector<32x128xf32>
    %31 = arith.maximumf %29, %30 : vector<32x128xf32>
    %cst_39 = arith.constant 1.000000e-07 : f32
    %32 = vector.broadcast %cst_39 : f32 to vector<32x128xf32>
    %33 = arith.addf %31, %32 : vector<32x128xf32>
    %cst_40 = arith.constant 7.000000e+01 : f32
    %34 = vector.broadcast %cst_40 : f32 to vector<32x128xf32>
    %35 = arith.minimumf %33, %34 : vector<32x128xf32>
    %36 = math.exp %35 : vector<32x128xf32>
    %37 = arith.mulf %36, %33 : vector<32x128xf32>
    %38 = tpu.concatenate %36, %37 in 1 : vector<32x128xf32>, vector<32x128xf32> -> vector<32x256xf32>
    %39 = arith.truncf %38 : vector<32x256xf32> to vector<32x256xbf16>
    %cst_41 = arith.constant dense<0.000000e+00> : vector<16x256xf32>
    %40 = tpu.matmul %25, %39, %cst_41 {dimension_numbers = #tpu.dot_dimension_numbers<[1], [0], [0], [1], [0, 0, 1, 1], [], []>} : vector<16x32xbf16>, vector<32x256xbf16>, vector<16x256xf32> -> vector<16x256xf32>
    %41 = vector.extract_strided_slice %40 {offsets = [0, 0], sizes = [16, 128], strides = [1, 1]} : vector<16x256xf32> to vector<16x128xf32>
    %42 = vector.extract_strided_slice %40 {offsets = [0, 128], sizes = [16, 128], strides = [1, 1]} : vector<16x256xf32> to vector<16x128xf32>
    %cst_42 = arith.constant 1.000000e-16 : f32
    %43 = vector.broadcast %cst_42 : f32 to vector<16x128xf32>
    %44 = arith.maximumf %41, %43 : vector<16x128xf32>
    %45 = arith.divf %42, %44 : vector<16x128xf32>
    %46 = arith.addf %45, %23 : vector<16x128xf32>
    %c0_43 = arith.constant 0 : index
    %c0_44 = arith.constant 0 : index
    %47 = vector.load %arg29[%c0_43, %c0_44] : memref<16x128xf32, #tpu.memory_space<vmem>>, vector<16x128xf32>
    %c0_45 = arith.constant 0 : index
    %c0_46 = arith.constant 0 : index
    %48 = vector.load %arg6[%c0_45, %c0_46] : memref<32x16xbf16, #tpu.memory_space<vmem>>, vector<32x16xbf16>
    %c0_47 = arith.constant 0 : index
    %c0_48 = arith.constant 0 : index
    %49 = vector.load %arg7[%c0_47, %c0_48] : memref<16x32xbf16, #tpu.memory_space<vmem>>, vector<16x32xbf16>
    %c0_49 = arith.constant 0 : index
    %c0_50 = arith.constant 0 : index
    %50 = vector.load %arg8[%c0_49, %c0_50] : memref<32x128xf32, #tpu.memory_space<vmem>>, vector<32x128xf32>
    %51 = arith.truncf %47 : vector<16x128xf32> to vector<16x128xbf16>
    %cst_51 = arith.constant dense<0.000000e+00> : vector<32x128xf32>
    %52 = tpu.matmul %48, %51, %cst_51 {dimension_numbers = #tpu.dot_dimension_numbers<[1], [0], [0], [1], [0, 0, 1, 1], [], []>} : vector<32x16xbf16>, vector<16x128xbf16>, vector<32x128xf32> -> vector<32x128xf32>
    %53 = arith.addf %52, %50 : vector<32x128xf32>
    %cst_52 = arith.constant 0.000000e+00 : f32
    %54 = vector.broadcast %cst_52 : f32 to vector<32x128xf32>
    %55 = arith.maximumf %53, %54 : vector<32x128xf32>
    %cst_53 = arith.constant 1.000000e-07 : f32
    %56 = vector.broadcast %cst_53 : f32 to vector<32x128xf32>
    %57 = arith.addf %55, %56 : vector<32x128xf32>
    %cst_54 = arith.constant 7.000000e+01 : f32
    %58 = vector.broadcast %cst_54 : f32 to vector<32x128xf32>
    %59 = arith.minimumf %57, %58 : vector<32x128xf32>
    %60 = math.exp %59 : vector<32x128xf32>
    %61 = arith.mulf %60, %57 : vector<32x128xf32>
    %62 = tpu.concatenate %60, %61 in 1 : vector<32x128xf32>, vector<32x128xf32> -> vector<32x256xf32>
    %63 = arith.truncf %62 : vector<32x256xf32> to vector<32x256xbf16>
    %cst_55 = arith.constant dense<0.000000e+00> : vector<16x256xf32>
    %64 = tpu.matmul %49, %63, %cst_55 {dimension_numbers = #tpu.dot_dimension_numbers<[1], [0], [0], [1], [0, 0, 1, 1], [], []>} : vector<16x32xbf16>, vector<32x256xbf16>, vector<16x256xf32> -> vector<16x256xf32>
    %65 = vector.extract_strided_slice %64 {offsets = [0, 0], sizes = [16, 128], strides = [1, 1]} : vector<16x256xf32> to vector<16x128xf32>
    %66 = vector.extract_strided_slice %64 {offsets = [0, 128], sizes = [16, 128], strides = [1, 1]} : vector<16x256xf32> to vector<16x128xf32>
    %cst_56 = arith.constant 1.000000e-16 : f32
    %67 = vector.broadcast %cst_56 : f32 to vector<16x128xf32>
    %68 = arith.maximumf %65, %67 : vector<16x128xf32>
    %69 = arith.divf %66, %68 : vector<16x128xf32>
    %70 = arith.addf %69, %47 : vector<16x128xf32>
    %71 = tpu.concatenate %46, %70 in 0 : vector<16x128xf32>, vector<16x128xf32> -> vector<32x128xf32>
    %72 = arith.truncf %71 : vector<32x128xf32> to vector<32x128xbf16>
    %73 = arith.truncf %4 : vector<128x256xf32> to vector<128x256xbf16>
    %cst_57 = arith.constant dense<0.000000e+00> : vector<32x256xf32>
    %74 = tpu.matmul %72, %73, %cst_57 {dimension_numbers = #tpu.dot_dimension_numbers<[1], [0], [0], [1], [0, 0, 1, 1], [], []>} : vector<32x128xbf16>, vector<128x256xbf16>, vector<32x256xf32> -> vector<32x256xf32>
    %75 = vector.broadcast %6 : vector<1x256xf32> to vector<32x256xf32>
    %76 = arith.addf %74, %75 : vector<32x256xf32>
    %cst_58 = arith.constant 0.000000e+00 : f32
    %77 = vector.broadcast %cst_58 : f32 to vector<32x256xf32>
    %78 = arith.maximumf %76, %77 : vector<32x256xf32>
    %79 = arith.truncf %78 : vector<32x256xf32> to vector<32x256xbf16>
    %80 = arith.truncf %8 : vector<256x128xf32> to vector<256x128xbf16>
    %cst_59 = arith.constant dense<0.000000e+00> : vector<32x128xf32>
    %81 = tpu.matmul %79, %80, %cst_59 {dimension_numbers = #tpu.dot_dimension_numbers<[1], [0], [0], [1], [0, 0, 1, 1], [], []>} : vector<32x256xbf16>, vector<256x128xbf16>, vector<32x128xf32> -> vector<32x128xf32>
    %82 = vector.broadcast %10 : vector<1x128xf32> to vector<32x128xf32>
    %83 = arith.addf %81, %82 : vector<32x128xf32>
    %84 = arith.truncf %83 : vector<32x128xf32> to vector<32x128xbf16>
    %85 = arith.truncf %12 : vector<128x384xf32> to vector<128x384xbf16>
    %cst_60 = arith.constant dense<0.000000e+00> : vector<32x384xf32>
    %86 = tpu.matmul %84, %85, %cst_60 {dimension_numbers = #tpu.dot_dimension_numbers<[1], [0], [0], [1], [0, 0, 1, 1], [], []>} : vector<32x128xbf16>, vector<128x384xbf16>, vector<32x384xf32> -> vector<32x384xf32>
    %87 = vector.broadcast %14 : vector<1x384xf32> to vector<32x384xf32>
    %88 = arith.addf %86, %87 : vector<32x384xf32>
    %89 = vector.extract_strided_slice %88 {offsets = [0, 0], sizes = [16, 384], strides = [1, 1]} : vector<32x384xf32> to vector<16x384xf32>
    %90 = vector.extract_strided_slice %88 {offsets = [16, 0], sizes = [16, 384], strides = [1, 1]} : vector<32x384xf32> to vector<16x384xf32>
    %c0_61 = arith.constant 0 : index
    %c0_62 = arith.constant 0 : index
    %91 = vector.load %arg9[%c0_61, %c0_62] : memref<16x1xi32, #tpu.memory_space<vmem>>, vector<16x1xi32>
    %c0_63 = arith.constant 0 : index
    %c0_64 = arith.constant 0 : index
    %92 = vector.load %arg10[%c0_63, %c0_64] : memref<1x16xi32, #tpu.memory_space<vmem>>, vector<1x16xi32>
    %93 = vector.broadcast %91 : vector<16x1xi32> to vector<16x16xi32>
    %94 = vector.broadcast %92 : vector<1x16xi32> to vector<16x16xi32>
    %95 = arith.cmpi ne, %93, %94 : vector<16x16xi32>
    %cst_65 = arith.constant -1.000000e+30 : f32
    %cst_66 = arith.constant 0.000000e+00 : f32
    %96 = vector.broadcast %cst_65 : f32 to vector<16x16xf32>
    %97 = vector.broadcast %cst_66 : f32 to vector<16x16xf32>
    %98 = arith.select %95, %96, %97 : vector<16x16xi1>, vector<16x16xf32>
    %99 = tpu.transpose %98, [1, 0] : vector<16x16xf32> -> vector<16x16xf32>
    %100 = vector.extract_strided_slice %89 {offsets = [0, 0], sizes = [16, 32], strides = [1, 1]} : vector<16x384xf32> to vector<16x32xf32>
    %101 = vector.extract_strided_slice %90 {offsets = [0, 128], sizes = [16, 32], strides = [1, 1]} : vector<16x384xf32> to vector<16x32xf32>
    %102 = vector.extract_strided_slice %90 {offsets = [0, 256], sizes = [16, 32], strides = [1, 1]} : vector<16x384xf32> to vector<16x32xf32>
    %103 = arith.truncf %100 : vector<16x32xf32> to vector<16x32xbf16>
    %104 = arith.truncf %101 : vector<16x32xf32> to vector<16x32xbf16>
    %cst_67 = arith.constant dense<0.000000e+00> : vector<16x16xf32>
    %105 = tpu.matmul %103, %104, %cst_67 {dimension_numbers = #tpu.dot_dimension_numbers<[1], [1], [0], [0], [0, 0, 1, 0], [], []>} : vector<16x32xbf16>, vector<16x32xbf16>, vector<16x16xf32> -> vector<16x16xf32>
    %106 = arith.addf %105, %98 : vector<16x16xf32>
    %cst_68 = arith.constant dense<0xFF800000> : vector<16xf32>
    %107 = vector.multi_reduction <maximumf>, %106, %cst_68 [1] : vector<16x16xf32> to vector<16xf32>
    %108 = vector.shape_cast %107 : vector<16xf32> to vector<16x1xf32>
    %109 = vector.broadcast %108 : vector<16x1xf32> to vector<16x16xf32>
    %110 = arith.subf %106, %109 : vector<16x16xf32>
    %111 = math.exp %110 : vector<16x16xf32>
    %cst_69 = arith.constant dense<0.000000e+00> : vector<16xf32>
    %112 = vector.multi_reduction <add>, %111, %cst_69 [1] : vector<16x16xf32> to vector<16xf32>
    %113 = vector.shape_cast %112 : vector<16xf32> to vector<16x1xf32>
    %114 = tpu.reciprocal %113 {approx = true} : vector<16x1xf32> -> vector<16x1xf32>
    %115 = vector.broadcast %114 : vector<16x1xf32> to vector<16x16xf32>
    %116 = arith.mulf %111, %115 : vector<16x16xf32>
    %117 = arith.truncf %116 : vector<16x16xf32> to vector<16x16xbf16>
    %118 = arith.truncf %102 : vector<16x32xf32> to vector<16x32xbf16>
    %cst_70 = arith.constant dense<0.000000e+00> : vector<16x32xf32>
    %119 = tpu.matmul %117, %118, %cst_70 {dimension_numbers = #tpu.dot_dimension_numbers<[1], [0], [0], [1], [0, 0, 1, 1], [], []>} : vector<16x16xbf16>, vector<16x32xbf16>, vector<16x32xf32> -> vector<16x32xf32>
    %c0_71 = arith.constant 0 : index
    %c0_72 = arith.constant 0 : index
    %120 = vector.load %arg30[%c0_71, %c0_72] : memref<32x128xf32, #tpu.memory_space<vmem>>, vector<16x32xf32>
    tpu.vector_store %arg30[%c0_71, %c0_72], %119 {strides = array<i32>} : memref<32x128xf32, #tpu.memory_space<vmem>>, vector<16x32xf32>,
    %121 = vector.extract_strided_slice %89 {offsets = [0, 32], sizes = [16, 32], strides = [1, 1]} : vector<16x384xf32> to vector<16x32xf32>
    %122 = vector.extract_strided_slice %90 {offsets = [0, 160], sizes = [16, 32], strides = [1, 1]} : vector<16x384xf32> to vector<16x32xf32>
    %123 = vector.extract_strided_slice %90 {offsets = [0, 288], sizes = [16, 32], strides = [1, 1]} : vector<16x384xf32> to vector<16x32xf32>
    %124 = arith.truncf %121 : vector<16x32xf32> to vector<16x32xbf16>
    %125 = arith.truncf %122 : vector<16x32xf32> to vector<16x32xbf16>
    %cst_73 = arith.constant dense<0.000000e+00> : vector<16x16xf32>
    %126 = tpu.matmul %124, %125, %cst_73 {dimension_numbers = #tpu.dot_dimension_numbers<[1], [1], [0], [0], [0, 0, 1, 0], [], []>} : vector<16x32xbf16>, vector<16x32xbf16>, vector<16x16xf32> -> vector<16x16xf32>
    %127 = arith.addf %126, %98 : vector<16x16xf32>
    %cst_74 = arith.constant dense<0xFF800000> : vector<16xf32>
    %128 = vector.multi_reduction <maximumf>, %127, %cst_74 [1] : vector<16x16xf32> to vector<16xf32>
    %129 = vector.shape_cast %128 : vector<16xf32> to vector<16x1xf32>
    %130 = vector.broadcast %129 : vector<16x1xf32> to vector<16x16xf32>
    %131 = arith.subf %127, %130 : vector<16x16xf32>
    %132 = math.exp %131 : vector<16x16xf32>
    %cst_75 = arith.constant dense<0.000000e+00> : vector<16xf32>
    %133 = vector.multi_reduction <add>, %132, %cst_75 [1] : vector<16x16xf32> to vector<16xf32>
    %134 = vector.shape_cast %133 : vector<16xf32> to vector<16x1xf32>
    %135 = tpu.reciprocal %134 {approx = true} : vector<16x1xf32> -> vector<16x1xf32>
    %136 = vector.broadcast %135 : vector<16x1xf32> to vector<16x16xf32>
    %137 = arith.mulf %132, %136 : vector<16x16xf32>
    %138 = arith.truncf %137 : vector<16x16xf32> to vector<16x16xbf16>
    %139 = arith.truncf %123 : vector<16x32xf32> to vector<16x32xbf16>
    %cst_76 = arith.constant dense<0.000000e+00> : vector<16x32xf32>
    %140 = tpu.matmul %138, %139, %cst_76 {dimension_numbers = #tpu.dot_dimension_numbers<[1], [0], [0], [1], [0, 0, 1, 1], [], []>} : vector<16x16xbf16>, vector<16x32xbf16>, vector<16x32xf32> -> vector<16x32xf32>
    %c0_77 = arith.constant 0 : index
    %c32 = arith.constant 32 : index
    %141 = vector.load %arg30[%c0_77, %c32] : memref<32x128xf32, #tpu.memory_space<vmem>>, vector<16x32xf32>
    tpu.vector_store %arg30[%c0_77, %c32], %140 {strides = array<i32>} : memref<32x128xf32, #tpu.memory_space<vmem>>, vector<16x32xf32>,
    %142 = vector.extract_strided_slice %89 {offsets = [0, 64], sizes = [16, 32], strides = [1, 1]} : vector<16x384xf32> to vector<16x32xf32>
    %143 = vector.extract_strided_slice %90 {offsets = [0, 192], sizes = [16, 32], strides = [1, 1]} : vector<16x384xf32> to vector<16x32xf32>
    %144 = vector.extract_strided_slice %90 {offsets = [0, 320], sizes = [16, 32], strides = [1, 1]} : vector<16x384xf32> to vector<16x32xf32>
    %145 = arith.truncf %142 : vector<16x32xf32> to vector<16x32xbf16>
    %146 = arith.truncf %143 : vector<16x32xf32> to vector<16x32xbf16>
    %cst_78 = arith.constant dense<0.000000e+00> : vector<16x16xf32>
    %147 = tpu.matmul %145, %146, %cst_78 {dimension_numbers = #tpu.dot_dimension_numbers<[1], [1], [0], [0], [0, 0, 1, 0], [], []>} : vector<16x32xbf16>, vector<16x32xbf16>, vector<16x16xf32> -> vector<16x16xf32>
    %148 = arith.addf %147, %98 : vector<16x16xf32>
    %cst_79 = arith.constant dense<0xFF800000> : vector<16xf32>
    %149 = vector.multi_reduction <maximumf>, %148, %cst_79 [1] : vector<16x16xf32> to vector<16xf32>
    %150 = vector.shape_cast %149 : vector<16xf32> to vector<16x1xf32>
    %151 = vector.broadcast %150 : vector<16x1xf32> to vector<16x16xf32>
    %152 = arith.subf %148, %151 : vector<16x16xf32>
    %153 = math.exp %152 : vector<16x16xf32>
    %cst_80 = arith.constant dense<0.000000e+00> : vector<16xf32>
    %154 = vector.multi_reduction <add>, %153, %cst_80 [1] : vector<16x16xf32> to vector<16xf32>
    %155 = vector.shape_cast %154 : vector<16xf32> to vector<16x1xf32>
    %156 = tpu.reciprocal %155 {approx = true} : vector<16x1xf32> -> vector<16x1xf32>
    %157 = vector.broadcast %156 : vector<16x1xf32> to vector<16x16xf32>
    %158 = arith.mulf %153, %157 : vector<16x16xf32>
    %159 = arith.truncf %158 : vector<16x16xf32> to vector<16x16xbf16>
    %160 = arith.truncf %144 : vector<16x32xf32> to vector<16x32xbf16>
    %cst_81 = arith.constant dense<0.000000e+00> : vector<16x32xf32>
    %161 = tpu.matmul %159, %160, %cst_81 {dimension_numbers = #tpu.dot_dimension_numbers<[1], [0], [0], [1], [0, 0, 1, 1], [], []>} : vector<16x16xbf16>, vector<16x32xbf16>, vector<16x32xf32> -> vector<16x32xf32>
    %c0_82 = arith.constant 0 : index
    %c64 = arith.constant 64 : index
    %162 = vector.load %arg30[%c0_82, %c64] : memref<32x128xf32, #tpu.memory_space<vmem>>, vector<16x32xf32>
    tpu.vector_store %arg30[%c0_82, %c64], %161 {strides = array<i32>} : memref<32x128xf32, #tpu.memory_space<vmem>>, vector<16x32xf32>,
    %163 = vector.extract_strided_slice %89 {offsets = [0, 96], sizes = [16, 32], strides = [1, 1]} : vector<16x384xf32> to vector<16x32xf32>
    %164 = vector.extract_strided_slice %90 {offsets = [0, 224], sizes = [16, 32], strides = [1, 1]} : vector<16x384xf32> to vector<16x32xf32>
    %165 = vector.extract_strided_slice %90 {offsets = [0, 352], sizes = [16, 32], strides = [1, 1]} : vector<16x384xf32> to vector<16x32xf32>
    %166 = arith.truncf %163 : vector<16x32xf32> to vector<16x32xbf16>
    %167 = arith.truncf %164 : vector<16x32xf32> to vector<16x32xbf16>
    %cst_83 = arith.constant dense<0.000000e+00> : vector<16x16xf32>
    %168 = tpu.matmul %166, %167, %cst_83 {dimension_numbers = #tpu.dot_dimension_numbers<[1], [1], [0], [0], [0, 0, 1, 0], [], []>} : vector<16x32xbf16>, vector<16x32xbf16>, vector<16x16xf32> -> vector<16x16xf32>
    %169 = arith.addf %168, %98 : vector<16x16xf32>
    %cst_84 = arith.constant dense<0xFF800000> : vector<16xf32>
    %170 = vector.multi_reduction <maximumf>, %169, %cst_84 [1] : vector<16x16xf32> to vector<16xf32>
    %171 = vector.shape_cast %170 : vector<16xf32> to vector<16x1xf32>
    %172 = vector.broadcast %171 : vector<16x1xf32> to vector<16x16xf32>
    %173 = arith.subf %169, %172 : vector<16x16xf32>
    %174 = math.exp %173 : vector<16x16xf32>
    %cst_85 = arith.constant dense<0.000000e+00> : vector<16xf32>
    %175 = vector.multi_reduction <add>, %174, %cst_85 [1] : vector<16x16xf32> to vector<16xf32>
    %176 = vector.shape_cast %175 : vector<16xf32> to vector<16x1xf32>
    %177 = tpu.reciprocal %176 {approx = true} : vector<16x1xf32> -> vector<16x1xf32>
    %178 = vector.broadcast %177 : vector<16x1xf32> to vector<16x16xf32>
    %179 = arith.mulf %174, %178 : vector<16x16xf32>
    %180 = arith.truncf %179 : vector<16x16xf32> to vector<16x16xbf16>
    %181 = arith.truncf %165 : vector<16x32xf32> to vector<16x32xbf16>
    %cst_86 = arith.constant dense<0.000000e+00> : vector<16x32xf32>
    %182 = tpu.matmul %180, %181, %cst_86 {dimension_numbers = #tpu.dot_dimension_numbers<[1], [0], [0], [1], [0, 0, 1, 1], [], []>} : vector<16x16xbf16>, vector<16x32xbf16>, vector<16x32xf32> -> vector<16x32xf32>
    %c0_87 = arith.constant 0 : index
    %c96 = arith.constant 96 : index
    %183 = vector.load %arg30[%c0_87, %c96] : memref<32x128xf32, #tpu.memory_space<vmem>>, vector<16x32xf32>
    tpu.vector_store %arg30[%c0_87, %c96], %182 {strides = array<i32>} : memref<32x128xf32, #tpu.memory_space<vmem>>, vector<16x32xf32>,
    %184 = vector.extract_strided_slice %90 {offsets = [0, 0], sizes = [16, 32], strides = [1, 1]} : vector<16x384xf32> to vector<16x32xf32>
    %185 = vector.extract_strided_slice %89 {offsets = [0, 128], sizes = [16, 32], strides = [1, 1]} : vector<16x384xf32> to vector<16x32xf32>
    %186 = vector.extract_strided_slice %89 {offsets = [0, 256], sizes = [16, 32], strides = [1, 1]} : vector<16x384xf32> to vector<16x32xf32>
    %187 = arith.truncf %184 : vector<16x32xf32> to vector<16x32xbf16>
    %188 = arith.truncf %185 : vector<16x32xf32> to vector<16x32xbf16>
    %cst_88 = arith.constant dense<0.000000e+00> : vector<16x16xf32>
    %189 = tpu.matmul %187, %188, %cst_88 {dimension_numbers = #tpu.dot_dimension_numbers<[1], [1], [0], [0], [0, 0, 1, 0], [], []>} : vector<16x32xbf16>, vector<16x32xbf16>, vector<16x16xf32> -> vector<16x16xf32>
    %190 = arith.addf %189, %99 : vector<16x16xf32>
    %cst_89 = arith.constant dense<0xFF800000> : vector<16xf32>
    %191 = vector.multi_reduction <maximumf>, %190, %cst_89 [1] : vector<16x16xf32> to vector<16xf32>
    %192 = vector.shape_cast %191 : vector<16xf32> to vector<16x1xf32>
    %193 = vector.broadcast %192 : vector<16x1xf32> to vector<16x16xf32>
    %194 = arith.subf %190, %193 : vector<16x16xf32>
    %195 = math.exp %194 : vector<16x16xf32>
    %cst_90 = arith.constant dense<0.000000e+00> : vector<16xf32>
    %196 = vector.multi_reduction <add>, %195, %cst_90 [1] : vector<16x16xf32> to vector<16xf32>
    %197 = vector.shape_cast %196 : vector<16xf32> to vector<16x1xf32>
    %198 = tpu.reciprocal %197 {approx = true} : vector<16x1xf32> -> vector<16x1xf32>
    %199 = vector.broadcast %198 : vector<16x1xf32> to vector<16x16xf32>
    %200 = arith.mulf %195, %199 : vector<16x16xf32>
    %201 = arith.truncf %200 : vector<16x16xf32> to vector<16x16xbf16>
    %202 = arith.truncf %186 : vector<16x32xf32> to vector<16x32xbf16>
    %cst_91 = arith.constant dense<0.000000e+00> : vector<16x32xf32>
    %203 = tpu.matmul %201, %202, %cst_91 {dimension_numbers = #tpu.dot_dimension_numbers<[1], [0], [0], [1], [0, 0, 1, 1], [], []>} : vector<16x16xbf16>, vector<16x32xbf16>, vector<16x32xf32> -> vector<16x32xf32>
    %c16 = arith.constant 16 : index
    %c0_92 = arith.constant 0 : index
    %204 = vector.load %arg30[%c16, %c0_92] : memref<32x128xf32, #tpu.memory_space<vmem>>, vector<16x32xf32>
    tpu.vector_store %arg30[%c16, %c0_92], %203 {strides = array<i32>} : memref<32x128xf32, #tpu.memory_space<vmem>>, vector<16x32xf32>,
    %205 = vector.extract_strided_slice %90 {offsets = [0, 32], sizes = [16, 32], strides = [1, 1]} : vector<16x384xf32> to vector<16x32xf32>
    %206 = vector.extract_strided_slice %89 {offsets = [0, 160], sizes = [16, 32], strides = [1, 1]} : vector<16x384xf32> to vector<16x32xf32>
    %207 = vector.extract_strided_slice %89 {offsets = [0, 288], sizes = [16, 32], strides = [1, 1]} : vector<16x384xf32> to vector<16x32xf32>
    %208 = arith.truncf %205 : vector<16x32xf32> to vector<16x32xbf16>
    %209 = arith.truncf %206 : vector<16x32xf32> to vector<16x32xbf16>
    %cst_93 = arith.constant dense<0.000000e+00> : vector<16x16xf32>
    %210 = tpu.matmul %208, %209, %cst_93 {dimension_numbers = #tpu.dot_dimension_numbers<[1], [1], [0], [0], [0, 0, 1, 0], [], []>} : vector<16x32xbf16>, vector<16x32xbf16>, vector<16x16xf32> -> vector<16x16xf32>
    %211 = arith.addf %210, %99 : vector<16x16xf32>
    %cst_94 = arith.constant dense<0xFF800000> : vector<16xf32>
    %212 = vector.multi_reduction <maximumf>, %211, %cst_94 [1] : vector<16x16xf32> to vector<16xf32>
    %213 = vector.shape_cast %212 : vector<16xf32> to vector<16x1xf32>
    %214 = vector.broadcast %213 : vector<16x1xf32> to vector<16x16xf32>
    %215 = arith.subf %211, %214 : vector<16x16xf32>
    %216 = math.exp %215 : vector<16x16xf32>
    %cst_95 = arith.constant dense<0.000000e+00> : vector<16xf32>
    %217 = vector.multi_reduction <add>, %216, %cst_95 [1] : vector<16x16xf32> to vector<16xf32>
    %218 = vector.shape_cast %217 : vector<16xf32> to vector<16x1xf32>
    %219 = tpu.reciprocal %218 {approx = true} : vector<16x1xf32> -> vector<16x1xf32>
    %220 = vector.broadcast %219 : vector<16x1xf32> to vector<16x16xf32>
    %221 = arith.mulf %216, %220 : vector<16x16xf32>
    %222 = arith.truncf %221 : vector<16x16xf32> to vector<16x16xbf16>
    %223 = arith.truncf %207 : vector<16x32xf32> to vector<16x32xbf16>
    %cst_96 = arith.constant dense<0.000000e+00> : vector<16x32xf32>
    %224 = tpu.matmul %222, %223, %cst_96 {dimension_numbers = #tpu.dot_dimension_numbers<[1], [0], [0], [1], [0, 0, 1, 1], [], []>} : vector<16x16xbf16>, vector<16x32xbf16>, vector<16x32xf32> -> vector<16x32xf32>
    %c16_97 = arith.constant 16 : index
    %c32_98 = arith.constant 32 : index
    %225 = vector.load %arg30[%c16_97, %c32_98] : memref<32x128xf32, #tpu.memory_space<vmem>>, vector<16x32xf32>
    tpu.vector_store %arg30[%c16_97, %c32_98], %224 {strides = array<i32>} : memref<32x128xf32, #tpu.memory_space<vmem>>, vector<16x32xf32>,
    %226 = vector.extract_strided_slice %90 {offsets = [0, 64], sizes = [16, 32], strides = [1, 1]} : vector<16x384xf32> to vector<16x32xf32>
    %227 = vector.extract_strided_slice %89 {offsets = [0, 192], sizes = [16, 32], strides = [1, 1]} : vector<16x384xf32> to vector<16x32xf32>
    %228 = vector.extract_strided_slice %89 {offsets = [0, 320], sizes = [16, 32], strides = [1, 1]} : vector<16x384xf32> to vector<16x32xf32>
    %229 = arith.truncf %226 : vector<16x32xf32> to vector<16x32xbf16>
    %230 = arith.truncf %227 : vector<16x32xf32> to vector<16x32xbf16>
    %cst_99 = arith.constant dense<0.000000e+00> : vector<16x16xf32>
    %231 = tpu.matmul %229, %230, %cst_99 {dimension_numbers = #tpu.dot_dimension_numbers<[1], [1], [0], [0], [0, 0, 1, 0], [], []>} : vector<16x32xbf16>, vector<16x32xbf16>, vector<16x16xf32> -> vector<16x16xf32>
    %232 = arith.addf %231, %99 : vector<16x16xf32>
    %cst_100 = arith.constant dense<0xFF800000> : vector<16xf32>
    %233 = vector.multi_reduction <maximumf>, %232, %cst_100 [1] : vector<16x16xf32> to vector<16xf32>
    %234 = vector.shape_cast %233 : vector<16xf32> to vector<16x1xf32>
    %235 = vector.broadcast %234 : vector<16x1xf32> to vector<16x16xf32>
    %236 = arith.subf %232, %235 : vector<16x16xf32>
    %237 = math.exp %236 : vector<16x16xf32>
    %cst_101 = arith.constant dense<0.000000e+00> : vector<16xf32>
    %238 = vector.multi_reduction <add>, %237, %cst_101 [1] : vector<16x16xf32> to vector<16xf32>
    %239 = vector.shape_cast %238 : vector<16xf32> to vector<16x1xf32>
    %240 = tpu.reciprocal %239 {approx = true} : vector<16x1xf32> -> vector<16x1xf32>
    %241 = vector.broadcast %240 : vector<16x1xf32> to vector<16x16xf32>
    %242 = arith.mulf %237, %241 : vector<16x16xf32>
    %243 = arith.truncf %242 : vector<16x16xf32> to vector<16x16xbf16>
    %244 = arith.truncf %228 : vector<16x32xf32> to vector<16x32xbf16>
    %cst_102 = arith.constant dense<0.000000e+00> : vector<16x32xf32>
    %245 = tpu.matmul %243, %244, %cst_102 {dimension_numbers = #tpu.dot_dimension_numbers<[1], [0], [0], [1], [0, 0, 1, 1], [], []>} : vector<16x16xbf16>, vector<16x32xbf16>, vector<16x32xf32> -> vector<16x32xf32>
    %c16_103 = arith.constant 16 : index
    %c64_104 = arith.constant 64 : index
    %246 = vector.load %arg30[%c16_103, %c64_104] : memref<32x128xf32, #tpu.memory_space<vmem>>, vector<16x32xf32>
    tpu.vector_store %arg30[%c16_103, %c64_104], %245 {strides = array<i32>} : memref<32x128xf32, #tpu.memory_space<vmem>>, vector<16x32xf32>,
    %247 = vector.extract_strided_slice %90 {offsets = [0, 96], sizes = [16, 32], strides = [1, 1]} : vector<16x384xf32> to vector<16x32xf32>
    %248 = vector.extract_strided_slice %89 {offsets = [0, 224], sizes = [16, 32], strides = [1, 1]} : vector<16x384xf32> to vector<16x32xf32>
    %249 = vector.extract_strided_slice %89 {offsets = [0, 352], sizes = [16, 32], strides = [1, 1]} : vector<16x384xf32> to vector<16x32xf32>
    %250 = arith.truncf %247 : vector<16x32xf32> to vector<16x32xbf16>
    %251 = arith.truncf %248 : vector<16x32xf32> to vector<16x32xbf16>
    %cst_105 = arith.constant dense<0.000000e+00> : vector<16x16xf32>
    %252 = tpu.matmul %250, %251, %cst_105 {dimension_numbers = #tpu.dot_dimension_numbers<[1], [1], [0], [0], [0, 0, 1, 0], [], []>} : vector<16x32xbf16>, vector<16x32xbf16>, vector<16x16xf32> -> vector<16x16xf32>
    %253 = arith.addf %252, %99 : vector<16x16xf32>
    %cst_106 = arith.constant dense<0xFF800000> : vector<16xf32>
    %254 = vector.multi_reduction <maximumf>, %253, %cst_106 [1] : vector<16x16xf32> to vector<16xf32>
    %255 = vector.shape_cast %254 : vector<16xf32> to vector<16x1xf32>
    %256 = vector.broadcast %255 : vector<16x1xf32> to vector<16x16xf32>
    %257 = arith.subf %253, %256 : vector<16x16xf32>
    %258 = math.exp %257 : vector<16x16xf32>
    %cst_107 = arith.constant dense<0.000000e+00> : vector<16xf32>
    %259 = vector.multi_reduction <add>, %258, %cst_107 [1] : vector<16x16xf32> to vector<16xf32>
    %260 = vector.shape_cast %259 : vector<16xf32> to vector<16x1xf32>
    %261 = tpu.reciprocal %260 {approx = true} : vector<16x1xf32> -> vector<16x1xf32>
    %262 = vector.broadcast %261 : vector<16x1xf32> to vector<16x16xf32>
    %263 = arith.mulf %258, %262 : vector<16x16xf32>
    %264 = arith.truncf %263 : vector<16x16xf32> to vector<16x16xbf16>
    %265 = arith.truncf %249 : vector<16x32xf32> to vector<16x32xbf16>
    %cst_108 = arith.constant dense<0.000000e+00> : vector<16x32xf32>
    %266 = tpu.matmul %264, %265, %cst_108 {dimension_numbers = #tpu.dot_dimension_numbers<[1], [0], [0], [1], [0, 0, 1, 1], [], []>} : vector<16x16xbf16>, vector<16x32xbf16>, vector<16x32xf32> -> vector<16x32xf32>
    %c16_109 = arith.constant 16 : index
    %c96_110 = arith.constant 96 : index
    %267 = vector.load %arg30[%c16_109, %c96_110] : memref<32x128xf32, #tpu.memory_space<vmem>>, vector<16x32xf32>
    tpu.vector_store %arg30[%c16_109, %c96_110], %266 {strides = array<i32>} : memref<32x128xf32, #tpu.memory_space<vmem>>, vector<16x32xf32>,
    %c0_111 = arith.constant 0 : index
    %c0_112 = arith.constant 0 : index
    %268 = vector.load %arg30[%c0_111, %c0_112] : memref<32x128xf32, #tpu.memory_space<vmem>>, vector<32x128xf32>
    %269 = arith.truncf %268 : vector<32x128xf32> to vector<32x128xbf16>
    %270 = arith.truncf %16 : vector<128x128xf32> to vector<128x128xbf16>
    %cst_113 = arith.constant dense<0.000000e+00> : vector<32x128xf32>
    %271 = tpu.matmul %269, %270, %cst_113 {dimension_numbers = #tpu.dot_dimension_numbers<[1], [0], [0], [1], [0, 0, 1, 1], [], []>} : vector<32x128xbf16>, vector<128x128xbf16>, vector<32x128xf32> -> vector<32x128xf32>
    %272 = vector.broadcast %18 : vector<1x128xf32> to vector<32x128xf32>
    %273 = arith.addf %271, %272 : vector<32x128xf32>
    %cst_114 = arith.constant dense<0.000000e+00> : vector<32xf32>
    %274 = vector.multi_reduction <add>, %273, %cst_114 [1] : vector<32x128xf32> to vector<32xf32>
    %275 = vector.shape_cast %274 : vector<32xf32> to vector<32x1xf32>
    %cst_115 = arith.constant 1.280000e+02 : f32
    %276 = vector.broadcast %cst_115 : f32 to vector<32x1xf32>
    %277 = arith.divf %275, %276 : vector<32x1xf32>
    %278 = vector.broadcast %277 : vector<32x1xf32> to vector<32x128xf32>
    %279 = arith.subf %273, %278 : vector<32x128xf32>
    %280 = arith.mulf %279, %279 : vector<32x128xf32>
    %cst_116 = arith.constant dense<0.000000e+00> : vector<32xf32>
    %281 = vector.multi_reduction <add>, %280, %cst_116 [1] : vector<32x128xf32> to vector<32xf32>
    %282 = vector.shape_cast %281 : vector<32xf32> to vector<32x1xf32>
    %cst_117 = arith.constant 1.280000e+02 : f32
    %283 = vector.broadcast %cst_117 : f32 to vector<32x1xf32>
    %284 = arith.divf %282, %283 : vector<32x1xf32>
    %285 = vector.broadcast %277 : vector<32x1xf32> to vector<32x128xf32>
    %286 = arith.subf %273, %285 : vector<32x128xf32>
    %cst_118 = arith.constant 9.99999974E-6 : f32
    %287 = vector.broadcast %cst_118 : f32 to vector<32x1xf32>
    %288 = arith.addf %284, %287 : vector<32x1xf32>
    %289 = math.rsqrt %288 : vector<32x1xf32>
    %290 = vector.broadcast %289 : vector<32x1xf32> to vector<32x128xf32>
    %291 = arith.mulf %286, %290 : vector<32x128xf32>
    %292 = vector.broadcast %20 : vector<1x128xf32> to vector<32x128xf32>
    %293 = arith.mulf %291, %292 : vector<32x128xf32>
    %294 = vector.broadcast %22 : vector<1x128xf32> to vector<32x128xf32>
    %295 = arith.addf %293, %294 : vector<32x128xf32>
    %296 = vector.extract_strided_slice %295 {offsets = [0, 0], sizes = [16, 128], strides = [1, 1]} : vector<32x128xf32> to vector<16x128xf32>
    %c0_119 = arith.constant 0 : index
    %c0_120 = arith.constant 0 : index
    %297 = vector.load %arg28[%c0_119, %c0_120] : memref<16x128xf32, #tpu.memory_space<vmem>>, vector<16x128xf32>
    tpu.vector_store %arg28[%c0_119, %c0_120], %296 {strides = array<i32>} : memref<16x128xf32, #tpu.memory_space<vmem>>, vector<16x128xf32>,
    %298 = vector.extract_strided_slice %295 {offsets = [16, 0], sizes = [16, 128], strides = [1, 1]} : vector<32x128xf32> to vector<16x128xf32>
    %c0_121 = arith.constant 0 : index
    %c0_122 = arith.constant 0 : index
    %299 = vector.load %arg29[%c0_121, %c0_122] : memref<16x128xf32, #tpu.memory_space<vmem>>, vector<16x128xf32>
    tpu.vector_store %arg29[%c0_121, %c0_122], %298 {strides = array<i32>} : memref<16x128xf32, #tpu.memory_space<vmem>>, vector<16x128xf32>,
    %c1_i32 = arith.constant 1 : i32
    %300 = arith.cmpi eq, %arg0, %c1_i32 : i32
    %301 = arith.extui %300 : i1 to i32
    %c0_i32_123 = arith.constant 0 : i32
    %302 = arith.cmpi ne, %301, %c0_i32_123 : i32
    scf.if %302 {
      %c0_124 = arith.constant 0 : index
      %c0_125 = arith.constant 0 : index
      %303 = vector.load %arg23[%c0_124, %c0_125] : memref<1x128xf32, #tpu.memory_space<vmem>>, vector<1x128xf32>
      %c0_126 = arith.constant 0 : index
      %c0_127 = arith.constant 0 : index
      %304 = vector.load %arg24[%c0_126, %c0_127] : memref<1x1xf32, #tpu.memory_space<vmem>>, vector<1x1xf32>
      %c0_128 = arith.constant 0 : index
      %c0_129 = arith.constant 0 : index
      %305 = vector.load %arg28[%c0_128, %c0_129] : memref<16x128xf32, #tpu.memory_space<vmem>>, vector<16x128xf32>
      %c0_130 = arith.constant 0 : index
      %c0_131 = arith.constant 0 : index
      %306 = vector.load %arg11[%c0_130, %c0_131] : memref<2x16xbf16, #tpu.memory_space<vmem>>, vector<2x16xbf16>
      %307 = vector.broadcast %303 : vector<1x128xf32> to vector<16x128xf32>
      %308 = arith.mulf %305, %307 : vector<16x128xf32>
      %cst_132 = arith.constant dense<0.000000e+00> : vector<16xf32>
      %309 = vector.multi_reduction <add>, %308, %cst_132 [1] : vector<16x128xf32> to vector<16xf32>
      %310 = vector.shape_cast %309 : vector<16xf32> to vector<16x1xf32>
      %311 = vector.broadcast %304 : vector<1x1xf32> to vector<16x1xf32>
      %312 = arith.addf %310, %311 : vector<16x1xf32>
      %313 = arith.negf %312 : vector<16x1xf32>
      %314 = math.exp %313 : vector<16x1xf32>
      %cst_133 = arith.constant 1.000000e+00 : f32
      %315 = vector.broadcast %cst_133 : f32 to vector<16x1xf32>
      %316 = arith.addf %315, %314 : vector<16x1xf32>
      %317 = arith.divf %315, %316 : vector<16x1xf32>
      %318 = math.exp %317 : vector<16x1xf32>
      %319 = arith.truncf %318 : vector<16x1xf32> to vector<16x1xbf16>
      %cst_134 = arith.constant dense<0.000000e+00> : vector<2x1xf32>
      %320 = tpu.matmul %306, %319, %cst_134 {dimension_numbers = #tpu.dot_dimension_numbers<[1], [0], [0], [1], [0, 0, 1, 1], [], []>} : vector<2x16xbf16>, vector<16x1xbf16>, vector<2x1xf32> -> vector<2x1xf32>
      %321 = vector.broadcast %318 : vector<16x1xf32> to vector<16x128xf32>
      %322 = arith.mulf %321, %305 : vector<16x128xf32>
      %323 = arith.truncf %322 : vector<16x128xf32> to vector<16x128xbf16>
      %cst_135 = arith.constant dense<0.000000e+00> : vector<2x128xf32>
      %324 = tpu.matmul %306, %323, %cst_135 {dimension_numbers = #tpu.dot_dimension_numbers<[1], [0], [0], [1], [0, 0, 1, 1], [], []>} : vector<2x16xbf16>, vector<16x128xbf16>, vector<2x128xf32> -> vector<2x128xf32>
      %cst_136 = arith.constant 1.000000e-16 : f32
      %325 = vector.broadcast %cst_136 : f32 to vector<2x1xf32>
      %326 = arith.maximumf %320, %325 : vector<2x1xf32>
      %327 = vector.broadcast %326 : vector<2x1xf32> to vector<2x128xf32>
      %328 = arith.divf %324, %327 : vector<2x128xf32>
      %c0_137 = arith.constant 0 : index
      %c0_138 = arith.constant 0 : index
      %329 = vector.load %arg29[%c0_137, %c0_138] : memref<16x128xf32, #tpu.memory_space<vmem>>, vector<16x128xf32>
      %c0_139 = arith.constant 0 : index
      %c0_140 = arith.constant 0 : index
      %330 = vector.load %arg12[%c0_139, %c0_140] : memref<2x16xbf16, #tpu.memory_space<vmem>>, vector<2x16xbf16>
      %331 = vector.broadcast %303 : vector<1x128xf32> to vector<16x128xf32>
      %332 = arith.mulf %329, %331 : vector<16x128xf32>
      %cst_141 = arith.constant dense<0.000000e+00> : vector<16xf32>
      %333 = vector.multi_reduction <add>, %332, %cst_141 [1] : vector<16x128xf32> to vector<16xf32>
      %334 = vector.shape_cast %333 : vector<16xf32> to vector<16x1xf32>
      %335 = vector.broadcast %304 : vector<1x1xf32> to vector<16x1xf32>
      %336 = arith.addf %334, %335 : vector<16x1xf32>
      %337 = arith.negf %336 : vector<16x1xf32>
      %338 = math.exp %337 : vector<16x1xf32>
      %cst_142 = arith.constant 1.000000e+00 : f32
      %339 = vector.broadcast %cst_142 : f32 to vector<16x1xf32>
      %340 = arith.addf %339, %338 : vector<16x1xf32>
      %341 = arith.divf %339, %340 : vector<16x1xf32>
      %342 = math.exp %341 : vector<16x1xf32>
      %343 = arith.truncf %342 : vector<16x1xf32> to vector<16x1xbf16>
      %cst_143 = arith.constant dense<0.000000e+00> : vector<2x1xf32>
      %344 = tpu.matmul %330, %343, %cst_143 {dimension_numbers = #tpu.dot_dimension_numbers<[1], [0], [0], [1], [0, 0, 1, 1], [], []>} : vector<2x16xbf16>, vector<16x1xbf16>, vector<2x1xf32> -> vector<2x1xf32>
      %345 = vector.broadcast %342 : vector<16x1xf32> to vector<16x128xf32>
      %346 = arith.mulf %345, %329 : vector<16x128xf32>
      %347 = arith.truncf %346 : vector<16x128xf32> to vector<16x128xbf16>
      %cst_144 = arith.constant dense<0.000000e+00> : vector<2x128xf32>
      %348 = tpu.matmul %330, %347, %cst_144 {dimension_numbers = #tpu.dot_dimension_numbers<[1], [0], [0], [1], [0, 0, 1, 1], [], []>} : vector<2x16xbf16>, vector<16x128xbf16>, vector<2x128xf32> -> vector<2x128xf32>
      %cst_145 = arith.constant 1.000000e-16 : f32
      %349 = vector.broadcast %cst_145 : f32 to vector<2x1xf32>
      %350 = arith.maximumf %344, %349 : vector<2x1xf32>
      %351 = vector.broadcast %350 : vector<2x1xf32> to vector<2x128xf32>
      %352 = arith.divf %348, %351 : vector<2x128xf32>
      %353 = tpu.concatenate %328, %352 in 1 : vector<2x128xf32>, vector<2x128xf32> -> vector<2x256xf32>
      %c0_146 = arith.constant 0 : index
      %c0_147 = arith.constant 0 : index
      %354 = vector.load %arg25[%c0_146, %c0_147] : memref<256x2xf32, #tpu.memory_space<vmem>>, vector<256x2xf32>
      %355 = arith.truncf %353 : vector<2x256xf32> to vector<2x256xbf16>
      %356 = arith.truncf %354 : vector<256x2xf32> to vector<256x2xbf16>
      %cst_148 = arith.constant dense<0.000000e+00> : vector<2x2xf32>
      %357 = tpu.matmul %355, %356, %cst_148 {dimension_numbers = #tpu.dot_dimension_numbers<[1], [0], [0], [1], [0, 0, 1, 1], [], []>} : vector<2x256xbf16>, vector<256x2xbf16>, vector<2x2xf32> -> vector<2x2xf32>
      %c0_149 = arith.constant 0 : index
      %c0_150 = arith.constant 0 : index
      %358 = vector.load %arg26[%c0_149, %c0_150] : memref<1x2xf32, #tpu.memory_space<vmem>>, vector<1x2xf32>
      %359 = vector.broadcast %358 : vector<1x2xf32> to vector<2x2xf32>
      %360 = arith.addf %357, %359 : vector<2x2xf32>
      %cst_151 = arith.constant dense<0xFF800000> : vector<2xf32>
      %361 = vector.multi_reduction <maximumf>, %360, %cst_151 [1] : vector<2x2xf32> to vector<2xf32>
      %362 = vector.shape_cast %361 : vector<2xf32> to vector<2x1xf32>
      %363 = vector.broadcast %362 : vector<2x1xf32> to vector<2x2xf32>
      %364 = arith.subf %360, %363 : vector<2x2xf32>
      %365 = math.exp %364 : vector<2x2xf32>
      %cst_152 = arith.constant dense<0.000000e+00> : vector<2xf32>
      %366 = vector.multi_reduction <add>, %365, %cst_152 [1] : vector<2x2xf32> to vector<2xf32>
      %367 = vector.shape_cast %366 : vector<2xf32> to vector<2x1xf32>
      %368 = vector.broadcast %367 : vector<2x1xf32> to vector<2x2xf32>
      %369 = arith.divf %365, %368 : vector<2x2xf32>
      %c0_153 = arith.constant 0 : index
      %c0_154 = arith.constant 0 : index
      %370 = vector.load %arg27[%c0_153, %c0_154] : memref<2x2xf32, #tpu.memory_space<vmem>>, vector<2x2xf32>
      tpu.vector_store %arg27[%c0_153, %c0_154], %369 {strides = array<i32>} : memref<2x2xf32, #tpu.memory_space<vmem>>, vector<2x2xf32>,
    } else {
    }
    return
  }
  func.func @transform_0(%arg0: i32) -> (i32, i32) {
    %c0_i32 = arith.constant 0 : i32
    %c0_i32_0 = arith.constant 0 : i32
    %c0_i32_1 = arith.constant 0 : i32
    return %c0_i32, %c0_i32_0 : i32, i32
  }
  func.func @transform_1(%arg0: i32) -> (i32, i32) {
    %c0_i32 = arith.constant 0 : i32
    %c0_i32_0 = arith.constant 0 : i32
    %c0_i32_1 = arith.constant 0 : i32
    return %c0_i32, %c0_i32_0 : i32, i32
  }
  func.func @transform_2(%arg0: i32) -> (i32, i32) {
    %c0_i32 = arith.constant 0 : i32
    %c0_i32_0 = arith.constant 0 : i32
    %c0_i32_1 = arith.constant 0 : i32
    return %c0_i32, %c0_i32_0 : i32, i32
  }
  func.func @transform_3(%arg0: i32) -> (i32, i32) {
    %c0_i32 = arith.constant 0 : i32
    %c0_i32_0 = arith.constant 0 : i32
    %c0_i32_1 = arith.constant 0 : i32
    return %c0_i32, %c0_i32_0 : i32, i32
  }
  func.func @transform_4(%arg0: i32) -> (i32, i32) {
    %c0_i32 = arith.constant 0 : i32
    %c0_i32_0 = arith.constant 0 : i32
    %c0_i32_1 = arith.constant 0 : i32
    return %c0_i32, %c0_i32_0 : i32, i32
  }
  func.func @transform_5(%arg0: i32) -> (i32, i32) {
    %c0_i32 = arith.constant 0 : i32
    %c0_i32_0 = arith.constant 0 : i32
    %c0_i32_1 = arith.constant 0 : i32
    return %c0_i32, %c0_i32_0 : i32, i32
  }
  func.func @transform_6(%arg0: i32) -> (i32, i32) {
    %c0_i32 = arith.constant 0 : i32
    %c0_i32_0 = arith.constant 0 : i32
    %c0_i32_1 = arith.constant 0 : i32
    return %c0_i32, %c0_i32_0 : i32, i32
  }
  func.func @transform_7(%arg0: i32) -> (i32, i32) {
    %c0_i32 = arith.constant 0 : i32
    %c0_i32_0 = arith.constant 0 : i32
    %c0_i32_1 = arith.constant 0 : i32
    return %c0_i32, %c0_i32_0 : i32, i32
  }
  func.func @transform_8(%arg0: i32) -> (i32, i32) {
    %c0_i32 = arith.constant 0 : i32
    %c0_i32_0 = arith.constant 0 : i32
    %c0_i32_1 = arith.constant 0 : i32
    return %c0_i32, %c0_i32_0 : i32, i32
  }
  func.func @transform_9(%arg0: i32) -> (i32, i32) {
    %c0_i32 = arith.constant 0 : i32
    %c0_i32_0 = arith.constant 0 : i32
    %c0_i32_1 = arith.constant 0 : i32
    return %c0_i32, %c0_i32_0 : i32, i32
  }
  func.func @transform_10(%arg0: i32) -> (i32, i32) {
    %c0_i32 = arith.constant 0 : i32
    %c0_i32_0 = arith.constant 0 : i32
    %c0_i32_1 = arith.constant 0 : i32
    return %c0_i32, %c0_i32_0 : i32, i32
  }
  func.func @transform_11(%arg0: i32) -> (i32, i32) {
    %c0_i32 = arith.constant 0 : i32
    %c0_i32_0 = arith.constant 0 : i32
    %c0_i32_1 = arith.constant 0 : i32
    return %c0_i32, %c0_i32_0 : i32, i32
  }
  func.func @transform_12(%arg0: i32) -> (i32, i32, i32) {
    %c0_i32 = arith.constant 0 : i32
    %c0_i32_0 = arith.constant 0 : i32
    %c0_i32_1 = arith.constant 0 : i32
    return %arg0, %c0_i32, %c0_i32_0 : i32, i32, i32
  }
  func.func @transform_13(%arg0: i32) -> (i32, i32, i32) {
    %c0_i32 = arith.constant 0 : i32
    %c0_i32_0 = arith.constant 0 : i32
    %c0_i32_1 = arith.constant 0 : i32
    return %arg0, %c0_i32, %c0_i32_0 : i32, i32, i32
  }
  func.func @transform_14(%arg0: i32) -> (i32, i32, i32) {
    %c0_i32 = arith.constant 0 : i32
    %c0_i32_0 = arith.constant 0 : i32
    %c0_i32_1 = arith.constant 0 : i32
    return %arg0, %c0_i32, %c0_i32_0 : i32, i32, i32
  }
  func.func @transform_15(%arg0: i32) -> (i32, i32, i32) {
    %c0_i32 = arith.constant 0 : i32
    %c0_i32_0 = arith.constant 0 : i32
    %c0_i32_1 = arith.constant 0 : i32
    return %arg0, %c0_i32, %c0_i32_0 : i32, i32, i32
  }
  func.func @transform_16(%arg0: i32) -> (i32, i32, i32) {
    %c0_i32 = arith.constant 0 : i32
    %c0_i32_0 = arith.constant 0 : i32
    %c0_i32_1 = arith.constant 0 : i32
    return %arg0, %c0_i32, %c0_i32_0 : i32, i32, i32
  }
  func.func @transform_17(%arg0: i32) -> (i32, i32, i32) {
    %c0_i32 = arith.constant 0 : i32
    %c0_i32_0 = arith.constant 0 : i32
    %c0_i32_1 = arith.constant 0 : i32
    return %arg0, %c0_i32, %c0_i32_0 : i32, i32, i32
  }
  func.func @transform_18(%arg0: i32) -> (i32, i32, i32) {
    %c0_i32 = arith.constant 0 : i32
    %c0_i32_0 = arith.constant 0 : i32
    %c0_i32_1 = arith.constant 0 : i32
    return %arg0, %c0_i32, %c0_i32_0 : i32, i32, i32
  }
  func.func @transform_19(%arg0: i32) -> (i32, i32, i32) {
    %c0_i32 = arith.constant 0 : i32
    %c0_i32_0 = arith.constant 0 : i32
    %c0_i32_1 = arith.constant 0 : i32
    return %arg0, %c0_i32, %c0_i32_0 : i32, i32, i32
  }
  func.func @transform_20(%arg0: i32) -> (i32, i32, i32) {
    %c0_i32 = arith.constant 0 : i32
    %c0_i32_0 = arith.constant 0 : i32
    %c0_i32_1 = arith.constant 0 : i32
    return %arg0, %c0_i32, %c0_i32_0 : i32, i32, i32
  }
  func.func @transform_21(%arg0: i32) -> (i32, i32, i32) {
    %c0_i32 = arith.constant 0 : i32
    %c0_i32_0 = arith.constant 0 : i32
    %c0_i32_1 = arith.constant 0 : i32
    return %arg0, %c0_i32, %c0_i32_0 : i32, i32, i32
  }
  func.func @transform_22(%arg0: i32) -> (i32, i32) {
    %c0_i32 = arith.constant 0 : i32
    %c0_i32_0 = arith.constant 0 : i32
    %c0_i32_1 = arith.constant 0 : i32
    return %c0_i32, %c0_i32_0 : i32, i32
  }
  func.func @transform_23(%arg0: i32) -> (i32, i32) {
    %c0_i32 = arith.constant 0 : i32
    %c0_i32_0 = arith.constant 0 : i32
    %c0_i32_1 = arith.constant 0 : i32
    return %c0_i32, %c0_i32_0 : i32, i32
  }
  func.func @transform_24(%arg0: i32) -> (i32, i32) {
    %c0_i32 = arith.constant 0 : i32
    %c0_i32_0 = arith.constant 0 : i32
    %c0_i32_1 = arith.constant 0 : i32
    return %c0_i32, %c0_i32_0 : i32, i32
  }
  func.func @transform_25(%arg0: i32) -> (i32, i32) {
    %c0_i32 = arith.constant 0 : i32
    %c0_i32_0 = arith.constant 0 : i32
    %c0_i32_1 = arith.constant 0 : i32
    return %c0_i32, %c0_i32_0 : i32, i32
  }
  func.func @transform_26(%arg0: i32) -> (i32, i32) {
    %c0_i32 = arith.constant 0 : i32
    %c0_i32_0 = arith.constant 0 : i32
    %c0_i32_1 = arith.constant 0 : i32
    return %c0_i32, %c0_i32_0 : i32, i32
  }
}

</mosaic_0001>

<llo_original>
// kernel: tpu_custom_call.1
$region0: #{tpu_custom_call.1}
  #allocation0 [shape = 'u32[]', space=smem, size = 0x4, offset = 0x4, fixed_abs, tag = 'smem constant byte address 0x4 - core index']
  #allocation1 [shape = 'u32[144,128]{1,0:T(1,128)}', space=vmem, size = 0x12000, scoped, tag = 'internal scratch']
  #allocation2 [shape = 'f32[16,128]{1,0:T(8,128)}', space=vmem, size = 0x2000, scoped, tag = 'scratch operand']
  #allocation3 [shape = 'f32[16,128]{1,0:T(8,128)}', space=vmem, size = 0x2000, scoped, tag = 'scratch operand']
  #allocation4 [shape = 'f32[32,128]{1,0:T(8,128)}', space=vmem, size = 0x4000, scoped, tag = 'scratch operand']
  #allocation5 [shape = 'f32[1,1]{1,0:T(1,128)S(1)}', space=vmem, size = 0x200, scoped, tag = 'scoped memory for tpu_custom_call.1']
  %s0 = inlined_call_operand.vmem [shape: f32[16,128], index: 0, kind: input, shape index: {}]
  %s1 = inlined_call_operand.vmem [shape: f32[16,128], index: 1, kind: input, shape index: {}]
  %s2 = inlined_call_operand.vmem [shape: bf16[32,16], index: 2, kind: input, shape index: {}]
  %s3 = inlined_call_operand.hbm [shape: bf16[16,32], index: 3, kind: input, shape index: {}]
  %s4 = inlined_call_operand.vmem [shape: f32[32,128], index: 4, kind: input, shape index: {}]
  %s5 = inlined_call_operand.vmem [shape: bf16[32,16], index: 5, kind: input, shape index: {}]
  %s6 = inlined_call_operand.hbm [shape: bf16[16,32], index: 6, kind: input, shape index: {}]
  %s7 = inlined_call_operand.vmem [shape: f32[32,128], index: 7, kind: input, shape index: {}]
  %s8 = inlined_call_operand.vmem [shape: s32[16,1], index: 8, kind: input, shape index: {}]
  %s9 = inlined_call_operand.vmem [shape: s32[1,16], index: 9, kind: input, shape index: {}]
  %s10 = inlined_call_operand.hbm [shape: bf16[2,16], index: 10, kind: input, shape index: {}]
  %s11 = inlined_call_operand.hbm [shape: bf16[2,16], index: 11, kind: input, shape index: {}]
  %s12 = inlined_call_operand.hbm [shape: f32[2,128,256], index: 12, kind: input, shape index: {}]
  %s13 = inlined_call_operand.hbm [shape: f32[2,1,256], index: 13, kind: input, shape index: {}]
  %s14 = inlined_call_operand.hbm [shape: f32[2,256,128], index: 14, kind: input, shape index: {}]
  %s15 = inlined_call_operand.hbm [shape: f32[2,1,128], index: 15, kind: input, shape index: {}]
  %s16 = inlined_call_operand.hbm [shape: f32[2,128,384], index: 16, kind: input, shape index: {}]
  %s17 = inlined_call_operand.vmem [shape: f32[2,1,384], index: 17, kind: input, shape index: {}]
  %s18 = inlined_call_operand.vmem [shape: f32[2,128,128], index: 18, kind: input, shape index: {}]
  %s19 = inlined_call_operand.hbm [shape: f32[2,1,128], index: 19, kind: input, shape index: {}]
  %s20 = inlined_call_operand.hbm [shape: f32[2,1,128], index: 20, kind: input, shape index: {}]
  %s21 = inlined_call_operand.vmem [shape: f32[2,1,128], index: 21, kind: input, shape index: {}]
  %s22 = inlined_call_operand.vmem [shape: f32[1,128], index: 22, kind: input, shape index: {}]
  %s23 = inlined_call_operand.<no memory space> [shape: f32[1,1], index: 23, kind: input, shape index: {}]
  %s24 = inlined_call_operand.vmem [shape: f32[256,2], index: 24, kind: input, shape index: {}]
  %s25 = inlined_call_operand.vmem [shape: f32[1,2], index: 25, kind: input, shape index: {}]
  %s26 = inlined_call_operand.hbm [shape: f32[2,2], index: 26, kind: output, shape index: {}]
  %s27 = sld [smem:[#allocation0]]
  $region189: #{tpu_custom_call.1} parent=0
    _
  %s29 = ssub.s32 1, %s27
  %s30 = scalar_select 0, %s29, %s27
  %v31 = vstv %s23
  %32 = vst [vmem:[#allocation5] sm:$0x1] %v31
  $region1: #{tpu_custom_call.1} parent=0
    #allocation6 [shape = 'u8[4096]{0}', space=vmem, size = 0x1000, scoped, tag = 'input window, operand 3, single buffered']
    #allocation7 [shape = 's32[2]{0}', space=sflag, size = 0x8, scoped, tag = 'scoped memory for tpu_custom_call.1']
    #allocation8 [shape = 's32[2]{0}', space=sflag, size = 0x8, scoped, tag = 'scoped memory for tpu_custom_call.1']
    #allocation9 [shape = 'u8[4096]{0}', space=vmem, size = 0x1000, scoped, tag = 'input window, operand 6, single buffered']
    #allocation10 [shape = 's32[1]{0}', space=sflag, size = 0x4, scoped, tag = 'scoped memory for tpu_custom_call.1']
    #allocation11 [shape = 'u8[512]{0}', space=vmem, size = 0x400, scoped, tag = 'input window, operand 10, single buffered']
    #allocation12 [shape = 'u8[512]{0}', space=vmem, size = 0x400, scoped, tag = 'input window, operand 11, single buffered']
    #allocation13 [shape = 's32[1]{0}', space=sflag, size = 0x4, scoped, tag = 'scoped memory for tpu_custom_call.1']
    #allocation14 [shape = 'u8[262144]{0}', space=vmem, size = 0x40000, scoped, tag = 'input window, operand 12']
    #allocation15 [shape = 'u8[2048]{0}', space=vmem, size = 0x800, scoped, tag = 'input window, operand 13']
    #allocation16 [shape = 'u8[262144]{0}', space=vmem, size = 0x40000, scoped, tag = 'input window, operand 14']
    #allocation17 [shape = 'u8[1024]{0}', space=vmem, size = 0x400, scoped, tag = 'input window, operand 15']
    #allocation18 [shape = 'u8[393216]{0}', space=vmem, size = 0x60000, scoped, tag = 'input window, operand 16']
    #allocation19 [shape = 'u8[1024]{0}', space=vmem, size = 0x400, scoped, tag = 'input window, operand 19']
    #allocation20 [shape = 'u8[1024]{0}', space=vmem, size = 0x400, scoped, tag = 'input window, operand 20']
    #allocation21 [shape = 'u8[1024]{0}', space=vmem, size = 0x400, scoped, tag = 'output window, operand 0, single buffered']
    %33 = vsyncpa [#allocation7], 0
    %34 = vsyncpa [#allocation10], 0
    %35 = vsyncpa [#allocation13], 0
    %36 = vsyncpa [#allocation8], 0
    loop: start=0, step=1, limit=4
    $region2: #{tpu_custom_call.1} parent=1 // loop_pre_header
      _
    $region3: #{tpu_custom_call.1} parent=1 // loop_header
      %s38 = sphi 0, %s42
      %p39 = scmp.ge.s32.totalorder %s38, 4
      %s46 = sphi 0, %s46
      %s48 = sphi 0, %s46
      %s49 = sphi 0, %s48
      %s63 = sphi 0, %s49
      %s67 = sphi 0, %s67
      %s69 = sphi 0, %s67
      %s70 = sphi 0, %s69
      %s84 = sphi 0, %s70
      %s88 = sphi 0, %s88
      %s90 = sphi 0, %s88
      %s91 = sphi 0, %s90
      %s105 = sphi 0, %s91
      %s109 = sphi 0, %s109
      %s111 = sphi 0, %s109
      %s112 = sphi 0, %s111
      %s126 = sphi 0, %s112
      %s130 = sphi 0, %s130
      %s132 = sphi 0, %s130
      %s133 = sphi 0, %s132
      %s147 = sphi 0, %s133
      %s151 = sphi 0, %s151
      %s153 = sphi 0, %s151
      %s154 = sphi 0, %s153
      %s168 = sphi 0, %s154
      %s172 = sphi 0, %s172
      %s174 = sphi 0, %s172
      %s175 = sphi 0, %s174
      %s189 = sphi 0, %s175
      %s193 = sphi 0, %s193
      %s195 = sphi 0, %s193
      %s196 = sphi 0, %s195
      %s210 = sphi 0, %s196
      %s214 = sphi 0, %s214
      %s216 = sphi 0, %s214
      %s217 = sphi 0, %s216
      %s231 = sphi 0, %s217
      %s235 = sphi 0, %s235
      %s237 = sphi 0, %s235
      %s238 = sphi 0, %s237
      %s252 = sphi 0, %s238
      %s256 = sphi 0, %s256
      %s258 = sphi 0, %s256
      %s259 = sphi 0, %s258
      %s273 = sphi 0, %s259
      %s277 = sphi 0, %s277
      %s279 = sphi 0, %s277
      %s280 = sphi 0, %s279
      %s294 = sphi 0, %s280
      %s300 = sphi 0, %s302
      %s303 = sphi 0, %s300
      %s304 = sphi 0, %s303
      %s320 = sphi 0, %s304
      %s326 = sphi 0, %s328
      %s329 = sphi 0, %s326
      %s330 = sphi 0, %s329
      %s346 = sphi 0, %s330
      %s352 = sphi 0, %s354
      %s355 = sphi 0, %s352
      %s356 = sphi 0, %s355
      %s372 = sphi 0, %s356
      %s378 = sphi 0, %s380
      %s381 = sphi 0, %s378
      %s382 = sphi 0, %s381
      %s398 = sphi 0, %s382
      %s404 = sphi 0, %s406
      %s407 = sphi 0, %s404
      %s408 = sphi 0, %s407
      %s424 = sphi 0, %s408
      %s430 = sphi 0, %s432
      %s433 = sphi 0, %s430
      %s434 = sphi 0, %s433
      %s450 = sphi 0, %s434
      %s456 = sphi 0, %s458
      %s459 = sphi 0, %s456
      %s460 = sphi 0, %s459
      %s476 = sphi 0, %s460
      %s482 = sphi 0, %s484
      %s485 = sphi 0, %s482
      %s486 = sphi 0, %s485
      %s502 = sphi 0, %s486
      %s508 = sphi 0, %s510
      %s511 = sphi 0, %s508
      %s512 = sphi 0, %s511
      %s528 = sphi 0, %s512
      %s534 = sphi 0, %s536
      %s537 = sphi 0, %s534
      %s538 = sphi 0, %s537
      %s554 = sphi 0, %s538
      %s558 = sphi 0, %s558
      %s560 = sphi 0, %s558
      %s561 = sphi 0, %s560
      %s575 = sphi 0, %s561
      %s579 = sphi 0, %s579
      %s581 = sphi 0, %s579
      %s582 = sphi 0, %s581
      %s596 = sphi 0, %s582
      %s600 = sphi 0, %s600
      %s602 = sphi 0, %s600
      %s603 = sphi 0, %s602
      %s617 = sphi 0, %s603
      %s621 = sphi 0, %s621
      %s623 = sphi 0, %s621
      %s624 = sphi 0, %s623
      %s638 = sphi 0, %s624
      %s642 = sphi 0, %s642
      %s644 = sphi 0, %s642
      %s645 = sphi 0, %s644
      %s659 = sphi 0, %s645
    $region4: #{tpu_custom_call.1} parent=1 // loop_header_branch
      %41 = sbr.rel (%p39) target = $region8
    $region5: #{tpu_custom_call.1} parent=1 // loop_body
      %s43 = ssub.s32 %s38, 1
      %s44 = ssub.s32 %s38, 2
      %s45 = sadd.s32 %s38, 1
      %s47 = sadd.s32 %s46, 1
      %p50 = scmp.eq.s32.totalorder %s38, 1
      %p51 = scmp.ne.s32.totalorder %s46, %s48
      %p52 = scmp.eq.s32.totalorder %s38, 0
      %p53 = por %p51, %p52
      %p54 = scmp.ne.s32.totalorder %s46, %s48
      %p55 = scmp.eq.s32.totalorder %s43, 1
      %p56 = por %p54, %p55
      %p57 = scmp.ne.s32.totalorder %s48, %s49
      %p58 = scmp.eq.s32.totalorder %s43, 0
      %p59 = por %p57, %p58
      %p60 = scmp.ne.s32.totalorder %s48, %s49
      %p61 = scmp.eq.s32.totalorder %s44, 1
      %p62 = por %p60, %p61
      %p64 = scmp.ne.s32.totalorder %s49, %s63
      %p65 = scmp.eq.s32.totalorder %s44, 0
      %p66 = por %p64, %p65
      %s68 = sadd.s32 %s67, 1
      %p71 = scmp.eq.s32.totalorder %s38, 1
      %p72 = scmp.ne.s32.totalorder %s67, %s69
      %p73 = scmp.eq.s32.totalorder %s38, 0
      %p74 = por %p72, %p73
      %p75 = scmp.ne.s32.totalorder %s67, %s69
      %p76 = scmp.eq.s32.totalorder %s43, 1
      %p77 = por %p75, %p76
      %p78 = scmp.ne.s32.totalorder %s69, %s70
      %p79 = scmp.eq.s32.totalorder %s43, 0
      %p80 = por %p78, %p79
      %p81 = scmp.ne.s32.totalorder %s69, %s70
      %p82 = scmp.eq.s32.totalorder %s44, 1
      %p83 = por %p81, %p82
      %p85 = scmp.ne.s32.totalorder %s70, %s84
      %p86 = scmp.eq.s32.totalorder %s44, 0
      %p87 = por %p85, %p86
      %s89 = sadd.s32 %s88, 1
      %p92 = scmp.eq.s32.totalorder %s38, 1
      %p93 = scmp.ne.s32.totalorder %s88, %s90
      %p94 = scmp.eq.s32.totalorder %s38, 0
      %p95 = por %p93, %p94
      %p96 = scmp.ne.s32.totalorder %s88, %s90
      %p97 = scmp.eq.s32.totalorder %s43, 1
      %p98 = por %p96, %p97
      %p99 = scmp.ne.s32.totalorder %s90, %s91
      %p100 = scmp.eq.s32.totalorder %s43, 0
      %p101 = por %p99, %p100
      %p102 = scmp.ne.s32.totalorder %s90, %s91
      %p103 = scmp.eq.s32.totalorder %s44, 1
      %p104 = por %p102, %p103
      %p106 = scmp.ne.s32.totalorder %s91, %s105
      %p107 = scmp.eq.s32.totalorder %s44, 0
      %p108 = por %p106, %p107
      %s110 = sadd.s32 %s109, 1
      %p113 = scmp.eq.s32.totalorder %s38, 1
      %p114 = scmp.ne.s32.totalorder %s109, %s111
      %p115 = scmp.eq.s32.totalorder %s38, 0
      %p116 = por %p114, %p115
      %p117 = scmp.ne.s32.totalorder %s109, %s111
      %p118 = scmp.eq.s32.totalorder %s43, 1
      %p119 = por %p117, %p118
      %p120 = scmp.ne.s32.totalorder %s111, %s112
      %p121 = scmp.eq.s32.totalorder %s43, 0
      %p122 = por %p120, %p121
      %p123 = scmp.ne.s32.totalorder %s111, %s112
      %p124 = scmp.eq.s32.totalorder %s44, 1
      %p125 = por %p123, %p124
      %p127 = scmp.ne.s32.totalorder %s112, %s126
      %p128 = scmp.eq.s32.totalorder %s44, 0
      %p129 = por %p127, %p128
      %s131 = sadd.s32 %s130, 1
      %p134 = scmp.eq.s32.totalorder %s38, 1
      %p135 = scmp.ne.s32.totalorder %s130, %s132
      %p136 = scmp.eq.s32.totalorder %s38, 0
      %p137 = por %p135, %p136
      %p138 = scmp.ne.s32.totalorder %s130, %s132
      %p139 = scmp.eq.s32.totalorder %s43, 1
      %p140 = por %p138, %p139
      %p141 = scmp.ne.s32.totalorder %s132, %s133
      %p142 = scmp.eq.s32.totalorder %s43, 0
      %p143 = por %p141, %p142
      %p144 = scmp.ne.s32.totalorder %s132, %s133
      %p145 = scmp.eq.s32.totalorder %s44, 1
      %p146 = por %p144, %p145
      %p148 = scmp.ne.s32.totalorder %s133, %s147
      %p149 = scmp.eq.s32.totalorder %s44, 0
      %p150 = por %p148, %p149
      %s152 = sadd.s32 %s151, 1
      %p155 = scmp.eq.s32.totalorder %s38, 1
      %p156 = scmp.ne.s32.totalorder %s151, %s153
      %p157 = scmp.eq.s32.totalorder %s38, 0
      %p158 = por %p156, %p157
      %p159 = scmp.ne.s32.totalorder %s151, %s153
      %p160 = scmp.eq.s32.totalorder %s43, 1
      %p161 = por %p159, %p160
      %p162 = scmp.ne.s32.totalorder %s153, %s154
      %p163 = scmp.eq.s32.totalorder %s43, 0
      %p164 = por %p162, %p163
      %p165 = scmp.ne.s32.totalorder %s153, %s154
      %p166 = scmp.eq.s32.totalorder %s44, 1
      %p167 = por %p165, %p166
      %p169 = scmp.ne.s32.totalorder %s154, %s168
      %p170 = scmp.eq.s32.totalorder %s44, 0
      %p171 = por %p169, %p170
      %s173 = sadd.s32 %s172, 1
      %p176 = scmp.eq.s32.totalorder %s38, 1
      %p177 = scmp.ne.s32.totalorder %s172, %s174
      %p178 = scmp.eq.s32.totalorder %s38, 0
      %p179 = por %p177, %p178
      %p180 = scmp.ne.s32.totalorder %s172, %s174
      %p181 = scmp.eq.s32.totalorder %s43, 1
      %p182 = por %p180, %p181
      %p183 = scmp.ne.s32.totalorder %s174, %s175
      %p184 = scmp.eq.s32.totalorder %s43, 0
      %p185 = por %p183, %p184
      %p186 = scmp.ne.s32.totalorder %s174, %s175
      %p187 = scmp.eq.s32.totalorder %s44, 1
      %p188 = por %p186, %p187
      %p190 = scmp.ne.s32.totalorder %s175, %s189
      %p191 = scmp.eq.s32.totalorder %s44, 0
      %p192 = por %p190, %p191
      %s194 = sadd.s32 %s193, 1
      %p197 = scmp.eq.s32.totalorder %s38, 1
      %p198 = scmp.ne.s32.totalorder %s193, %s195
      %p199 = scmp.eq.s32.totalorder %s38, 0
      %p200 = por %p198, %p199
      %p201 = scmp.ne.s32.totalorder %s193, %s195
      %p202 = scmp.eq.s32.totalorder %s43, 1
      %p203 = por %p201, %p202
      %p204 = scmp.ne.s32.totalorder %s195, %s196
      %p205 = scmp.eq.s32.totalorder %s43, 0
      %p206 = por %p204, %p205
      %p207 = scmp.ne.s32.totalorder %s195, %s196
      %p208 = scmp.eq.s32.totalorder %s44, 1
      %p209 = por %p207, %p208
      %p211 = scmp.ne.s32.totalorder %s196, %s210
      %p212 = scmp.eq.s32.totalorder %s44, 0
      %p213 = por %p211, %p212
      %s215 = sadd.s32 %s214, 1
      %p218 = scmp.eq.s32.totalorder %s38, 1
      %p219 = scmp.ne.s32.totalorder %s214, %s216
      %p220 = scmp.eq.s32.totalorder %s38, 0
      %p221 = por %p219, %p220
      %p222 = scmp.ne.s32.totalorder %s214, %s216
      %p223 = scmp.eq.s32.totalorder %s43, 1
      %p224 = por %p222, %p223
      %p225 = scmp.ne.s32.totalorder %s216, %s217
      %p226 = scmp.eq.s32.totalorder %s43, 0
      %p227 = por %p225, %p226
      %p228 = scmp.ne.s32.totalorder %s216, %s217
      %p229 = scmp.eq.s32.totalorder %s44, 1
      %p230 = por %p228, %p229
      %p232 = scmp.ne.s32.totalorder %s217, %s231
      %p233 = scmp.eq.s32.totalorder %s44, 0
      %p234 = por %p232, %p233
      %s236 = sadd.s32 %s235, 1
      %p239 = scmp.eq.s32.totalorder %s38, 1
      %p240 = scmp.ne.s32.totalorder %s235, %s237
      %p241 = scmp.eq.s32.totalorder %s38, 0
      %p242 = por %p240, %p241
      %p243 = scmp.ne.s32.totalorder %s235, %s237
      %p244 = scmp.eq.s32.totalorder %s43, 1
      %p245 = por %p243, %p244
      %p246 = scmp.ne.s32.totalorder %s237, %s238
      %p247 = scmp.eq.s32.totalorder %s43, 0
      %p248 = por %p246, %p247
      %p249 = scmp.ne.s32.totalorder %s237, %s238
      %p250 = scmp.eq.s32.totalorder %s44, 1
      %p251 = por %p249, %p250
      %p253 = scmp.ne.s32.totalorder %s238, %s252
      %p254 = scmp.eq.s32.totalorder %s44, 0
      %p255 = por %p253, %p254
      %s257 = sadd.s32 %s256, 1
      %p260 = scmp.eq.s32.totalorder %s38, 1
      %p261 = scmp.ne.s32.totalorder %s256, %s258
      %p262 = scmp.eq.s32.totalorder %s38, 0
      %p263 = por %p261, %p262
      %p264 = scmp.ne.s32.totalorder %s256, %s258
      %p265 = scmp.eq.s32.totalorder %s43, 1
      %p266 = por %p264, %p265
      %p267 = scmp.ne.s32.totalorder %s258, %s259
      %p268 = scmp.eq.s32.totalorder %s43, 0
      %p269 = por %p267, %p268
      %p270 = scmp.ne.s32.totalorder %s258, %s259
      %p271 = scmp.eq.s32.totalorder %s44, 1
      %p272 = por %p270, %p271
      %p274 = scmp.ne.s32.totalorder %s259, %s273
      %p275 = scmp.eq.s32.totalorder %s44, 0
      %p276 = por %p274, %p275
      %s278 = sadd.s32 %s277, 1
      %p281 = scmp.eq.s32.totalorder %s38, 1
      %p282 = scmp.ne.s32.totalorder %s277, %s279
      %p283 = scmp.eq.s32.totalorder %s38, 0
      %p284 = por %p282, %p283
      %p285 = scmp.ne.s32.totalorder %s277, %s279
      %p286 = scmp.eq.s32.totalorder %s43, 1
      %p287 = por %p285, %p286
      %p288 = scmp.ne.s32.totalorder %s279, %s280
      %p289 = scmp.eq.s32.totalorder %s43, 0
      %p290 = por %p288, %p289
      %p291 = scmp.ne.s32.totalorder %s279, %s280
      %p292 = scmp.eq.s32.totalorder %s44, 1
      %p293 = por %p291, %p292
      %p295 = scmp.ne.s32.totalorder %s280, %s294
      %p296 = scmp.eq.s32.totalorder %s44, 0
      %p297 = por %p295, %p296
      %s298 = ssub.s32 %s38, %s45
      %p299 = scmp.eq.s32.totalorder %s298, 0
      %s301 = sadd.s32 %s300, 1
      %s302 = scalar_select %p299, %s300, %s301
      %p305 = pneg %p299
      %p306 = scmp.eq.s32.totalorder %s38, 1
      %p307 = por %p305, %p306
      %p308 = scmp.ne.s32.totalorder %s300, %s303
      %p309 = scmp.eq.s32.totalorder %s38, 0
      %p310 = por %p308, %p309
      %p311 = scmp.ne.s32.totalorder %s300, %s303
      %p312 = scmp.eq.s32.totalorder %s43, 1
      %p313 = por %p311, %p312
      %p314 = scmp.ne.s32.totalorder %s303, %s304
      %p315 = scmp.eq.s32.totalorder %s43, 0
      %p316 = por %p314, %p315
      %p317 = scmp.ne.s32.totalorder %s303, %s304
      %p318 = scmp.eq.s32.totalorder %s44, 1
      %p319 = por %p317, %p318
      %p321 = scmp.ne.s32.totalorder %s304, %s320
      %p322 = scmp.eq.s32.totalorder %s44, 0
      %p323 = por %p321, %p322
      %s324 = ssub.s32 %s38, %s45
      %p325 = scmp.eq.s32.totalorder %s324, 0
      %s327 = sadd.s32 %s326, 1
      %s328 = scalar_select %p325, %s326, %s327
      %p331 = pneg %p325
      %p332 = scmp.eq.s32.totalorder %s38, 1
      %p333 = por %p331, %p332
      %p334 = scmp.ne.s32.totalorder %s326, %s329
      %p335 = scmp.eq.s32.totalorder %s38, 0
      %p336 = por %p334, %p335
      %p337 = scmp.ne.s32.totalorder %s326, %s329
      %p338 = scmp.eq.s32.totalorder %s43, 1
      %p339 = por %p337, %p338
      %p340 = scmp.ne.s32.totalorder %s329, %s330
      %p341 = scmp.eq.s32.totalorder %s43, 0
      %p342 = por %p340, %p341
      %p343 = scmp.ne.s32.totalorder %s329, %s330
      %p344 = scmp.eq.s32.totalorder %s44, 1
      %p345 = por %p343, %p344
      %p347 = scmp.ne.s32.totalorder %s330, %s346
      %p348 = scmp.eq.s32.totalorder %s44, 0
      %p349 = por %p347, %p348
      %s350 = ssub.s32 %s38, %s45
      %p351 = scmp.eq.s32.totalorder %s350, 0
      %s353 = sadd.s32 %s352, 1
      %s354 = scalar_select %p351, %s352, %s353
      %p357 = pneg %p351
      %p358 = scmp.eq.s32.totalorder %s38, 1
      %p359 = por %p357, %p358
      %p360 = scmp.ne.s32.totalorder %s352, %s355
      %p361 = scmp.eq.s32.totalorder %s38, 0
      %p362 = por %p360, %p361
      %p363 = scmp.ne.s32.totalorder %s352, %s355
      %p364 = scmp.eq.s32.totalorder %s43, 1
      %p365 = por %p363, %p364
      %p366 = scmp.ne.s32.totalorder %s355, %s356
      %p367 = scmp.eq.s32.totalorder %s43, 0
      %p368 = por %p366, %p367
      %p369 = scmp.ne.s32.totalorder %s355, %s356
      %p370 = scmp.eq.s32.totalorder %s44, 1
      %p371 = por %p369, %p370
      %p373 = scmp.ne.s32.totalorder %s356, %s372
      %p374 = scmp.eq.s32.totalorder %s44, 0
      %p375 = por %p373, %p374
      %s376 = ssub.s32 %s38, %s45
      %p377 = scmp.eq.s32.totalorder %s376, 0
      %s379 = sadd.s32 %s378, 1
      %s380 = scalar_select %p377, %s378, %s379
      %p383 = pneg %p377
      %p384 = scmp.eq.s32.totalorder %s38, 1
      %p385 = por %p383, %p384
      %p386 = scmp.ne.s32.totalorder %s378, %s381
      %p387 = scmp.eq.s32.totalorder %s38, 0
      %p388 = por %p386, %p387
      %p389 = scmp.ne.s32.totalorder %s378, %s381
      %p390 = scmp.eq.s32.totalorder %s43, 1
      %p391 = por %p389, %p390
      %p392 = scmp.ne.s32.totalorder %s381, %s382
      %p393 = scmp.eq.s32.totalorder %s43, 0
      %p394 = por %p392, %p393
      %p395 = scmp.ne.s32.totalorder %s381, %s382
      %p396 = scmp.eq.s32.totalorder %s44, 1
      %p397 = por %p395, %p396
      %p399 = scmp.ne.s32.totalorder %s382, %s398
      %p400 = scmp.eq.s32.totalorder %s44, 0
      %p401 = por %p399, %p400
      %s402 = ssub.s32 %s38, %s45
      %p403 = scmp.eq.s32.totalorder %s402, 0
      %s405 = sadd.s32 %s404, 1
      %s406 = scalar_select %p403, %s404, %s405
      %p409 = pneg %p403
      %p410 = scmp.eq.s32.totalorder %s38, 1
      %p411 = por %p409, %p410
      %p412 = scmp.ne.s32.totalorder %s404, %s407
      %p413 = scmp.eq.s32.totalorder %s38, 0
      %p414 = por %p412, %p413
      %p415 = scmp.ne.s32.totalorder %s404, %s407
      %p416 = scmp.eq.s32.totalorder %s43, 1
      %p417 = por %p415, %p416
      %p418 = scmp.ne.s32.totalorder %s407, %s408
      %p419 = scmp.eq.s32.totalorder %s43, 0
      %p420 = por %p418, %p419
      %p421 = scmp.ne.s32.totalorder %s407, %s408
      %p422 = scmp.eq.s32.totalorder %s44, 1
      %p423 = por %p421, %p422
      %p425 = scmp.ne.s32.totalorder %s408, %s424
      %p426 = scmp.eq.s32.totalorder %s44, 0
      %p427 = por %p425, %p426
      %s428 = ssub.s32 %s38, %s45
      %p429 = scmp.eq.s32.totalorder %s428, 0
      %s431 = sadd.s32 %s430, 1
      %s432 = scalar_select %p429, %s430, %s431
      %p435 = pneg %p429
      %p436 = scmp.eq.s32.totalorder %s38, 1
      %p437 = por %p435, %p436
      %p438 = scmp.ne.s32.totalorder %s430, %s433
      %p439 = scmp.eq.s32.totalorder %s38, 0
      %p440 = por %p438, %p439
      %p441 = scmp.ne.s32.totalorder %s430, %s433
      %p442 = scmp.eq.s32.totalorder %s43, 1
      %p443 = por %p441, %p442
      %p444 = scmp.ne.s32.totalorder %s433, %s434
      %p445 = scmp.eq.s32.totalorder %s43, 0
      %p446 = por %p444, %p445
      %p447 = scmp.ne.s32.totalorder %s433, %s434
      %p448 = scmp.eq.s32.totalorder %s44, 1
      %p449 = por %p447, %p448
      %p451 = scmp.ne.s32.totalorder %s434, %s450
      %p452 = scmp.eq.s32.totalorder %s44, 0
      %p453 = por %p451, %p452
      %s454 = ssub.s32 %s38, %s45
      %p455 = scmp.eq.s32.totalorder %s454, 0
      %s457 = sadd.s32 %s456, 1
      %s458 = scalar_select %p455, %s456, %s457
      %p461 = pneg %p455
      %p462 = scmp.eq.s32.totalorder %s38, 1
      %p463 = por %p461, %p462
      %p464 = scmp.ne.s32.totalorder %s456, %s459
      %p465 = scmp.eq.s32.totalorder %s38, 0
      %p466 = por %p464, %p465
      %p467 = scmp.ne.s32.totalorder %s456, %s459
      %p468 = scmp.eq.s32.totalorder %s43, 1
      %p469 = por %p467, %p468
      %p470 = scmp.ne.s32.totalorder %s459, %s460
      %p471 = scmp.eq.s32.totalorder %s43, 0
      %p472 = por %p470, %p471
      %p473 = scmp.ne.s32.totalorder %s459, %s460
      %p474 = scmp.eq.s32.totalorder %s44, 1
      %p475 = por %p473, %p474
      %p477 = scmp.ne.s32.totalorder %s460, %s476
      %p478 = scmp.eq.s32.totalorder %s44, 0
      %p479 = por %p477, %p478
      %s480 = ssub.s32 %s38, %s45
      %p481 = scmp.eq.s32.totalorder %s480, 0
      %s483 = sadd.s32 %s482, 1
      %s484 = scalar_select %p481, %s482, %s483
      %p487 = pneg %p481
      %p488 = scmp.eq.s32.totalorder %s38, 1
      %p489 = por %p487, %p488
      %p490 = scmp.ne.s32.totalorder %s482, %s485
      %p491 = scmp.eq.s32.totalorder %s38, 0
      %p492 = por %p490, %p491
      %p493 = scmp.ne.s32.totalorder %s482, %s485
      %p494 = scmp.eq.s32.totalorder %s43, 1
      %p495 = por %p493, %p494
      %p496 = scmp.ne.s32.totalorder %s485, %s486
      %p497 = scmp.eq.s32.totalorder %s43, 0
      %p498 = por %p496, %p497
      %p499 = scmp.ne.s32.totalorder %s485, %s486
      %p500 = scmp.eq.s32.totalorder %s44, 1
      %p501 = por %p499, %p500
      %p503 = scmp.ne.s32.totalorder %s486, %s502
      %p504 = scmp.eq.s32.totalorder %s44, 0
      %p505 = por %p503, %p504
      %s506 = ssub.s32 %s38, %s45
      %p507 = scmp.eq.s32.totalorder %s506, 0
      %s509 = sadd.s32 %s508, 1
      %s510 = scalar_select %p507, %s508, %s509
      %p513 = pneg %p507
      %p514 = scmp.eq.s32.totalorder %s38, 1
      %p515 = por %p513, %p514
      %p516 = scmp.ne.s32.totalorder %s508, %s511
      %p517 = scmp.eq.s32.totalorder %s38, 0
      %p518 = por %p516, %p517
      %p519 = scmp.ne.s32.totalorder %s508, %s511
      %p520 = scmp.eq.s32.totalorder %s43, 1
      %p521 = por %p519, %p520
      %p522 = scmp.ne.s32.totalorder %s511, %s512
      %p523 = scmp.eq.s32.totalorder %s43, 0
      %p524 = por %p522, %p523
      %p525 = scmp.ne.s32.totalorder %s511, %s512
      %p526 = scmp.eq.s32.totalorder %s44, 1
      %p527 = por %p525, %p526
      %p529 = scmp.ne.s32.totalorder %s512, %s528
      %p530 = scmp.eq.s32.totalorder %s44, 0
      %p531 = por %p529, %p530
      %s532 = ssub.s32 %s38, %s45
      %p533 = scmp.eq.s32.totalorder %s532, 0
      %s535 = sadd.s32 %s534, 1
      %s536 = scalar_select %p533, %s534, %s535
      %p539 = pneg %p533
      %p540 = scmp.eq.s32.totalorder %s38, 1
      %p541 = por %p539, %p540
      %p542 = scmp.ne.s32.totalorder %s534, %s537
      %p543 = scmp.eq.s32.totalorder %s38, 0
      %p544 = por %p542, %p543
      %p545 = scmp.ne.s32.totalorder %s534, %s537
      %p546 = scmp.eq.s32.totalorder %s43, 1
      %p547 = por %p545, %p546
      %p548 = scmp.ne.s32.totalorder %s537, %s538
      %p549 = scmp.eq.s32.totalorder %s43, 0
      %p550 = por %p548, %p549
      %p551 = scmp.ne.s32.totalorder %s537, %s538
      %p552 = scmp.eq.s32.totalorder %s44, 1
      %p553 = por %p551, %p552
      %p555 = scmp.ne.s32.totalorder %s538, %s554
      %p556 = scmp.eq.s32.totalorder %s44, 0
      %p557 = por %p555, %p556
      %s559 = sadd.s32 %s558, 1
      %p562 = scmp.eq.s32.totalorder %s38, 1
      %p563 = scmp.ne.s32.totalorder %s558, %s560
      %p564 = scmp.eq.s32.totalorder %s38, 0
      %p565 = por %p563, %p564
      %p566 = scmp.ne.s32.totalorder %s558, %s560
      %p567 = scmp.eq.s32.totalorder %s43, 1
      %p568 = por %p566, %p567
      %p569 = scmp.ne.s32.totalorder %s560, %s561
      %p570 = scmp.eq.s32.totalorder %s43, 0
      %p571 = por %p569, %p570
      %p572 = scmp.ne.s32.totalorder %s560, %s561
      %p573 = scmp.eq.s32.totalorder %s44, 1
      %p574 = por %p572, %p573
      %p576 = scmp.ne.s32.totalorder %s561, %s575
      %p577 = scmp.eq.s32.totalorder %s44, 0
      %p578 = por %p576, %p577
      %s580 = sadd.s32 %s579, 1
      %p583 = scmp.eq.s32.totalorder %s38, 1
      %p584 = scmp.ne.s32.totalorder %s579, %s581
      %p585 = scmp.eq.s32.totalorder %s38, 0
      %p586 = por %p584, %p585
      %p587 = scmp.ne.s32.totalorder %s579, %s581
      %p588 = scmp.eq.s32.totalorder %s43, 1
      %p589 = por %p587, %p588
      %p590 = scmp.ne.s32.totalorder %s581, %s582
      %p591 = scmp.eq.s32.totalorder %s43, 0
      %p592 = por %p590, %p591
      %p593 = scmp.ne.s32.totalorder %s581, %s582
      %p594 = scmp.eq.s32.totalorder %s44, 1
      %p595 = por %p593, %p594
      %p597 = scmp.ne.s32.totalorder %s582, %s596
      %p598 = scmp.eq.s32.totalorder %s44, 0
      %p599 = por %p597, %p598
      %s601 = sadd.s32 %s600, 1
      %p604 = scmp.eq.s32.totalorder %s38, 1
      %p605 = scmp.ne.s32.totalorder %s600, %s602
      %p606 = scmp.eq.s32.totalorder %s38, 0
      %p607 = por %p605, %p606
      %p608 = scmp.ne.s32.totalorder %s600, %s602
      %p609 = scmp.eq.s32.totalorder %s43, 1
      %p610 = por %p608, %p609
      %p611 = scmp.ne.s32.totalorder %s602, %s603
      %p612 = scmp.eq.s32.totalorder %s43, 0
      %p613 = por %p611, %p612
      %p614 = scmp.ne.s32.totalorder %s602, %s603
      %p615 = scmp.eq.s32.totalorder %s44, 1
      %p616 = por %p614, %p615
      %p618 = scmp.ne.s32.totalorder %s603, %s617
      %p619 = scmp.eq.s32.totalorder %s44, 0
      %p620 = por %p618, %p619
      %s622 = sadd.s32 %s621, 1
      %p625 = scmp.eq.s32.totalorder %s38, 1
      %p626 = scmp.ne.s32.totalorder %s621, %s623
      %p627 = scmp.eq.s32.totalorder %s38, 0
      %p628 = por %p626, %p627
      %p629 = scmp.ne.s32.totalorder %s621, %s623
      %p630 = scmp.eq.s32.totalorder %s43, 1
      %p631 = por %p629, %p630
      %p632 = scmp.ne.s32.totalorder %s623, %s624
      %p633 = scmp.eq.s32.totalorder %s43, 0
      %p634 = por %p632, %p633
      %p635 = scmp.ne.s32.totalorder %s623, %s624
      %p636 = scmp.eq.s32.totalorder %s44, 1
      %p637 = por %p635, %p636
      %p639 = scmp.ne.s32.totalorder %s624, %s638
      %p640 = scmp.eq.s32.totalorder %s44, 0
      %p641 = por %p639, %p640
      %s643 = sadd.s32 %s642, 1
      %p646 = scmp.eq.s32.totalorder %s38, 1
      %p647 = scmp.ne.s32.totalorder %s642, %s644
      %p648 = scmp.eq.s32.totalorder %s38, 0
      %p649 = por %p647, %p648
      %p650 = scmp.ne.s32.totalorder %s642, %s644
      %p651 = scmp.eq.s32.totalorder %s43, 1
      %p652 = por %p650, %p651
      %p653 = scmp.ne.s32.totalorder %s644, %s645
      %p654 = scmp.eq.s32.totalorder %s43, 0
      %p655 = por %p653, %p654
      %p656 = scmp.ne.s32.totalorder %s644, %s645
      %p657 = scmp.eq.s32.totalorder %s44, 1
      %p658 = por %p656, %p657
      %p660 = scmp.ne.s32.totalorder %s645, %s659
      %p661 = scmp.eq.s32.totalorder %s44, 0
      %p662 = por %p660, %p661
      %p663 = scmp.le.s32.totalorder 1, %s38
      %p664 = scmp.lt.s32.totalorder %s38, 3
      %p665 = pnand %p663, %p664
      %p666 = pneg %p665
      // Predicated region
      $region9: #{tpu_custom_call.1} parent=5 // pred_check
        _
      $region10: #{tpu_custom_call.1} parent=5 // pred_check_branch
        %668 = sbr.rel (%p665) target = $region12
      $region11: #{tpu_custom_call.1} parent=5 // pred_region
        %s669 = ssub.s32 %s38, 1
        // Predicated region
        $region13: #{tpu_custom_call.1} parent=11 // pred_check
          %p670 = pneg %p59
        $region14: #{tpu_custom_call.1} parent=11 // pred_check_branch
          %672 = sbr.rel (%p670) target = $region16
        $region15: #{tpu_custom_call.1} parent=11 // pred_region
          _
        $region16: #{tpu_custom_call.1} parent=11 // pred_fallthru
          _
        // Predicated region
        $region17: #{tpu_custom_call.1} parent=11 // pred_check
          %p673 = pneg %p80
        $region18: #{tpu_custom_call.1} parent=11 // pred_check_branch
          %675 = sbr.rel (%p673) target = $region20
        $region19: #{tpu_custom_call.1} parent=11 // pred_region
          _
        $region20: #{tpu_custom_call.1} parent=11 // pred_fallthru
          _
        // Predicated region
        $region21: #{tpu_custom_call.1} parent=11 // pred_check
          %p676 = pneg %p101
        $region22: #{tpu_custom_call.1} parent=11 // pred_check_branch
          %678 = sbr.rel (%p676) target = $region24
        $region23: #{tpu_custom_call.1} parent=11 // pred_region
          _
        $region24: #{tpu_custom_call.1} parent=11 // pred_fallthru
          _
        // Predicated region
        $region25: #{tpu_custom_call.1} parent=11 // pred_check
          %p679 = pneg %p122
        $region26: #{tpu_custom_call.1} parent=11 // pred_check_branch
          %681 = sbr.rel (%p679) target = $region28
        $region27: #{tpu_custom_call.1} parent=11 // pred_region
          %s683 = ssub.s32 128, 128
          %684 = vsyncadd [#allocation7], %s683
          %s685 = sshll.u32 [#allocation6], 4
          %s686 = int_to_ptr.vmem [resolvable:$true] %s685
          %691 = dma.hbm_to_vmem [thread:$0]  %s3, 128, %s686, [#allocation7], 64, 64, 4
        $region28: #{tpu_custom_call.1} parent=11 // pred_fallthru
          _
        // Predicated region
        $region29: #{tpu_custom_call.1} parent=11 // pred_check
          %p692 = pneg %p143
        $region30: #{tpu_custom_call.1} parent=11 // pred_check_branch
          %694 = sbr.rel (%p692) target = $region32
        $region31: #{tpu_custom_call.1} parent=11 // pred_region
          _
        $region32: #{tpu_custom_call.1} parent=11 // pred_fallthru
          _
        // Predicated region
        $region33: #{tpu_custom_call.1} parent=11 // pred_check
          %p695 = pneg %p164
        $region34: #{tpu_custom_call.1} parent=11 // pred_check_branch
          %697 = sbr.rel (%p695) target = $region36
        $region35: #{tpu_custom_call.1} parent=11 // pred_region
          _
        $region36: #{tpu_custom_call.1} parent=11 // pred_fallthru
          _
        // Predicated region
        $region37: #{tpu_custom_call.1} parent=11 // pred_check
          %p698 = pneg %p185
        $region38: #{tpu_custom_call.1} parent=11 // pred_check_branch
          %700 = sbr.rel (%p698) target = $region40
        $region39: #{tpu_custom_call.1} parent=11 // pred_region
          %s702 = ssub.s32 128, 128
          %703 = vsyncadd [#allocation10], %s702
          %s704 = sshll.u32 [#allocation9], 4
          %s705 = int_to_ptr.vmem [resolvable:$true] %s704
          %710 = dma.hbm_to_vmem [thread:$0]  %s6, 128, %s705, [#allocation10], 64, 64, 4
        $region40: #{tpu_custom_call.1} parent=11 // pred_fallthru
          _
        // Predicated region
        $region41: #{tpu_custom_call.1} parent=11 // pred_check
          %p711 = pneg %p206
        $region42: #{tpu_custom_call.1} parent=11 // pred_check_branch
          %713 = sbr.rel (%p711) target = $region44
        $region43: #{tpu_custom_call.1} parent=11 // pred_region
          _
        $region44: #{tpu_custom_call.1} parent=11 // pred_fallthru
          _
        // Predicated region
        $region45: #{tpu_custom_call.1} parent=11 // pred_check
          %p714 = pneg %p227
        $region46: #{tpu_custom_call.1} parent=11 // pred_check_branch
          %716 = sbr.rel (%p714) target = $region48
        $region47: #{tpu_custom_call.1} parent=11 // pred_region
          _
        $region48: #{tpu_custom_call.1} parent=11 // pred_fallthru
          _
        // Predicated region
        $region49: #{tpu_custom_call.1} parent=11 // pred_check
          %p717 = pneg %p248
        $region50: #{tpu_custom_call.1} parent=11 // pred_check_branch
          %719 = sbr.rel (%p717) target = $region52
        $region51: #{tpu_custom_call.1} parent=11 // pred_region
          _
        $region52: #{tpu_custom_call.1} parent=11 // pred_fallthru
          _
        // Predicated region
        $region53: #{tpu_custom_call.1} parent=11 // pred_check
          %p720 = pneg %p269
        $region54: #{tpu_custom_call.1} parent=11 // pred_check_branch
          %722 = sbr.rel (%p720) target = $region56
        $region55: #{tpu_custom_call.1} parent=11 // pred_region
          %s724 = ssub.s32 16, 16
          %725 = vsyncadd [#allocation10], %s724
          %s727 = sshll.u32 [#allocation11], 4
          %s728 = int_to_ptr.vmem [resolvable:$true] %s727
          %730 = dma.hbm_to_vmem [thread:$0]  %s10, 16, %s728, [#allocation10]
        $region56: #{tpu_custom_call.1} parent=11 // pred_fallthru
          _
        // Predicated region
        $region57: #{tpu_custom_call.1} parent=11 // pred_check
          %p731 = pneg %p290
        $region58: #{tpu_custom_call.1} parent=11 // pred_check_branch
          %733 = sbr.rel (%p731) target = $region60
        $region59: #{tpu_custom_call.1} parent=11 // pred_region
          %s735 = ssub.s32 16, 16
          %736 = vsyncadd [#allocation13], %s735
          %s738 = sshll.u32 [#allocation12], 4
          %s739 = int_to_ptr.vmem [resolvable:$true] %s738
          %741 = dma.hbm_to_vmem [thread:$0]  %s11, 16, %s739, [#allocation13]
        $region60: #{tpu_custom_call.1} parent=11 // pred_fallthru
          _
        // Predicated region
        $region61: #{tpu_custom_call.1} parent=11 // pred_check
          %p742 = pneg %p571
        $region62: #{tpu_custom_call.1} parent=11 // pred_check_branch
          %744 = sbr.rel (%p742) target = $region64
        $region63: #{tpu_custom_call.1} parent=11 // pred_region
          _
        $region64: #{tpu_custom_call.1} parent=11 // pred_fallthru
          _
        // Predicated region
        $region65: #{tpu_custom_call.1} parent=11 // pred_check
          %p745 = pneg %p592
        $region66: #{tpu_custom_call.1} parent=11 // pred_check_branch
          %747 = sbr.rel (%p745) target = $region68
        $region67: #{tpu_custom_call.1} parent=11 // pred_region
          _
        $region68: #{tpu_custom_call.1} parent=11 // pred_fallthru
          _
        // Predicated region
        $region69: #{tpu_custom_call.1} parent=11 // pred_check
          %p748 = pneg %p613
        $region70: #{tpu_custom_call.1} parent=11 // pred_check_branch
          %750 = sbr.rel (%p748) target = $region72
        $region71: #{tpu_custom_call.1} parent=11 // pred_region
          _
        $region72: #{tpu_custom_call.1} parent=11 // pred_fallthru
          _
        // Predicated region
        $region73: #{tpu_custom_call.1} parent=11 // pred_check
          %p751 = pneg %p634
        $region74: #{tpu_custom_call.1} parent=11 // pred_check_branch
          %753 = sbr.rel (%p751) target = $region76
        $region75: #{tpu_custom_call.1} parent=11 // pred_region
          _
        $region76: #{tpu_custom_call.1} parent=11 // pred_fallthru
          _
      $region12: #{tpu_custom_call.1} parent=5 // pred_fallthru
        _
      %p754 = scmp.lt.s32.totalorder %s38, 2
      // Predicated region
      $region77: #{tpu_custom_call.1} parent=5 // pred_check
        %p755 = pneg %p754
      $region78: #{tpu_custom_call.1} parent=5 // pred_check_branch
        %757 = sbr.rel (%p755) target = $region80
      $region79: #{tpu_custom_call.1} parent=5 // pred_region
        // Predicated region
        $region81: #{tpu_custom_call.1} parent=79 // pred_check
          %p758 = pneg %p310
        $region82: #{tpu_custom_call.1} parent=79 // pred_check_branch
          %760 = sbr.rel (%p758) target = $region84
        $region83: #{tpu_custom_call.1} parent=79 // pred_region
          %s761 = sand.u32 %s38, 1
          %s762 = scalar_lea.sflag [#allocation7], %s761
          %s763 = sand.u32 %s300, 1
          %s764 = smul.addr %s763, 256
          %s765 = scalar_lea.vmem [#allocation14], %s764
          %s767 = ssub.s32 4096, 4096
          %768 = vsyncadd %s762, %s767
          %s769 = smul.addr %s38, 32
          %s770 = smul.addr %s769, 128
          %s771 = scalar_lea.hbm %s12, %s770
          %s772 = sshll.u32 %s765, 4
          %s773 = int_to_ptr.vmem [resolvable:$true] %s772
          %778 = dma.hbm_to_vmem [thread:$0]  %s771, 4096, %s773, %s762, 256, 256, 16
        $region84: #{tpu_custom_call.1} parent=79 // pred_fallthru
          _
        // Predicated region
        $region85: #{tpu_custom_call.1} parent=79 // pred_check
          %p779 = pneg %p336
        $region86: #{tpu_custom_call.1} parent=79 // pred_check_branch
          %781 = sbr.rel (%p779) target = $region88
        $region87: #{tpu_custom_call.1} parent=79 // pred_region
          %s782 = sand.u32 %s38, 1
          %s783 = scalar_lea.sflag [#allocation7], %s782
          %s784 = sand.u32 %s326, 1
          %s785 = smul.addr %s784, 2
          %s786 = scalar_lea.vmem [#allocation15], %s785
          %s788 = ssub.s32 32, 32
          %789 = vsyncadd %s783, %s788
          %s790 = smul.addr %s38, 2
          %s791 = smul.addr %s790, 16
          %s792 = scalar_lea.hbm %s13, %s791
          %s794 = sshll.u32 %s786, 4
          %s795 = int_to_ptr.vmem [resolvable:$true] %s794
          %797 = dma.hbm_to_vmem [thread:$0]  %s792, 32, %s795, %s783
        $region88: #{tpu_custom_call.1} parent=79 // pred_fallthru
          _
        // Predicated region
        $region89: #{tpu_custom_call.1} parent=79 // pred_check
          %p798 = pneg %p362
        $region90: #{tpu_custom_call.1} parent=79 // pred_check_branch
          %800 = sbr.rel (%p798) target = $region92
        $region91: #{tpu_custom_call.1} parent=79 // pred_region
          %s801 = sand.u32 %s38, 1
          %s802 = scalar_lea.sflag [#allocation7], %s801
          %s803 = sand.u32 %s352, 1
          %s804 = smul.addr %s803, 256
          %s805 = scalar_lea.vmem [#allocation16], %s804
          %s807 = ssub.s32 4096, 4096
          %808 = vsyncadd %s802, %s807
          %s809 = smul.addr %s38, 32
          %s810 = smul.addr %s809, 128
          %s811 = scalar_lea.hbm %s14, %s810
          %s812 = sshll.u32 %s805, 4
          %s813 = int_to_ptr.vmem [resolvable:$true] %s812
          %818 = dma.hbm_to_vmem [thread:$0]  %s811, 4096, %s813, %s802, 128, 128, 8
        $region92: #{tpu_custom_call.1} parent=79 // pred_fallthru
          _
        // Predicated region
        $region93: #{tpu_custom_call.1} parent=79 // pred_check
          %p819 = pneg %p388
        $region94: #{tpu_custom_call.1} parent=79 // pred_check_branch
          %821 = sbr.rel (%p819) target = $region96
        $region95: #{tpu_custom_call.1} parent=79 // pred_region
          %s822 = sand.u32 %s38, 1
          %s823 = scalar_lea.sflag [#allocation7], %s822
          %s824 = sand.u32 %s378, 1
          %s825 = scalar_lea.vmem [#allocation17], %s824
          %s827 = ssub.s32 16, 16
          %828 = vsyncadd %s823, %s827
          %s829 = smul.addr %s38, 16
          %s830 = scalar_lea.hbm %s15, %s829
          %s832 = sshll.u32 %s825, 4
          %s833 = int_to_ptr.vmem [resolvable:$true] %s832
          %835 = dma.hbm_to_vmem [thread:$0]  %s830, 16, %s833, %s823
        $region96: #{tpu_custom_call.1} parent=79 // pred_fallthru
          _
        // Predicated region
        $region97: #{tpu_custom_call.1} parent=79 // pred_check
          %p836 = pneg %p414
        $region98: #{tpu_custom_call.1} parent=79 // pred_check_branch
          %838 = sbr.rel (%p836) target = $region100
        $region99: #{tpu_custom_call.1} parent=79 // pred_region
          %s839 = sand.u32 %s38, 1
          %s840 = scalar_lea.sflag [#allocation7], %s839
          %s841 = sand.u32 %s404, 1
          %s842 = smul.addr %s841, 384
          %s843 = scalar_lea.vmem [#allocation18], %s842
          %s845 = ssub.s32 6144, 6144
          %846 = vsyncadd %s840, %s845
          %s847 = smul.addr %s38, 48
          %s848 = smul.addr %s847, 128
          %s849 = scalar_lea.hbm %s16, %s848
          %s850 = sshll.u32 %s843, 4
          %s851 = int_to_ptr.vmem [resolvable:$true] %s850
          %856 = dma.hbm_to_vmem [thread:$0]  %s849, 6144, %s851, %s840, 384, 384, 24
        $region100: #{tpu_custom_call.1} parent=79 // pred_fallthru
          _
        // Predicated region
        $region101: #{tpu_custom_call.1} parent=79 // pred_check
          %p857 = pneg %p440
        $region102: #{tpu_custom_call.1} parent=79 // pred_check_branch
          %859 = sbr.rel (%p857) target = $region104
        $region103: #{tpu_custom_call.1} parent=79 // pred_region
          %p860 = scmp.lt.s32.totalorder %s38, 1
          %s861 = scalar_select %p860, %s38, 1
          %s862 = smul.addr %s861, 3
          %s863 = scalar_lea.vmem %s17, %s862
        $region104: #{tpu_custom_call.1} parent=79 // pred_fallthru
          _
        // Predicated region
        $region105: #{tpu_custom_call.1} parent=79 // pred_check
          %p864 = pneg %p466
        $region106: #{tpu_custom_call.1} parent=79 // pred_check_branch
          %866 = sbr.rel (%p864) target = $region108
        $region107: #{tpu_custom_call.1} parent=79 // pred_region
          %p867 = scmp.lt.s32.totalorder %s38, 1
          %s868 = scalar_select %p867, %s38, 1
          %s869 = smul.addr %s868, 16
          %s870 = smul.addr %s869, 8
          %s871 = scalar_lea.vmem %s18, %s870
        $region108: #{tpu_custom_call.1} parent=79 // pred_fallthru
          _
        // Predicated region
        $region109: #{tpu_custom_call.1} parent=79 // pred_check
          %p872 = pneg %p492
        $region110: #{tpu_custom_call.1} parent=79 // pred_check_branch
          %874 = sbr.rel (%p872) target = $region112
        $region111: #{tpu_custom_call.1} parent=79 // pred_region
          %s875 = sand.u32 %s38, 1
          %s876 = scalar_lea.sflag [#allocation7], %s875
          %s877 = sand.u32 %s482, 1
          %s878 = scalar_lea.vmem [#allocation19], %s877
          %s880 = ssub.s32 16, 16
          %881 = vsyncadd %s876, %s880
          %s882 = smul.addr %s38, 16
          %s883 = scalar_lea.hbm %s19, %s882
          %s885 = sshll.u32 %s878, 4
          %s886 = int_to_ptr.vmem [resolvable:$true] %s885
          %888 = dma.hbm_to_vmem [thread:$0]  %s883, 16, %s886, %s876
        $region112: #{tpu_custom_call.1} parent=79 // pred_fallthru
          _
        // Predicated region
        $region113: #{tpu_custom_call.1} parent=79 // pred_check
          %p889 = pneg %p518
        $region114: #{tpu_custom_call.1} parent=79 // pred_check_branch
          %891 = sbr.rel (%p889) target = $region116
        $region115: #{tpu_custom_call.1} parent=79 // pred_region
          %s892 = sand.u32 %s38, 1
          %s893 = scalar_lea.sflag [#allocation7], %s892
          %s894 = sand.u32 %s508, 1
          %s895 = scalar_lea.vmem [#allocation20], %s894
          %s897 = ssub.s32 16, 16
          %898 = vsyncadd %s893, %s897
          %s899 = smul.addr %s38, 16
          %s900 = scalar_lea.hbm %s20, %s899
          %s902 = sshll.u32 %s895, 4
          %s903 = int_to_ptr.vmem [resolvable:$true] %s902
          %905 = dma.hbm_to_vmem [thread:$0]  %s900, 16, %s903, %s893
        $region116: #{tpu_custom_call.1} parent=79 // pred_fallthru
          _
        // Predicated region
        $region117: #{tpu_custom_call.1} parent=79 // pred_check
          %p906 = pneg %p544
        $region118: #{tpu_custom_call.1} parent=79 // pred_check_branch
          %908 = sbr.rel (%p906) target = $region120
        $region119: #{tpu_custom_call.1} parent=79 // pred_region
          %p909 = scmp.lt.s32.totalorder %s38, 1
          %s910 = scalar_select %p909, %s38, 1
          %s911 = scalar_lea.vmem %s21, %s910
        $region120: #{tpu_custom_call.1} parent=79 // pred_fallthru
          _
      $region80: #{tpu_custom_call.1} parent=5 // pred_fallthru
        _
      %p912 = scmp.le.s32.totalorder 1, %s38
      %p913 = scmp.lt.s32.totalorder %s38, 3
      %p914 = pnand %p912, %p913
      %p915 = pneg %p914
      // Predicated region
      $region121: #{tpu_custom_call.1} parent=5 // pred_check
        _
      $region122: #{tpu_custom_call.1} parent=5 // pred_check_branch
        %917 = sbr.rel (%p914) target = $region124
      $region123: #{tpu_custom_call.1} parent=5 // pred_region
        %s918 = ssub.s32 %s38, 1
        // Predicated region
        $region125: #{tpu_custom_call.1} parent=123 // pred_check
          %p919 = pneg %p122
        $region126: #{tpu_custom_call.1} parent=123 // pred_check_branch
          %921 = sbr.rel (%p919) target = $region128
        $region127: #{tpu_custom_call.1} parent=123 // pred_region
          %922 = dma.done [#allocation7], 128
        $region128: #{tpu_custom_call.1} parent=123 // pred_fallthru
          _
        // Predicated region
        $region129: #{tpu_custom_call.1} parent=123 // pred_check
          %p923 = pneg %p185
        $region130: #{tpu_custom_call.1} parent=123 // pred_check_branch
          %925 = sbr.rel (%p923) target = $region132
        $region131: #{tpu_custom_call.1} parent=123 // pred_region
          %926 = dma.done [#allocation10], 128
        $region132: #{tpu_custom_call.1} parent=123 // pred_fallthru
          _
        // Predicated region
        $region133: #{tpu_custom_call.1} parent=123 // pred_check
          %p927 = pneg %p269
        $region134: #{tpu_custom_call.1} parent=123 // pred_check_branch
          %929 = sbr.rel (%p927) target = $region136
        $region135: #{tpu_custom_call.1} parent=123 // pred_region
          %930 = dma.done [#allocation10], 16
        $region136: #{tpu_custom_call.1} parent=123 // pred_fallthru
          _
        // Predicated region
        $region137: #{tpu_custom_call.1} parent=123 // pred_check
          %p931 = pneg %p290
        $region138: #{tpu_custom_call.1} parent=123 // pred_check_branch
          %933 = sbr.rel (%p931) target = $region140
        $region139: #{tpu_custom_call.1} parent=123 // pred_region
          %934 = dma.done [#allocation13], 16
        $region140: #{tpu_custom_call.1} parent=123 // pred_fallthru
          _
        %s935 = sand.u32 %s43, 1
        %s936 = scalar_lea.sflag [#allocation7], %s935
        %s937 = sand.u32 %s303, 1
        %s938 = smul.addr %s937, 256
        %s939 = scalar_lea.vmem [#allocation14], %s938
        // Predicated region
        $region141: #{tpu_custom_call.1} parent=123 // pred_check
          %p940 = pneg %p316
        $region142: #{tpu_custom_call.1} parent=123 // pred_check_branch
          %942 = sbr.rel (%p940) target = $region144
        $region143: #{tpu_custom_call.1} parent=123 // pred_region
          %943 = dma.done %s936, 4096
        $region144: #{tpu_custom_call.1} parent=123 // pred_fallthru
          _
        %s944 = sand.u32 %s43, 1
        %s945 = scalar_lea.sflag [#allocation7], %s944
        %s946 = sand.u32 %s329, 1
        %s947 = smul.addr %s946, 2
        %s948 = scalar_lea.vmem [#allocation15], %s947
        // Predicated region
        $region145: #{tpu_custom_call.1} parent=123 // pred_check
          %p949 = pneg %p342
        $region146: #{tpu_custom_call.1} parent=123 // pred_check_branch
          %951 = sbr.rel (%p949) target = $region148
        $region147: #{tpu_custom_call.1} parent=123 // pred_region
          %952 = dma.done %s945, 32
        $region148: #{tpu_custom_call.1} parent=123 // pred_fallthru
          _
        %s953 = sand.u32 %s43, 1
        %s954 = scalar_lea.sflag [#allocation7], %s953
        %s955 = sand.u32 %s355, 1
        %s956 = smul.addr %s955, 256
        %s957 = scalar_lea.vmem [#allocation16], %s956
        // Predicated region
        $region149: #{tpu_custom_call.1} parent=123 // pred_check
          %p958 = pneg %p368
        $region150: #{tpu_custom_call.1} parent=123 // pred_check_branch
          %960 = sbr.rel (%p958) target = $region152
        $region151: #{tpu_custom_call.1} parent=123 // pred_region
          %961 = dma.done %s954, 4096
        $region152: #{tpu_custom_call.1} parent=123 // pred_fallthru
          _
        %s962 = sand.u32 %s43, 1
        %s963 = scalar_lea.sflag [#allocation7], %s962
        %s964 = sand.u32 %s381, 1
        %s965 = scalar_lea.vmem [#allocation17], %s964
        // Predicated region
        $region153: #{tpu_custom_call.1} parent=123 // pred_check
          %p966 = pneg %p394
        $region154: #{tpu_custom_call.1} parent=123 // pred_check_branch
          %968 = sbr.rel (%p966) target = $region156
        $region155: #{tpu_custom_call.1} parent=123 // pred_region
          %969 = dma.done %s963, 16
        $region156: #{tpu_custom_call.1} parent=123 // pred_fallthru
          _
        %s970 = sand.u32 %s43, 1
        %s971 = scalar_lea.sflag [#allocation7], %s970
        %s972 = sand.u32 %s407, 1
        %s973 = smul.addr %s972, 384
        %s974 = scalar_lea.vmem [#allocation18], %s973
        // Predicated region
        $region157: #{tpu_custom_call.1} parent=123 // pred_check
          %p975 = pneg %p420
        $region158: #{tpu_custom_call.1} parent=123 // pred_check_branch
          %977 = sbr.rel (%p975) target = $region160
        $region159: #{tpu_custom_call.1} parent=123 // pred_region
          %978 = dma.done %s971, 6144
        $region160: #{tpu_custom_call.1} parent=123 // pred_fallthru
          _
        %s979 = sand.u32 %s43, 1
        %s980 = scalar_lea.sflag [#allocation7], %s979
        %s981 = sand.u32 %s485, 1
        %s982 = scalar_lea.vmem [#allocation19], %s981
        // Predicated region
        $region161: #{tpu_custom_call.1} parent=123 // pred_check
          %p983 = pneg %p498
        $region162: #{tpu_custom_call.1} parent=123 // pred_check_branch
          %985 = sbr.rel (%p983) target = $region164
        $region163: #{tpu_custom_call.1} parent=123 // pred_region
          %986 = dma.done %s980, 16
        $region164: #{tpu_custom_call.1} parent=123 // pred_fallthru
          _
        %s987 = sand.u32 %s43, 1
        %s988 = scalar_lea.sflag [#allocation7], %s987
        %s989 = sand.u32 %s511, 1
        %s990 = scalar_lea.vmem [#allocation20], %s989
        // Predicated region
        $region165: #{tpu_custom_call.1} parent=123 // pred_check
          %p991 = pneg %p524
        $region166: #{tpu_custom_call.1} parent=123 // pred_check_branch
          %993 = sbr.rel (%p991) target = $region168
        $region167: #{tpu_custom_call.1} parent=123 // pred_region
          %994 = dma.done %s988, 16
        $region168: #{tpu_custom_call.1} parent=123 // pred_fallthru
          _
        %p995 = pneg %p59
        %p996 = pneg %p56
        %p997 = pneg %p80
        %p998 = pneg %p77
        %p999 = pneg %p101
        %p1000 = pneg %p98
        %p1001 = pneg %p122
        %p1002 = pneg %p119
        %p1003 = pneg %p143
        %p1004 = pneg %p140
        %p1005 = pneg %p164
        %p1006 = pneg %p161
        %p1007 = pneg %p185
        %p1008 = pneg %p182
        %p1009 = pneg %p206
        %p1010 = pneg %p203
        %p1011 = pneg %p227
        %p1012 = pneg %p224
        %p1013 = pneg %p248
        %p1014 = pneg %p245
        %p1015 = pneg %p269
        %p1016 = pneg %p266
        %p1017 = pneg %p290
        %p1018 = pneg %p287
        %s1019 = sand.u32 %s43, 1
        %s1020 = scalar_lea.sflag [#allocation7], %s1019
        %s1021 = sand.u32 %s303, 1
        %s1022 = smul.addr %s1021, 256
        %s1023 = scalar_lea.vmem [#allocation14], %s1022
        %p1024 = pneg %p316
        %p1025 = pneg %p313
        %s1026 = sand.u32 %s43, 1
        %s1027 = scalar_lea.sflag [#allocation7], %s1026
        %s1028 = sand.u32 %s329, 1
        %s1029 = smul.addr %s1028, 2
        %s1030 = scalar_lea.vmem [#allocation15], %s1029
        %p1031 = pneg %p342
        %p1032 = pneg %p339
        %s1033 = sand.u32 %s43, 1
        %s1034 = scalar_lea.sflag [#allocation7], %s1033
        %s1035 = sand.u32 %s355, 1
        %s1036 = smul.addr %s1035, 256
        %s1037 = scalar_lea.vmem [#allocation16], %s1036
        %p1038 = pneg %p368
        %p1039 = pneg %p365
        %s1040 = sand.u32 %s43, 1
        %s1041 = scalar_lea.sflag [#allocation7], %s1040
        %s1042 = sand.u32 %s381, 1
        %s1043 = scalar_lea.vmem [#allocation17], %s1042
        %p1044 = pneg %p394
        %p1045 = pneg %p391
        %s1046 = sand.u32 %s43, 1
        %s1047 = scalar_lea.sflag [#allocation7], %s1046
        %s1048 = sand.u32 %s407, 1
        %s1049 = smul.addr %s1048, 384
        %s1050 = scalar_lea.vmem [#allocation18], %s1049
        %p1051 = pneg %p420
        %p1052 = pneg %p417
        %p1053 = scmp.lt.s32.totalorder %s43, 1
        %s1054 = scalar_select %p1053, %s43, 1
        %s1055 = smul.addr %s1054, 3
        %s1056 = scalar_lea.vmem %s17, %s1055
        %p1057 = pneg %p446
        %p1058 = pneg %p443
        %p1059 = scmp.lt.s32.totalorder %s43, 1
        %s1060 = scalar_select %p1059, %s43, 1
        %s1061 = smul.addr %s1060, 16
        %s1062 = smul.addr %s1061, 8
        %s1063 = scalar_lea.vmem %s18, %s1062
        %p1064 = pneg %p472
        %p1065 = pneg %p469
        %s1066 = sand.u32 %s43, 1
        %s1067 = scalar_lea.sflag [#allocation7], %s1066
        %s1068 = sand.u32 %s485, 1
        %s1069 = scalar_lea.vmem [#allocation19], %s1068
        %p1070 = pneg %p498
        %p1071 = pneg %p495
        %s1072 = sand.u32 %s43, 1
        %s1073 = scalar_lea.sflag [#allocation7], %s1072
        %s1074 = sand.u32 %s511, 1
        %s1075 = scalar_lea.vmem [#allocation20], %s1074
        %p1076 = pneg %p524
        %p1077 = pneg %p521
        %p1078 = scmp.lt.s32.totalorder %s43, 1
        %s1079 = scalar_select %p1078, %s43, 1
        %s1080 = scalar_lea.vmem %s21, %s1079
        %p1081 = pneg %p550
        %p1082 = pneg %p547
        %p1083 = pneg %p571
        %p1084 = pneg %p568
        %p1085 = pneg %p592
        %p1086 = pneg %p589
        %p1087 = pneg %p613
        %p1088 = pneg %p610
        %p1089 = pneg %p634
        %p1090 = pneg %p631
        %p1091 = pneg %p655
        %p1092 = pneg %p652
        %p1093 = scmp.lt.s32.totalorder %s43, 1
        %s1094 = scalar_select %p1093, %s43, 1
        %s1095 = smul.addr %s1094, 3
        %s1096 = scalar_lea.vmem %s17, %s1095
        %p1097 = scmp.lt.s32.totalorder %s43, 1
        %s1098 = scalar_select %p1097, %s43, 1
        %s1099 = smul.addr %s1098, 16
        %s1100 = smul.addr %s1099, 8
        %s1101 = scalar_lea.vmem %s18, %s1100
        %p1102 = scmp.lt.s32.totalorder %s43, 1
        %s1103 = scalar_select %p1102, %s43, 1
        %s1104 = scalar_lea.vmem %s21, %s1103
        %p1106 = scmp.eq.s32.totalorder %s43, 0
        // Predicated region
        $region169: #{tpu_custom_call.1} parent=123 // pred_check
          %p1107 = pneg %p1106
        $region170: #{tpu_custom_call.1} parent=123 // pred_check_branch
          %1109 = sbr.rel (%p1107) target = $region172
        $region171: #{tpu_custom_call.1} parent=123 // pred_region
          %v1110 = vld [vmem:[%s0] sm:$0xff]
          %v1111 = vld [vmem:[%s0 + $0x8] sm:$0xff]
          %1112 = vst [vmem:[#allocation2] sm:$0xff] %v1110
          %1113 = vst [vmem:[#allocation2 + $0x8] sm:$0xff] %v1111
          %v1114 = vld [vmem:[%s1] sm:$0xff]
          %v1115 = vld [vmem:[%s1 + $0x8] sm:$0xff]
          %1116 = vst [vmem:[#allocation3] sm:$0xff] %v1114
          %1117 = vst [vmem:[#allocation3 + $0x8] sm:$0xff] %v1115
        $region172: #{tpu_custom_call.1} parent=123 // pred_fallthru
          _
        %v1118 = vld [vmem:[%s939] sm:$0xff]
        %v1119 = vld [vmem:[%s939 + $0x8] sm:$0xff]
        %v1120 = vld [vmem:[%s939 + $0x10] sm:$0xff]
        %v1121 = vld [vmem:[%s939 + $0x18] sm:$0xff]
        %v1122 = vld [vmem:[%s939 + $0x20] sm:$0xff]
        %v1123 = vld [vmem:[%s939 + $0x28] sm:$0xff]
        %v1124 = vld [vmem:[%s939 + $0x30] sm:$0xff]
        %v1125 = vld [vmem:[%s939 + $0x38] sm:$0xff]
        %v1126 = vld [vmem:[%s939 + $0x40] sm:$0xff]
        %v1127 = vld [vmem:[%s939 + $0x48] sm:$0xff]
        %v1128 = vld [vmem:[%s939 + $0x50] sm:$0xff]
        %v1129 = vld [vmem:[%s939 + $0x58] sm:$0xff]
        %v1130 = vld [vmem:[%s939 + $0x60] sm:$0xff]
        %v1131 = vld [vmem:[%s939 + $0x68] sm:$0xff]
        %v1132 = vld [vmem:[%s939 + $0x70] sm:$0xff]
        %v1133 = vld [vmem:[%s939 + $0x78] sm:$0xff]
        %v1134 = vld [vmem:[%s939 + $0x80] sm:$0xff]
        %v1135 = vld [vmem:[%s939 + $0x88] sm:$0xff]
        %v1136 = vld [vmem:[%s939 + $0x90] sm:$0xff]
        %v1137 = vld [vmem:[%s939 + $0x98] sm:$0xff]
        %v1138 = vld [vmem:[%s939 + $0xa0] sm:$0xff]
        %v1139 = vld [vmem:[%s939 + $0xa8] sm:$0xff]
        %v1140 = vld [vmem:[%s939 + $0xb0] sm:$0xff]
        %v1141 = vld [vmem:[%s939 + $0xb8] sm:$0xff]
        %v1142 = vld [vmem:[%s939 + $0xc0] sm:$0xff]
        %v1143 = vld [vmem:[%s939 + $0xc8] sm:$0xff]
        %v1144 = vld [vmem:[%s939 + $0xd0] sm:$0xff]
        %v1145 = vld [vmem:[%s939 + $0xd8] sm:$0xff]
        %v1146 = vld [vmem:[%s939 + $0xe0] sm:$0xff]
        %v1147 = vld [vmem:[%s939 + $0xe8] sm:$0xff]
        %v1148 = vld [vmem:[%s939 + $0xf0] sm:$0xff]
        %v1149 = vld [vmem:[%s939 + $0xf8] sm:$0xff]
        %v1150 = vld [vmem:[%s948] sm:$0x3]
        %v1151 = vld [vmem:[%s957] sm:$0xff]
        %v1152 = vld [vmem:[%s957 + $0x8] sm:$0xff]
        %v1153 = vld [vmem:[%s957 + $0x10] sm:$0xff]
        %v1154 = vld [vmem:[%s957 + $0x18] sm:$0xff]
        %v1155 = vld [vmem:[%s957 + $0x20] sm:$0xff]
        %v1156 = vld [vmem:[%s957 + $0x28] sm:$0xff]
        %v1157 = vld [vmem:[%s957 + $0x30] sm:$0xff]
        %v1158 = vld [vmem:[%s957 + $0x38] sm:$0xff]
        %v1159 = vld [vmem:[%s957 + $0x40] sm:$0xff]
        %v1160 = vld [vmem:[%s957 + $0x48] sm:$0xff]
        %v1161 = vld [vmem:[%s957 + $0x50] sm:$0xff]
        %v1162 = vld [vmem:[%s957 + $0x58] sm:$0xff]
        %v1163 = vld [vmem:[%s957 + $0x60] sm:$0xff]
        %v1164 = vld [vmem:[%s957 + $0x68] sm:$0xff]
        %v1165 = vld [vmem:[%s957 + $0x70] sm:$0xff]
        %v1166 = vld [vmem:[%s957 + $0x78] sm:$0xff]
        %v1167 = vld [vmem:[%s957 + $0x80] sm:$0xff]
        %v1168 = vld [vmem:[%s957 + $0x88] sm:$0xff]
        %v1169 = vld [vmem:[%s957 + $0x90] sm:$0xff]
        %v1170 = vld [vmem:[%s957 + $0x98] sm:$0xff]
        %v1171 = vld [vmem:[%s957 + $0xa0] sm:$0xff]
        %v1172 = vld [vmem:[%s957 + $0xa8] sm:$0xff]
        %v1173 = vld [vmem:[%s957 + $0xb0] sm:$0xff]
        %v1174 = vld [vmem:[%s957 + $0xb8] sm:$0xff]
        %v1175 = vld [vmem:[%s957 + $0xc0] sm:$0xff]
        %v1176 = vld [vmem:[%s957 + $0xc8] sm:$0xff]
        %v1177 = vld [vmem:[%s957 + $0xd0] sm:$0xff]
        %v1178 = vld [vmem:[%s957 + $0xd8] sm:$0xff]
        %v1179 = vld [vmem:[%s957 + $0xe0] sm:$0xff]
        %v1180 = vld [vmem:[%s957 + $0xe8] sm:$0xff]
        %v1181 = vld [vmem:[%s957 + $0xf0] sm:$0xff]
        %v1182 = vld [vmem:[%s957 + $0xf8] sm:$0xff]
        %v1183 = vld [vmem:[%s965] sm:$0x1]
        %v1184 = vld [vmem:[%s974] sm:$0xff]
        %v1185 = vld [vmem:[%s974 + $0x8] sm:$0xff]
        %v1186 = vld [vmem:[%s974 + $0x10] sm:$0xff]
        %v1187 = vld [vmem:[%s974 + $0x18] sm:$0xff]
        %v1188 = vld [vmem:[%s974 + $0x20] sm:$0xff]
        %v1189 = vld [vmem:[%s974 + $0x28] sm:$0xff]
        %v1190 = vld [vmem:[%s974 + $0x30] sm:$0xff]
        %v1191 = vld [vmem:[%s974 + $0x38] sm:$0xff]
        %v1192 = vld [vmem:[%s974 + $0x40] sm:$0xff]
        %v1193 = vld [vmem:[%s974 + $0x48] sm:$0xff]
        %v1194 = vld [vmem:[%s974 + $0x50] sm:$0xff]
        %v1195 = vld [vmem:[%s974 + $0x58] sm:$0xff]
        %v1196 = vld [vmem:[%s974 + $0x60] sm:$0xff]
        %v1197 = vld [vmem:[%s974 + $0x68] sm:$0xff]
        %v1198 = vld [vmem:[%s974 + $0x70] sm:$0xff]
        %v1199 = vld [vmem:[%s974 + $0x78] sm:$0xff]
        %v1200 = vld [vmem:[%s974 + $0x80] sm:$0xff]
        %v1201 = vld [vmem:[%s974 + $0x88] sm:$0xff]
        %v1202 = vld [vmem:[%s974 + $0x90] sm:$0xff]
        %v1203 = vld [vmem:[%s974 + $0x98] sm:$0xff]
        %v1204 = vld [vmem:[%s974 + $0xa0] sm:$0xff]
        %v1205 = vld [vmem:[%s974 + $0xa8] sm:$0xff]
        %v1206 = vld [vmem:[%s974 + $0xb0] sm:$0xff]
        %v1207 = vld [vmem:[%s974 + $0xb8] sm:$0xff]
        %v1208 = vld [vmem:[%s974 + $0xc0] sm:$0xff]
        %v1209 = vld [vmem:[%s974 + $0xc8] sm:$0xff]
        %v1210 = vld [vmem:[%s974 + $0xd0] sm:$0xff]
        %v1211 = vld [vmem:[%s974 + $0xd8] sm:$0xff]
        %v1212 = vld [vmem:[%s974 + $0xe0] sm:$0xff]
        %v1213 = vld [vmem:[%s974 + $0xe8] sm:$0xff]
        %v1214 = vld [vmem:[%s974 + $0xf0] sm:$0xff]
        %v1215 = vld [vmem:[%s974 + $0xf8] sm:$0xff]
        %v1216 = vld [vmem:[%s974 + $0x100] sm:$0xff]
        %v1217 = vld [vmem:[%s974 + $0x108] sm:$0xff]
        %v1218 = vld [vmem:[%s974 + $0x110] sm:$0xff]
        %v1219 = vld [vmem:[%s974 + $0x118] sm:$0xff]
        %v1220 = vld [vmem:[%s974 + $0x120] sm:$0xff]
        %v1221 = vld [vmem:[%s974 + $0x128] sm:$0xff]
        %v1222 = vld [vmem:[%s974 + $0x130] sm:$0xff]
        %v1223 = vld [vmem:[%s974 + $0x138] sm:$0xff]
        %v1224 = vld [vmem:[%s974 + $0x140] sm:$0xff]
        %v1225 = vld [vmem:[%s974 + $0x148] sm:$0xff]
        %v1226 = vld [vmem:[%s974 + $0x150] sm:$0xff]
        %v1227 = vld [vmem:[%s974 + $0x158] sm:$0xff]
        %v1228 = vld [vmem:[%s974 + $0x160] sm:$0xff]
        %v1229 = vld [vmem:[%s974 + $0x168] sm:$0xff]
        %v1230 = vld [vmem:[%s974 + $0x170] sm:$0xff]
        %v1231 = vld [vmem:[%s974 + $0x178] sm:$0xff]
        %v1232 = vld [vmem:[%s1096] sm:$0x7]
        %v1233 = vld [vmem:[%s1101] sm:$0xff]
        %v1234 = vld [vmem:[%s1101 + $0x8] sm:$0xff]
        %v1235 = vld [vmem:[%s1101 + $0x10] sm:$0xff]
        %v1236 = vld [vmem:[%s1101 + $0x18] sm:$0xff]
        %v1237 = vld [vmem:[%s1101 + $0x20] sm:$0xff]
        %v1238 = vld [vmem:[%s1101 + $0x28] sm:$0xff]
        %v1239 = vld [vmem:[%s1101 + $0x30] sm:$0xff]
        %v1240 = vld [vmem:[%s1101 + $0x38] sm:$0xff]
        %v1241 = vld [vmem:[%s1101 + $0x40] sm:$0xff]
        %v1242 = vld [vmem:[%s1101 + $0x48] sm:$0xff]
        %v1243 = vld [vmem:[%s1101 + $0x50] sm:$0xff]
        %v1244 = vld [vmem:[%s1101 + $0x58] sm:$0xff]
        %v1245 = vld [vmem:[%s1101 + $0x60] sm:$0xff]
        %v1246 = vld [vmem:[%s1101 + $0x68] sm:$0xff]
        %v1247 = vld [vmem:[%s1101 + $0x70] sm:$0xff]
        %v1248 = vld [vmem:[%s1101 + $0x78] sm:$0xff]
        %v1249 = vld [vmem:[%s982] sm:$0x1]
        %v1250 = vld [vmem:[%s990] sm:$0x1]
        %v1251 = vld [vmem:[%s1104] sm:$0x1]
        %v1252 = vld [vmem:[#allocation2] sm:$0xff]
        %v1253 = vld [vmem:[#allocation2 + $0x8] sm:$0xff]
        %v1254 = vld [vmem:[%s2] sm:$0xf]
        %v1255 = vld [vmem:[%s2 + $0x4] sm:$0xf]
        %v1256 = vld [vmem:[%s2 + $0x8] sm:$0xf]
        %v1257 = vld [vmem:[%s2 + $0xc] sm:$0xf]
        %v1258 = vld [vmem:[#allocation6] sm:$0xf]
        %v1259 = vld [vmem:[#allocation6 + $0x4] sm:$0xf]
        %v1260 = vld [vmem:[%s4] sm:$0xff]
        %v1261 = vld [vmem:[%s4 + $0x8] sm:$0xff]
        %v1262 = vld [vmem:[%s4 + $0x10] sm:$0xff]
        %v1263 = vld [vmem:[%s4 + $0x18] sm:$0xff]
        %v1264 = vpack.c.bf16 %v1253, %v1252
        %v1269 = vunpack.c.l.b16 %v1254
        %v1270 = vunpack.c.l.b16 %v1255
        %v1271 = vunpack.c.l.b16 %v1256
        %v1272 = vunpack.c.l.b16 %v1257
        %v1273 = vpack.c.b16 %v1270, %v1269
        %v1274 = vpack.c.b16 %v1272, %v1271
        %vm1275 = vcmask 130048
        %v1277 = vsel %vm1275, %v1273, 0
        %v1280 = vsel %vm1275, %v1274, 0
        %1282 = vmatprep.subr.bf16.mxu0 0
        %1283 = vmatpush1.bf16.msra.mxu0 0
        %1284 = vmatprep.subr.bf16.mxu0 0
        %1285 = vmatpush1.bf16.msra.mxu0 0
        %1286 = vmatprep.subr.bf16.mxu0 0
        %1287 = vmatpush1.bf16.msra.mxu0 0
        %1288 = vmatprep.subr.bf16.mxu0 0
        %1289 = vmatpush1.bf16.msra.mxu0 0
        %1290 = vmatprep.subr.bf16.mxu0 0
        %1291 = vmatpush1.bf16.msra.mxu0 0
        %1292 = vmatprep.subr.bf16.mxu0 0
        %1293 = vmatpush1.bf16.msra.mxu0 0
        %1294 = vmatprep.subr.bf16.mxu0 0
        %1295 = vmatpush1.bf16.msra.mxu0 0
        %1296 = vmatprep.subr.bf16.mxu0 0
        %1297 = vmatpush1.bf16.msra.mxu0 %v1264
        %1298 = vmatprep.subr.bf16.mxu0 0
        %1299 = vmatpush2.bf16.msra.mxu0 0
        %1300 = vmatprep.subr.bf16.mxu0 0
        %1301 = vmatpush2.bf16.msra.mxu0 0
        %1302 = vmatprep.subr.bf16.mxu0 0
        %1303 = vmatpush2.bf16.msra.mxu0 0
        %1304 = vmatprep.subr.bf16.mxu0 0
        %1305 = vmatpush2.bf16.msra.mxu0 0
        %1306 = vmatprep.subr.bf16.mxu0 0
        %1307 = vmatpush2.bf16.msra.mxu0 0
        %1308 = vmatprep.subr.bf16.mxu0 0
        %1309 = vmatpush2.bf16.msra.mxu0 0
        %1310 = vmatprep.subr.bf16.mxu0 0
        %1311 = vmatpush2.bf16.msra.mxu0 0
        %1312 = vmatprep.subr.bf16.mxu0 0
        %1313 = vmatpush2.bf16.msra.mxu0 0
        %1314 = vmatprep.mubr.bf16.mxu0 0
        %1315 = vmatmul.mubr.bf16.gmra.mxu0 %v1277
        %v1316 = vpop.f32.mrf.mxu0
        %v1317 = vadd.f32 %v1260, %v1316
        %v1318 = vpop.f32.mrf.mxu0
        %v1319 = vpop.f32.mrf.mxu0
        %v1320 = vadd.f32 %v1261, %v1319
        %v1321 = vpop.f32.mrf.mxu0
        %1322 = vmatprep.mubr.bf16.mxu0 0
        %1323 = vmatmul.mubr.bf16.gmra.mxu0 %v1280
        %v1324 = vpop.f32.mrf.mxu0
        %v1325 = vadd.f32 %v1262, %v1324
        %v1326 = vpop.f32.mrf.mxu0
        %v1327 = vpop.f32.mrf.mxu0
        %v1328 = vadd.f32 %v1263, %v1327
        %v1329 = vpop.f32.mrf.mxu0
        %1330 = vdwg.mxu0
        %v1331 = vmax.f32 %v1317, 0.0
        %v1332 = vmax.f32 %v1320, 0.0
        %v1333 = vmax.f32 %v1325, 0.0
        %v1334 = vmax.f32 %v1328, 0.0
        %v1335 = vadd.f32 %v1331, 1e-07
        %v1336 = vadd.f32 %v1332, 1e-07
        %v1337 = vadd.f32 %v1333, 1e-07
        %v1338 = vadd.f32 %v1334, 1e-07
        %v1339 = vmin.f32 %v1335, 70.0
        %v1340 = vmin.f32 %v1336, 70.0
        %v1341 = vmin.f32 %v1337, 70.0
        %v1342 = vmin.f32 %v1338, 70.0
        %v1343 = vmul.f32 %v1339, 1.442695
        %v1344 = vpow.pop %v1343
        %v1345 = vmul.f32 %v1340, 1.442695
        %v1346 = vpow.pop %v1345
        %v1347 = vmul.f32 %v1341, 1.442695
        %v1348 = vpow.pop %v1347
        %v1349 = vmul.f32 %v1342, 1.442695
        %v1350 = vpow.pop %v1349
        %v1351 = vmul.f32 %v1344, %v1335
        %v1352 = vmul.f32 %v1346, %v1336
        %v1353 = vmul.f32 %v1348, %v1337
        %v1354 = vmul.f32 %v1350, %v1338
        %v1355 = vpack.c.bf16 %v1346, %v1344
        %v1356 = vpack.c.bf16 %v1352, %v1351
        %v1357 = vpack.c.bf16 %v1350, %v1348
        %v1358 = vpack.c.bf16 %v1354, %v1353
        %v1361 = vunpack.c.l.b16 %v1258
        %v1362 = vunpack.c.l.b16 %v1259
        %v1363 = vpack.c.b16 %v1362, %v1361
        %vm1364 = vcmask 261120
        %v1366 = vsel %vm1364, %v1363, 0
        %1368 = vmatprep.subr.bf16.mxu0 0
        %1369 = vmatpush1.bf16.msra.mxu0 0
        %1370 = vmatprep.subr.bf16.mxu0 0
        %1371 = vmatpush1.bf16.msra.mxu0 0
        %1372 = vmatprep.subr.bf16.mxu0 0
        %1373 = vmatpush1.bf16.msra.mxu0 0
        %1374 = vmatprep.subr.bf16.mxu0 0
        %1375 = vmatpush1.bf16.msra.mxu0 0
        %1376 = vmatprep.subr.bf16.mxu0 0
        %1377 = vmatpush1.bf16.msra.mxu0 0
        %1378 = vmatprep.subr.bf16.mxu0 0
        %1379 = vmatpush1.bf16.msra.mxu0 0
        %1380 = vmatprep.subr.bf16.mxu0 %v1358
        %1381 = vmatpush1.bf16.msra.mxu0 %v1357
        %1382 = vmatprep.subr.bf16.mxu0 %v1356
        %1383 = vmatpush1.bf16.msra.mxu0 %v1355
        %1384 = vmatprep.subr.bf16.mxu0 0
        %1385 = vmatpush2.bf16.msra.mxu0 0
        %1386 = vmatprep.subr.bf16.mxu0 0
        %1387 = vmatpush2.bf16.msra.mxu0 0
        %1388 = vmatprep.subr.bf16.mxu0 0
        %1389 = vmatpush2.bf16.msra.mxu0 0
        %1390 = vmatprep.subr.bf16.mxu0 0
        %1391 = vmatpush2.bf16.msra.mxu0 0
        %1392 = vmatprep.subr.bf16.mxu0 0
        %1393 = vmatpush2.bf16.msra.mxu0 0
        %1394 = vmatprep.subr.bf16.mxu0 0
        %1395 = vmatpush2.bf16.msra.mxu0 0
        %1396 = vmatprep.subr.bf16.mxu0 0
        %1397 = vmatpush2.bf16.msra.mxu0 0
        %1398 = vmatprep.subr.bf16.mxu0 0
        %1399 = vmatpush2.bf16.msra.mxu0 0
        %1400 = vmatprep.mubr.bf16.mxu0 0
        %1401 = vmatmul.mubr.bf16.gmra.mxu0 %v1366
        %v1402 = vpop.f32.mrf.mxu0
        %v1403 = vadd.f32 0.0, %v1402
        %v1404 = vpop.f32.mrf.mxu0
        %v1405 = vadd.f32 0.0, %v1404
        %v1406 = vpop.f32.mrf.mxu0
        %v1407 = vadd.f32 0.0, %v1406
        %v1408 = vpop.f32.mrf.mxu0
        %v1409 = vadd.f32 0.0, %v1408
        %1410 = vdwg.mxu0
        %v1411 = vmax.f32 %v1403, 1e-16
        %v1412 = vmax.f32 %v1407, 1e-16
        %v1413 = vrcp.pop %v1411
        %v1414 = vmul.f32 %v1405, %v1413
        %v1415 = vrcp.pop %v1412
        %v1416 = vmul.f32 %v1409, %v1415
        %v1417 = vadd.f32 %v1414, %v1252
        %v1418 = vadd.f32 %v1416, %v1253
        %v1419 = vld [vmem:[#allocation3] sm:$0xff]
        %v1420 = vld [vmem:[#allocation3 + $0x8] sm:$0xff]
        %v1421 = vld [vmem:[%s5] sm:$0xf]
        %v1422 = vld [vmem:[%s5 + $0x4] sm:$0xf]
        %v1423 = vld [vmem:[%s5 + $0x8] sm:$0xf]
        %v1424 = vld [vmem:[%s5 + $0xc] sm:$0xf]
        %v1425 = vld [vmem:[#allocation9] sm:$0xf]
        %v1426 = vld [vmem:[#allocation9 + $0x4] sm:$0xf]
        %v1427 = vld [vmem:[%s7] sm:$0xff]
        %v1428 = vld [vmem:[%s7 + $0x8] sm:$0xff]
        %v1429 = vld [vmem:[%s7 + $0x10] sm:$0xff]
        %v1430 = vld [vmem:[%s7 + $0x18] sm:$0xff]
        %v1431 = vpack.c.bf16 %v1420, %v1419
        %v1436 = vunpack.c.l.b16 %v1421
        %v1437 = vunpack.c.l.b16 %v1422
        %v1438 = vunpack.c.l.b16 %v1423
        %v1439 = vunpack.c.l.b16 %v1424
        %v1440 = vpack.c.b16 %v1437, %v1436
        %v1441 = vpack.c.b16 %v1439, %v1438
        %v1443 = vsel %vm1275, %v1440, 0
        %v1446 = vsel %vm1275, %v1441, 0
        %1448 = vmatprep.subr.bf16.mxu0 0
        %1449 = vmatpush1.bf16.msra.mxu0 0
        %1450 = vmatprep.subr.bf16.mxu0 0
        %1451 = vmatpush1.bf16.msra.mxu0 0
        %1452 = vmatprep.subr.bf16.mxu0 0
        %1453 = vmatpush1.bf16.msra.mxu0 0
        %1454 = vmatprep.subr.bf16.mxu0 0
        %1455 = vmatpush1.bf16.msra.mxu0 0
        %1456 = vmatprep.subr.bf16.mxu0 0
        %1457 = vmatpush1.bf16.msra.mxu0 0
        %1458 = vmatprep.subr.bf16.mxu0 0
        %1459 = vmatpush1.bf16.msra.mxu0 0
        %1460 = vmatprep.subr.bf16.mxu0 0
        %1461 = vmatpush1.bf16.msra.mxu0 0
        %1462 = vmatprep.subr.bf16.mxu0 0
        %1463 = vmatpush1.bf16.msra.mxu0 %v1431
        %1464 = vmatprep.subr.bf16.mxu0 0
        %1465 = vmatpush2.bf16.msra.mxu0 0
        %1466 = vmatprep.subr.bf16.mxu0 0
        %1467 = vmatpush2.bf16.msra.mxu0 0
        %1468 = vmatprep.subr.bf16.mxu0 0
        %1469 = vmatpush2.bf16.msra.mxu0 0
        %1470 = vmatprep.subr.bf16.mxu0 0
        %1471 = vmatpush2.bf16.msra.mxu0 0
        %1472 = vmatprep.subr.bf16.mxu0 0
        %1473 = vmatpush2.bf16.msra.mxu0 0
        %1474 = vmatprep.subr.bf16.mxu0 0
        %1475 = vmatpush2.bf16.msra.mxu0 0
        %1476 = vmatprep.subr.bf16.mxu0 0
        %1477 = vmatpush2.bf16.msra.mxu0 0
        %1478 = vmatprep.subr.bf16.mxu0 0
        %1479 = vmatpush2.bf16.msra.mxu0 0
        %1480 = vmatprep.mubr.bf16.mxu0 0
        %1481 = vmatmul.mubr.bf16.gmra.mxu0 %v1443
        %v1482 = vpop.f32.mrf.mxu0
        %v1483 = vadd.f32 %v1427, %v1482
        %v1484 = vpop.f32.mrf.mxu0
        %v1485 = vpop.f32.mrf.mxu0
        %v1486 = vadd.f32 %v1428, %v1485
        %v1487 = vpop.f32.mrf.mxu0
        %1488 = vmatprep.mubr.bf16.mxu0 0
        %1489 = vmatmul.mubr.bf16.gmra.mxu0 %v1446
        %v1490 = vpop.f32.mrf.mxu0
        %v1491 = vadd.f32 %v1429, %v1490
        %v1492 = vpop.f32.mrf.mxu0
        %v1493 = vpop.f32.mrf.mxu0
        %v1494 = vadd.f32 %v1430, %v1493
        %v1495 = vpop.f32.mrf.mxu0
        %1496 = vdwg.mxu0
        %v1497 = vmax.f32 %v1483, 0.0
        %v1498 = vmax.f32 %v1486, 0.0
        %v1499 = vmax.f32 %v1491, 0.0
        %v1500 = vmax.f32 %v1494, 0.0
        %v1501 = vadd.f32 %v1497, 1e-07
        %v1502 = vadd.f32 %v1498, 1e-07
        %v1503 = vadd.f32 %v1499, 1e-07
        %v1504 = vadd.f32 %v1500, 1e-07
        %v1505 = vmin.f32 %v1501, 70.0
        %v1506 = vmin.f32 %v1502, 70.0
        %v1507 = vmin.f32 %v1503, 70.0
        %v1508 = vmin.f32 %v1504, 70.0
        %v1509 = vmul.f32 %v1505, 1.442695
        %v1510 = vpow.pop %v1509
        %v1511 = vmul.f32 %v1506, 1.442695
        %v1512 = vpow.pop %v1511
        %v1513 = vmul.f32 %v1507, 1.442695
        %v1514 = vpow.pop %v1513
        %v1515 = vmul.f32 %v1508, 1.442695
        %v1516 = vpow.pop %v1515
        %v1517 = vmul.f32 %v1510, %v1501
        %v1518 = vmul.f32 %v1512, %v1502
        %v1519 = vmul.f32 %v1514, %v1503
        %v1520 = vmul.f32 %v1516, %v1504
        %v1521 = vpack.c.bf16 %v1512, %v1510
        %v1522 = vpack.c.bf16 %v1518, %v1517
        %v1523 = vpack.c.bf16 %v1516, %v1514
        %v1524 = vpack.c.bf16 %v1520, %v1519
        %v1527 = vunpack.c.l.b16 %v1425
        %v1528 = vunpack.c.l.b16 %v1426
        %v1529 = vpack.c.b16 %v1528, %v1527
        %v1531 = vsel %vm1364, %v1529, 0
        %1533 = vmatprep.subr.bf16.mxu0 0
        %1534 = vmatpush1.bf16.msra.mxu0 0
        %1535 = vmatprep.subr.bf16.mxu0 0
        %1536 = vmatpush1.bf16.msra.mxu0 0
        %1537 = vmatprep.subr.bf16.mxu0 0
        %1538 = vmatpush1.bf16.msra.mxu0 0
        %1539 = vmatprep.subr.bf16.mxu0 0
        %1540 = vmatpush1.bf16.msra.mxu0 0
        %1541 = vmatprep.subr.bf16.mxu0 0
        %1542 = vmatpush1.bf16.msra.mxu0 0
        %1543 = vmatprep.subr.bf16.mxu0 0
        %1544 = vmatpush1.bf16.msra.mxu0 0
        %1545 = vmatprep.subr.bf16.mxu0 %v1524
        %1546 = vmatpush1.bf16.msra.mxu0 %v1523
        %1547 = vmatprep.subr.bf16.mxu0 %v1522
        %1548 = vmatpush1.bf16.msra.mxu0 %v1521
        %1549 = vmatprep.subr.bf16.mxu0 0
        %1550 = vmatpush2.bf16.msra.mxu0 0
        %1551 = vmatprep.subr.bf16.mxu0 0
        %1552 = vmatpush2.bf16.msra.mxu0 0
        %1553 = vmatprep.subr.bf16.mxu0 0
        %1554 = vmatpush2.bf16.msra.mxu0 0
        %1555 = vmatprep.subr.bf16.mxu0 0
        %1556 = vmatpush2.bf16.msra.mxu0 0
        %1557 = vmatprep.subr.bf16.mxu0 0
        %1558 = vmatpush2.bf16.msra.mxu0 0
        %1559 = vmatprep.subr.bf16.mxu0 0
        %1560 = vmatpush2.bf16.msra.mxu0 0
        %1561 = vmatprep.subr.bf16.mxu0 0
        %1562 = vmatpush2.bf16.msra.mxu0 0
        %1563 = vmatprep.subr.bf16.mxu0 0
        %1564 = vmatpush2.bf16.msra.mxu0 0
        %1565 = vmatprep.mubr.bf16.mxu0 0
        %1566 = vmatmul.mubr.bf16.gmra.mxu0 %v1531
        %v1567 = vpop.f32.mrf.mxu0
        %v1568 = vadd.f32 0.0, %v1567
        %v1569 = vpop.f32.mrf.mxu0
        %v1570 = vadd.f32 0.0, %v1569
        %v1571 = vpop.f32.mrf.mxu0
        %v1572 = vadd.f32 0.0, %v1571
        %v1573 = vpop.f32.mrf.mxu0
        %v1574 = vadd.f32 0.0, %v1573
        %1575 = vdwg.mxu0
        %v1576 = vmax.f32 %v1568, 1e-16
        %v1577 = vmax.f32 %v1572, 1e-16
        %v1578 = vrcp.pop %v1576
        %v1579 = vmul.f32 %v1570, %v1578
        %v1580 = vrcp.pop %v1577
        %v1581 = vmul.f32 %v1574, %v1580
        %v1582 = vadd.f32 %v1579, %v1419
        %v1583 = vadd.f32 %v1581, %v1420
        %v1584 = vpack.c.bf16 %v1418, %v1417
        %v1585 = vpack.c.bf16 %v1583, %v1582
        %v1586 = vpack.c.bf16 %v1120, %v1118
        %v1587 = vpack.c.bf16 %v1121, %v1119
        %v1588 = vpack.c.bf16 %v1124, %v1122
        %v1589 = vpack.c.bf16 %v1125, %v1123
        %v1590 = vpack.c.bf16 %v1128, %v1126
        %v1591 = vpack.c.bf16 %v1129, %v1127
        %v1592 = vpack.c.bf16 %v1132, %v1130
        %v1593 = vpack.c.bf16 %v1133, %v1131
        %v1594 = vpack.c.bf16 %v1136, %v1134
        %v1595 = vpack.c.bf16 %v1137, %v1135
        %v1596 = vpack.c.bf16 %v1140, %v1138
        %v1597 = vpack.c.bf16 %v1141, %v1139
        %v1598 = vpack.c.bf16 %v1144, %v1142
        %v1599 = vpack.c.bf16 %v1145, %v1143
        %v1600 = vpack.c.bf16 %v1148, %v1146
        %v1601 = vpack.c.bf16 %v1149, %v1147
        %v1603 = vlaneseq
        %v1604 = vshrl.u32 %v1603, 7
        %v1605 = vsub.s32 0, %v1604
        %v1606 = vrot.slane %v1150, %v1605
        %v1607 = vlaneseq
        %v1608 = vshrl.u32 %v1607, 7
        %v1609 = vsub.s32 1, %v1608
        %v1610 = vrot.slane %v1150, %v1609
        %1613 = vmatprep.subr.bf16.mxu0 %v1601
        %1614 = vmatpush1.bf16.msra.mxu0 %v1600
        %1615 = vmatprep.subr.bf16.mxu0 %v1599
        %1616 = vmatpush1.bf16.msra.mxu0 %v1598
        %1617 = vmatprep.subr.bf16.mxu0 %v1597
        %1618 = vmatpush1.bf16.msra.mxu0 %v1596
        %1619 = vmatprep.subr.bf16.mxu0 %v1595
        %1620 = vmatpush1.bf16.msra.mxu0 %v1594
        %1621 = vmatprep.subr.bf16.mxu0 %v1593
        %1622 = vmatpush1.bf16.msra.mxu0 %v1592
        %1623 = vmatprep.subr.bf16.mxu0 %v1591
        %1624 = vmatpush1.bf16.msra.mxu0 %v1590
        %1625 = vmatprep.subr.bf16.mxu0 %v1589
        %1626 = vmatpush1.bf16.msra.mxu0 %v1588
        %1627 = vmatprep.subr.bf16.mxu0 %v1587
        %1628 = vmatpush1.bf16.msra.mxu0 %v1586
        %1629 = vmatprep.subr.bf16.mxu0 0
        %1630 = vmatpush2.bf16.msra.mxu0 0
        %1631 = vmatprep.subr.bf16.mxu0 0
        %1632 = vmatpush2.bf16.msra.mxu0 0
        %1633 = vmatprep.subr.bf16.mxu0 0
        %1634 = vmatpush2.bf16.msra.mxu0 0
        %1635 = vmatprep.subr.bf16.mxu0 0
        %1636 = vmatpush2.bf16.msra.mxu0 0
        %1637 = vmatprep.subr.bf16.mxu0 0
        %1638 = vmatpush2.bf16.msra.mxu0 0
        %1639 = vmatprep.subr.bf16.mxu0 0
        %1640 = vmatpush2.bf16.msra.mxu0 0
        %1641 = vmatprep.subr.bf16.mxu0 0
        %1642 = vmatpush2.bf16.msra.mxu0 0
        %1643 = vmatprep.subr.bf16.mxu0 0
        %1644 = vmatpush2.bf16.msra.mxu0 0
        %1645 = vmatprep.mubr.bf16.mxu0 0
        %1646 = vmatmul.mubr.bf16.gmra.mxu0 %v1584
        %v1647 = vpop.f32.mrf.mxu0
        %v1648 = vadd.f32 %v1606, %v1647
        %v1649 = vpop.f32.mrf.mxu0
        %v1650 = vadd.f32 %v1610, %v1649
        %v1651 = vpop.f32.mrf.mxu0
        %v1652 = vadd.f32 %v1606, %v1651
        %v1653 = vpop.f32.mrf.mxu0
        %v1654 = vadd.f32 %v1610, %v1653
        %1655 = vmatprep.mubr.bf16.mxu0 0
        %1656 = vmatmul.mubr.bf16.gmra.mxu0 %v1585
        %v1657 = vpop.f32.mrf.mxu0
        %v1658 = vadd.f32 %v1606, %v1657
        %v1659 = vpop.f32.mrf.mxu0
        %v1660 = vadd.f32 %v1610, %v1659
        %v1661 = vpop.f32.mrf.mxu0
        %v1662 = vadd.f32 %v1606, %v1661
        %v1663 = vpop.f32.mrf.mxu0
        %v1664 = vadd.f32 %v1610, %v1663
        %1665 = vdwg.mxu0
        %v1666 = vmax.f32 %v1648, 0.0
        %v1667 = vmax.f32 %v1650, 0.0
        %v1668 = vmax.f32 %v1652, 0.0
        %v1669 = vmax.f32 %v1654, 0.0
        %v1670 = vmax.f32 %v1658, 0.0
        %v1671 = vmax.f32 %v1660, 0.0
        %v1672 = vmax.f32 %v1662, 0.0
        %v1673 = vmax.f32 %v1664, 0.0
        %v1674 = vpack.c.bf16 %v1668, %v1666
        %v1675 = vpack.c.bf16 %v1669, %v1667
        %v1676 = vpack.c.bf16 %v1672, %v1670
        %v1677 = vpack.c.bf16 %v1673, %v1671
        %v1678 = vpack.c.bf16 %v1152, %v1151
        %v1679 = vpack.c.bf16 %v1154, %v1153
        %v1680 = vpack.c.bf16 %v1156, %v1155
        %v1681 = vpack.c.bf16 %v1158, %v1157
        %v1682 = vpack.c.bf16 %v1160, %v1159
        %v1683 = vpack.c.bf16 %v1162, %v1161
        %v1684 = vpack.c.bf16 %v1164, %v1163
        %v1685 = vpack.c.bf16 %v1166, %v1165
        %v1686 = vpack.c.bf16 %v1168, %v1167
        %v1687 = vpack.c.bf16 %v1170, %v1169
        %v1688 = vpack.c.bf16 %v1172, %v1171
        %v1689 = vpack.c.bf16 %v1174, %v1173
        %v1690 = vpack.c.bf16 %v1176, %v1175
        %v1691 = vpack.c.bf16 %v1178, %v1177
        %v1692 = vpack.c.bf16 %v1180, %v1179
        %v1693 = vpack.c.bf16 %v1182, %v1181
        %v1695 = vlaneseq
        %v1696 = vshrl.u32 %v1695, 7
        %v1697 = vsub.s32 0, %v1696
        %v1698 = vrot.slane %v1183, %v1697
        %1700 = vmatprep.subr.bf16.mxu0 0
        %1701 = vmatpush1.bf16.msra.mxu0 %v1685
        %1702 = vmatprep.subr.bf16.mxu0 0
        %1703 = vmatpush1.bf16.msra.mxu0 %v1684
        %1704 = vmatprep.subr.bf16.mxu0 0
        %1705 = vmatpush1.bf16.msra.mxu0 %v1683
        %1706 = vmatprep.subr.bf16.mxu0 0
        %1707 = vmatpush1.bf16.msra.mxu0 %v1682
        %1708 = vmatprep.subr.bf16.mxu0 0
        %1709 = vmatpush1.bf16.msra.mxu0 %v1681
        %1710 = vmatprep.subr.bf16.mxu0 0
        %1711 = vmatpush1.bf16.msra.mxu0 %v1680
        %1712 = vmatprep.subr.bf16.mxu0 0
        %1713 = vmatpush1.bf16.msra.mxu0 %v1679
        %1714 = vmatprep.subr.bf16.mxu0 0
        %1715 = vmatpush1.bf16.msra.mxu0 %v1678
        %1716 = vmatprep.subr.bf16.mxu0 0
        %1717 = vmatpush2.bf16.msra.mxu0 %v1693
        %1718 = vmatprep.subr.bf16.mxu0 0
        %1719 = vmatpush2.bf16.msra.mxu0 %v1692
        %1720 = vmatprep.subr.bf16.mxu0 0
        %1721 = vmatpush2.bf16.msra.mxu0 %v1691
        %1722 = vmatprep.subr.bf16.mxu0 0
        %1723 = vmatpush2.bf16.msra.mxu0 %v1690
        %1724 = vmatprep.subr.bf16.mxu0 0
        %1725 = vmatpush2.bf16.msra.mxu0 %v1689
        %1726 = vmatprep.subr.bf16.mxu0 0
        %1727 = vmatpush2.bf16.msra.mxu0 %v1688
        %1728 = vmatprep.subr.bf16.mxu0 0
        %1729 = vmatpush2.bf16.msra.mxu0 %v1687
        %1730 = vmatprep.subr.bf16.mxu0 0
        %1731 = vmatpush2.bf16.msra.mxu0 %v1686
        %1732 = vmatprep.mubr.bf16.mxu0 %v1675
        %1733 = vmatmul.mubr.bf16.gmra.mxu0 %v1674
        %v1734 = vpop.f32.mrf.mxu0
        %v1735 = vadd.f32 %v1698, %v1734
        %v1736 = vpop.f32.mrf.mxu0
        %v1737 = vpop.f32.mrf.mxu0
        %v1738 = vadd.f32 %v1698, %v1737
        %v1739 = vpop.f32.mrf.mxu0
        %1740 = vmatprep.mubr.bf16.mxu0 %v1677
        %1741 = vmatmul.mubr.bf16.gmra.mxu0 %v1676
        %v1742 = vpop.f32.mrf.mxu0
        %v1743 = vadd.f32 %v1698, %v1742
        %v1744 = vpop.f32.mrf.mxu0
        %v1745 = vpop.f32.mrf.mxu0
        %v1746 = vadd.f32 %v1698, %v1745
        %v1747 = vpop.f32.mrf.mxu0
        %1748 = vdwg.mxu0
        %v1749 = vpack.c.bf16 %v1738, %v1735
        %v1750 = vpack.c.bf16 %v1746, %v1743
        %v1751 = vpack.c.bf16 %v1187, %v1184
        %v1752 = vpack.c.bf16 %v1188, %v1185
        %v1753 = vpack.c.bf16 %v1189, %v1186
        %v1754 = vpack.c.bf16 %v1193, %v1190
        %v1755 = vpack.c.bf16 %v1194, %v1191
        %v1756 = vpack.c.bf16 %v1195, %v1192
        %v1757 = vpack.c.bf16 %v1199, %v1196
        %v1758 = vpack.c.bf16 %v1200, %v1197
        %v1759 = vpack.c.bf16 %v1201, %v1198
        %v1760 = vpack.c.bf16 %v1205, %v1202
        %v1761 = vpack.c.bf16 %v1206, %v1203
        %v1762 = vpack.c.bf16 %v1207, %v1204
        %v1763 = vpack.c.bf16 %v1211, %v1208
        %v1764 = vpack.c.bf16 %v1212, %v1209
        %v1765 = vpack.c.bf16 %v1213, %v1210
        %v1766 = vpack.c.bf16 %v1217, %v1214
        %v1767 = vpack.c.bf16 %v1218, %v1215
        %v1768 = vpack.c.bf16 %v1219, %v1216
        %v1769 = vpack.c.bf16 %v1223, %v1220
        %v1770 = vpack.c.bf16 %v1224, %v1221
        %v1771 = vpack.c.bf16 %v1225, %v1222
        %v1772 = vpack.c.bf16 %v1229, %v1226
        %v1773 = vpack.c.bf16 %v1230, %v1227
        %v1774 = vpack.c.bf16 %v1231, %v1228
        %v1776 = vlaneseq
        %v1777 = vshrl.u32 %v1776, 7
        %v1778 = vsub.s32 0, %v1777
        %v1779 = vrot.slane %v1232, %v1778
        %v1780 = vlaneseq
        %v1781 = vshrl.u32 %v1780, 7
        %v1782 = vsub.s32 1, %v1781
        %v1783 = vrot.slane %v1232, %v1782
        %v1784 = vlaneseq
        %v1785 = vshrl.u32 %v1784, 7
        %v1786 = vsub.s32 2, %v1785
        %v1787 = vrot.slane %v1232, %v1786
        %1791 = vmatprep.subr.bf16.mxu0 %v1773
        %1792 = vmatpush1.bf16.msra.mxu0 %v1772
        %1793 = vmatprep.subr.bf16.mxu0 %v1770
        %1794 = vmatpush1.bf16.msra.mxu0 %v1769
        %1795 = vmatprep.subr.bf16.mxu0 %v1767
        %1796 = vmatpush1.bf16.msra.mxu0 %v1766
        %1797 = vmatprep.subr.bf16.mxu0 %v1764
        %1798 = vmatpush1.bf16.msra.mxu0 %v1763
        %1799 = vmatprep.subr.bf16.mxu0 %v1761
        %1800 = vmatpush1.bf16.msra.mxu0 %v1760
        %1801 = vmatprep.subr.bf16.mxu0 %v1758
        %1802 = vmatpush1.bf16.msra.mxu0 %v1757
        %1803 = vmatprep.subr.bf16.mxu0 %v1755
        %1804 = vmatpush1.bf16.msra.mxu0 %v1754
        %1805 = vmatprep.subr.bf16.mxu0 %v1752
        %1806 = vmatpush1.bf16.msra.mxu0 %v1751
        %1807 = vmatprep.subr.bf16.mxu0 0
        %1808 = vmatpush2.bf16.msra.mxu0 0
        %1809 = vmatprep.subr.bf16.mxu0 0
        %1810 = vmatpush2.bf16.msra.mxu0 0
        %1811 = vmatprep.subr.bf16.mxu0 0
        %1812 = vmatpush2.bf16.msra.mxu0 0
        %1813 = vmatprep.subr.bf16.mxu0 0
        %1814 = vmatpush2.bf16.msra.mxu0 0
        %1815 = vmatprep.subr.bf16.mxu0 0
        %1816 = vmatpush2.bf16.msra.mxu0 0
        %1817 = vmatprep.subr.bf16.mxu0 0
        %1818 = vmatpush2.bf16.msra.mxu0 0
        %1819 = vmatprep.subr.bf16.mxu0 0
        %1820 = vmatpush2.bf16.msra.mxu0 0
        %1821 = vmatprep.subr.bf16.mxu0 0
        %1822 = vmatpush2.bf16.msra.mxu0 0
        %1823 = vmatprep.mubr.bf16.mxu0 0
        %1824 = vmatmul.mubr.bf16.gmra.mxu0 %v1749
        %v1825 = vpop.f32.mrf.mxu0
        %v1826 = vadd.f32 %v1779, %v1825
        %v1827 = vpop.f32.mrf.mxu0
        %v1828 = vadd.f32 %v1783, %v1827
        %v1829 = vpop.f32.mrf.mxu0
        %v1830 = vadd.f32 %v1779, %v1829
        %v1831 = vpop.f32.mrf.mxu0
        %v1832 = vadd.f32 %v1783, %v1831
        %1833 = vmatprep.mubr.bf16.mxu0 0
        %1834 = vmatmul.mubr.bf16.gmra.mxu0 %v1750
        %v1835 = vpop.f32.mrf.mxu0
        %v1836 = vadd.f32 %v1779, %v1835
        %v1837 = vpop.f32.mrf.mxu0
        %v1838 = vadd.f32 %v1783, %v1837
        %v1839 = vpop.f32.mrf.mxu0
        %v1840 = vadd.f32 %v1779, %v1839
        %v1841 = vpop.f32.mrf.mxu0
        %v1842 = vadd.f32 %v1783, %v1841
        %1843 = vdwg.mxu0
        %1844 = vmatprep.subr.bf16.mxu0 0
        %1845 = vmatpush1.bf16.msra.mxu0 %v1774
        %1846 = vmatprep.subr.bf16.mxu0 0
        %1847 = vmatpush1.bf16.msra.mxu0 %v1771
        %1848 = vmatprep.subr.bf16.mxu0 0
        %1849 = vmatpush1.bf16.msra.mxu0 %v1768
        %1850 = vmatprep.subr.bf16.mxu0 0
        %1851 = vmatpush1.bf16.msra.mxu0 %v1765
        %1852 = vmatprep.subr.bf16.mxu0 0
        %1853 = vmatpush1.bf16.msra.mxu0 %v1762
        %1854 = vmatprep.subr.bf16.mxu0 0
        %1855 = vmatpush1.bf16.msra.mxu0 %v1759
        %1856 = vmatprep.subr.bf16.mxu0 0
        %1857 = vmatpush1.bf16.msra.mxu0 %v1756
        %1858 = vmatprep.subr.bf16.mxu0 0
        %1859 = vmatpush1.bf16.msra.mxu0 %v1753
        %1860 = vmatprep.subr.bf16.mxu0 0
        %1861 = vmatpush2.bf16.msra.mxu0 0
        %1862 = vmatprep.subr.bf16.mxu0 0
        %1863 = vmatpush2.bf16.msra.mxu0 0
        %1864 = vmatprep.subr.bf16.mxu0 0
        %1865 = vmatpush2.bf16.msra.mxu0 0
        %1866 = vmatprep.subr.bf16.mxu0 0
        %1867 = vmatpush2.bf16.msra.mxu0 0
        %1868 = vmatprep.subr.bf16.mxu0 0
        %1869 = vmatpush2.bf16.msra.mxu0 0
        %1870 = vmatprep.subr.bf16.mxu0 0
        %1871 = vmatpush2.bf16.msra.mxu0 0
        %1872 = vmatprep.subr.bf16.mxu0 0
        %1873 = vmatpush2.bf16.msra.mxu0 0
        %1874 = vmatprep.subr.bf16.mxu0 0
        %1875 = vmatpush2.bf16.msra.mxu0 0
        %1876 = vmatprep.mubr.bf16.mxu0 0
        %1877 = vmatmul.mubr.bf16.gmra.mxu0 %v1749
        %v1878 = vpop.f32.mrf.mxu0
        %v1879 = vadd.f32 %v1787, %v1878
        %v1880 = vpop.f32.mrf.mxu0
        %v1881 = vpop.f32.mrf.mxu0
        %v1882 = vadd.f32 %v1787, %v1881
        %v1883 = vpop.f32.mrf.mxu0
        %1884 = vmatprep.mubr.bf16.mxu0 0
        %1885 = vmatmul.mubr.bf16.gmra.mxu0 %v1750
        %v1886 = vpop.f32.mrf.mxu0
        %v1887 = vadd.f32 %v1787, %v1886
        %v1888 = vpop.f32.mrf.mxu0
        %v1889 = vpop.f32.mrf.mxu0
        %v1890 = vadd.f32 %v1787, %v1889
        %v1891 = vpop.f32.mrf.mxu0
        %1892 = vdwg.mxu0
        %v1893 = vld [vmem:[%s8] sm:$0xff]
        %v1894 = vld [vmem:[%s8 + $0x8] sm:$0xff]
        %v1895 = vld [vmem:[%s9] sm:$0x1]
        %1896 = vset.pattern.permute.xlu0 0
        %1897 = vperm.xlu0 %1896, %v1893
        %v1898 = vpop.permute.xlu0 %1897
        %1899 = vset.pattern.permute.xlu0 0
        %1900 = vperm.xlu0 %1899, %v1894
        %v1901 = vpop.permute.xlu0 %1900
        %v1902 = vlaneseq
        %v1903 = vshrl.u32 %v1902, 7
        %v1904 = vsub.s32 0, %v1903
        %v1905 = vrot.slane %v1895, %v1904
        %vm1906 = vcmp.ne.s32.totalorder %v1898, %v1905
        %vm1907 = vcmp.ne.s32.totalorder %v1901, %v1905
        %v1908 = vsel %vm1906, -1e+30, 0.0
        %v1909 = vsel %vm1907, -1e+30, 0.0
        %1910 = vxpose.xlu0.b32.start [1/16] %v1908, 128
        %1911 = vxpose.xlu0.b32.cont [2/16] %v1909, 128
        %1912 = vxpose.xlu0.b32.cont [3/16] 0.0, 128
        %1913 = vxpose.xlu0.b32.cont [4/16] 0.0, 128
        %1914 = vxpose.xlu0.b32.cont [5/16] 0.0, 128
        %1915 = vxpose.xlu0.b32.cont [6/16] 0.0, 128
        %1916 = vxpose.xlu0.b32.cont [7/16] 0.0, 128
        %1917 = vxpose.xlu0.b32.cont [8/16] 0.0, 128
        %1918 = vxpose.xlu0.b32.cont [9/16] 0.0, 128
        %1919 = vxpose.xlu0.b32.cont [10/16] 0.0, 128
        %1920 = vxpose.xlu0.b32.cont [11/16] 0.0, 128
        %1921 = vxpose.xlu0.b32.cont [12/16] 0.0, 128
        %1922 = vxpose.xlu0.b32.cont [13/16] 0.0, 128
        %1923 = vxpose.xlu0.b32.cont [14/16] 0.0, 128
        %1924 = vxpose.xlu0.b32.cont [15/16] 0.0, 128
        %1925 = vxpose.xlu0.b32.end [16/16] 0.0, 128
        %v1926 = vpop.trf.xlu0
        %v1927 = vpop.trf.xlu0
        %v1928 = vpop.trf.xlu0
        %v1929 = vpop.trf.xlu0
        %v1930 = vpop.trf.xlu0
        %v1931 = vpop.trf.xlu0
        %v1932 = vpop.trf.xlu0
        %v1933 = vpop.trf.xlu0
        %v1934 = vpop.trf.xlu0
        %v1935 = vpop.trf.xlu0
        %v1936 = vpop.trf.xlu0
        %v1937 = vpop.trf.xlu0
        %v1938 = vpop.trf.xlu0
        %v1939 = vpop.trf.xlu0
        %v1940 = vpop.trf.xlu0
        %v1941 = vpop.trf.xlu0
        %v1942 = vpack.c.bf16 %v1830, %v1826
        %v1943 = vpack.c.bf16 %v1842, %v1838
        %v1945 = vsel %vm1364, %v1942, 0
        %v1948 = vsel %vm1364, %v1943, 0
        %1950 = vmatprep.subr.bf16.mxu0 0
        %1951 = vmatpush1.bf16.xpose.msra.mxu0 0
        %1952 = vmatprep.subr.bf16.mxu0 0
        %1953 = vmatpush1.bf16.xpose.msra.mxu0 0
        %1954 = vmatprep.subr.bf16.mxu0 0
        %1955 = vmatpush1.bf16.xpose.msra.mxu0 0
        %1956 = vmatprep.subr.bf16.mxu0 0
        %1957 = vmatpush1.bf16.xpose.msra.mxu0 0
        %1958 = vmatprep.subr.bf16.mxu0 0
        %1959 = vmatpush1.bf16.xpose.msra.mxu0 0
        %1960 = vmatprep.subr.bf16.mxu0 0
        %1961 = vmatpush1.bf16.xpose.msra.mxu0 0
        %1962 = vmatprep.subr.bf16.mxu0 0
        %1963 = vmatpush1.bf16.xpose.msra.mxu0 0
        %1964 = vmatprep.subr.bf16.mxu0 0
        %1965 = vmatpush1.bf16.xpose.msra.mxu0 %v1948
        %1966 = vmatprep.subr.bf16.mxu0 0
        %1967 = vmatpush2.bf16.xpose.msra.mxu0 0
        %1968 = vmatprep.subr.bf16.mxu0 0
        %1969 = vmatpush2.bf16.xpose.msra.mxu0 0
        %1970 = vmatprep.subr.bf16.mxu0 0
        %1971 = vmatpush2.bf16.xpose.msra.mxu0 0
        %1972 = vmatprep.subr.bf16.mxu0 0
        %1973 = vmatpush2.bf16.xpose.msra.mxu0 0
        %1974 = vmatprep.subr.bf16.mxu0 0
        %1975 = vmatpush2.bf16.xpose.msra.mxu0 0
        %1976 = vmatprep.subr.bf16.mxu0 0
        %1977 = vmatpush2.bf16.xpose.msra.mxu0 0
        %1978 = vmatprep.subr.bf16.mxu0 0
        %1979 = vmatpush2.bf16.xpose.msra.mxu0 0
        %1980 = vmatprep.subr.bf16.mxu0 0
        %1981 = vmatpush2.bf16.xpose.msra.mxu0 0
        %1982 = vmatprep.mubr.bf16.mxu0 0
        %1983 = vmatmul.mubr.bf16.gmra.mxu0 %v1945
        %v1984 = vpop.f32.mrf.mxu0
        %v1985 = vadd.f32 %v1908, %v1984
        %v1986 = vpop.f32.mrf.mxu0
        %v1987 = vpop.f32.mrf.mxu0
        %v1988 = vadd.f32 %v1909, %v1987
        %v1989 = vpop.f32.mrf.mxu0
        %1990 = vdwg.mxu0
        %v1991 = vsel %vm1275, %v1985, -inf
        %1992 = vmax.xlane.f32.xlu0 %v1991
        %v1993 = vpop.xlane.xlu0 %1992
        %v1994 = vsel %vm1275, %v1988, -inf
        %1995 = vmax.xlane.f32.xlu0 %v1994
        %v1996 = vpop.xlane.xlu0 %1995
        %v1997 = vsub.f32 %v1985, %v1993
        %v1998 = vsub.f32 %v1988, %v1996
        %v1999 = vmul.f32 %v1997, 1.442695
        %v2000 = vpow.pop %v1999
        %v2001 = vmul.f32 %v1998, 1.442695
        %v2002 = vpow.pop %v2001
        %v2003 = vsel %vm1275, %v2000, 0.0
        %2004 = vadd.xlane.f32.xlu0 %v2003
        %v2005 = vpop.xlane.xlu0 %2004
        %v2006 = vsel %vm1275, %v2002, 0.0
        %2007 = vadd.xlane.f32.xlu0 %v2006
        %v2008 = vpop.xlane.xlu0 %2007
        %v2009 = vrcp.pop %v2005
        %v2010 = vrcp.pop %v2008
        %v2011 = vmul.f32 %v2000, %v2009
        %v2012 = vmul.f32 %v2002, %v2010
        %v2013 = vpack.c.bf16 %v2012, %v2011
        %v2014 = vpack.c.bf16 %v1890, %v1887
        %v2016 = vsel %vm1275, %v2013, 0
        %2018 = vmatprep.subr.bf16.mxu0 0
        %2019 = vmatpush1.bf16.msra.mxu0 0
        %2020 = vmatprep.subr.bf16.mxu0 0
        %2021 = vmatpush1.bf16.msra.mxu0 0
        %2022 = vmatprep.subr.bf16.mxu0 0
        %2023 = vmatpush1.bf16.msra.mxu0 0
        %2024 = vmatprep.subr.bf16.mxu0 0
        %2025 = vmatpush1.bf16.msra.mxu0 0
        %2026 = vmatprep.subr.bf16.mxu0 0
        %2027 = vmatpush1.bf16.msra.mxu0 0
        %2028 = vmatprep.subr.bf16.mxu0 0
        %2029 = vmatpush1.bf16.msra.mxu0 0
        %2030 = vmatprep.subr.bf16.mxu0 0
        %2031 = vmatpush1.bf16.msra.mxu0 0
        %2032 = vmatprep.subr.bf16.mxu0 0
        %2033 = vmatpush1.bf16.msra.mxu0 %v2014
        %2034 = vmatprep.subr.bf16.mxu0 0
        %2035 = vmatpush2.bf16.msra.mxu0 0
        %2036 = vmatprep.subr.bf16.mxu0 0
        %2037 = vmatpush2.bf16.msra.mxu0 0
        %2038 = vmatprep.subr.bf16.mxu0 0
        %2039 = vmatpush2.bf16.msra.mxu0 0
        %2040 = vmatprep.subr.bf16.mxu0 0
        %2041 = vmatpush2.bf16.msra.mxu0 0
        %2042 = vmatprep.subr.bf16.mxu0 0
        %2043 = vmatpush2.bf16.msra.mxu0 0
        %2044 = vmatprep.subr.bf16.mxu0 0
        %2045 = vmatpush2.bf16.msra.mxu0 0
        %2046 = vmatprep.subr.bf16.mxu0 0
        %2047 = vmatpush2.bf16.msra.mxu0 0
        %2048 = vmatprep.subr.bf16.mxu0 0
        %2049 = vmatpush2.bf16.msra.mxu0 0
        %2050 = vmatprep.mubr.bf16.mxu0 0
        %2051 = vmatmul.mubr.bf16.gmra.mxu0 %v2016
        %v2052 = vpop.f32.mrf.mxu0
        %v2053 = vadd.f32 0.0, %v2052
        %v2054 = vpop.f32.mrf.mxu0
        %v2055 = vpop.f32.mrf.mxu0
        %v2056 = vadd.f32 0.0, %v2055
        %v2057 = vpop.f32.mrf.mxu0
        %2058 = vdwg.mxu0
        %2059 = vst.msk [vmem:[#allocation4] sm:$0xff] %vm1364, %v2053
        %2060 = vst.msk [vmem:[#allocation4 + $0x8] sm:$0xff] %vm1364, %v2056
        %2062 = vrot.lane.b32.xlu0 %v1942, 96
        %v2063 = vpop.permute.xlu0 %2062
        %2065 = vrot.lane.b32.xlu0 %v1943, 96
        %v2066 = vpop.permute.xlu0 %2065
        %v2068 = vsel %vm1364, %v2063, 0
        %v2071 = vsel %vm1364, %v2066, 0
        %2073 = vmatprep.subr.bf16.mxu0 0
        %2074 = vmatpush1.bf16.xpose.msra.mxu0 0
        %2075 = vmatprep.subr.bf16.mxu0 0
        %2076 = vmatpush1.bf16.xpose.msra.mxu0 0
        %2077 = vmatprep.subr.bf16.mxu0 0
        %2078 = vmatpush1.bf16.xpose.msra.mxu0 0
        %2079 = vmatprep.subr.bf16.mxu0 0
        %2080 = vmatpush1.bf16.xpose.msra.mxu0 0
        %2081 = vmatprep.subr.bf16.mxu0 0
        %2082 = vmatpush1.bf16.xpose.msra.mxu0 0
        %2083 = vmatprep.subr.bf16.mxu0 0
        %2084 = vmatpush1.bf16.xpose.msra.mxu0 0
        %2085 = vmatprep.subr.bf16.mxu0 0
        %2086 = vmatpush1.bf16.xpose.msra.mxu0 0
        %2087 = vmatprep.subr.bf16.mxu0 0
        %2088 = vmatpush1.bf16.xpose.msra.mxu0 %v2071
        %2089 = vmatprep.subr.bf16.mxu0 0
        %2090 = vmatpush2.bf16.xpose.msra.mxu0 0
        %2091 = vmatprep.subr.bf16.mxu0 0
        %2092 = vmatpush2.bf16.xpose.msra.mxu0 0
        %2093 = vmatprep.subr.bf16.mxu0 0
        %2094 = vmatpush2.bf16.xpose.msra.mxu0 0
        %2095 = vmatprep.subr.bf16.mxu0 0
        %2096 = vmatpush2.bf16.xpose.msra.mxu0 0
        %2097 = vmatprep.subr.bf16.mxu0 0
        %2098 = vmatpush2.bf16.xpose.msra.mxu0 0
        %2099 = vmatprep.subr.bf16.mxu0 0
        %2100 = vmatpush2.bf16.xpose.msra.mxu0 0
        %2101 = vmatprep.subr.bf16.mxu0 0
        %2102 = vmatpush2.bf16.xpose.msra.mxu0 0
        %2103 = vmatprep.subr.bf16.mxu0 0
        %2104 = vmatpush2.bf16.xpose.msra.mxu0 0
        %2105 = vmatprep.mubr.bf16.mxu0 0
        %2106 = vmatmul.mubr.bf16.gmra.mxu0 %v2068
        %v2107 = vpop.f32.mrf.mxu0
        %v2108 = vadd.f32 %v1908, %v2107
        %v2109 = vpop.f32.mrf.mxu0
        %v2110 = vpop.f32.mrf.mxu0
        %v2111 = vadd.f32 %v1909, %v2110
        %v2112 = vpop.f32.mrf.mxu0
        %2113 = vdwg.mxu0
        %v2114 = vsel %vm1275, %v2108, -inf
        %2115 = vmax.xlane.f32.xlu0 %v2114
        %v2116 = vpop.xlane.xlu0 %2115
        %v2117 = vsel %vm1275, %v2111, -inf
        %2118 = vmax.xlane.f32.xlu0 %v2117
        %v2119 = vpop.xlane.xlu0 %2118
        %v2120 = vsub.f32 %v2108, %v2116
        %v2121 = vsub.f32 %v2111, %v2119
        %v2122 = vmul.f32 %v2120, 1.442695
        %v2123 = vpow.pop %v2122
        %v2124 = vmul.f32 %v2121, 1.442695
        %v2125 = vpow.pop %v2124
        %v2126 = vsel %vm1275, %v2123, 0.0
        %2127 = vadd.xlane.f32.xlu0 %v2126
        %v2128 = vpop.xlane.xlu0 %2127
        %v2129 = vsel %vm1275, %v2125, 0.0
        %2130 = vadd.xlane.f32.xlu0 %v2129
        %v2131 = vpop.xlane.xlu0 %2130
        %v2132 = vrcp.pop %v2128
        %v2133 = vrcp.pop %v2131
        %v2134 = vmul.f32 %v2123, %v2132
        %v2135 = vmul.f32 %v2125, %v2133
        %v2136 = vpack.c.bf16 %v2135, %v2134
        %2138 = vrot.lane.b32.xlu0 %v2014, 96
        %v2139 = vpop.permute.xlu0 %2138
        %v2142 = vsel %vm1275, %v2136, 0
        %2144 = vmatprep.subr.bf16.mxu0 0
        %2145 = vmatpush1.bf16.msra.mxu0 0
        %2146 = vmatprep.subr.bf16.mxu0 0
        %2147 = vmatpush1.bf16.msra.mxu0 0
        %2148 = vmatprep.subr.bf16.mxu0 0
        %2149 = vmatpush1.bf16.msra.mxu0 0
        %2150 = vmatprep.subr.bf16.mxu0 0
        %2151 = vmatpush1.bf16.msra.mxu0 0
        %2152 = vmatprep.subr.bf16.mxu0 0
        %2153 = vmatpush1.bf16.msra.mxu0 0
        %2154 = vmatprep.subr.bf16.mxu0 0
        %2155 = vmatpush1.bf16.msra.mxu0 0
        %2156 = vmatprep.subr.bf16.mxu0 0
        %2157 = vmatpush1.bf16.msra.mxu0 0
        %2158 = vmatprep.subr.bf16.mxu0 0
        %2159 = vmatpush1.bf16.msra.mxu0 %v2139
        %2160 = vmatprep.subr.bf16.mxu0 0
        %2161 = vmatpush2.bf16.msra.mxu0 0
        %2162 = vmatprep.subr.bf16.mxu0 0
        %2163 = vmatpush2.bf16.msra.mxu0 0
        %2164 = vmatprep.subr.bf16.mxu0 0
        %2165 = vmatpush2.bf16.msra.mxu0 0
        %2166 = vmatprep.subr.bf16.mxu0 0
        %2167 = vmatpush2.bf16.msra.mxu0 0
        %2168 = vmatprep.subr.bf16.mxu0 0
        %2169 = vmatpush2.bf16.msra.mxu0 0
        %2170 = vmatprep.subr.bf16.mxu0 0
        %2171 = vmatpush2.bf16.msra.mxu0 0
        %2172 = vmatprep.subr.bf16.mxu0 0
        %2173 = vmatpush2.bf16.msra.mxu0 0
        %2174 = vmatprep.subr.bf16.mxu0 0
        %2175 = vmatpush2.bf16.msra.mxu0 0
        %2176 = vmatprep.mubr.bf16.mxu0 0
        %2177 = vmatmul.mubr.bf16.gmra.mxu0 %v2142
        %v2178 = vpop.f32.mrf.mxu0
        %v2179 = vadd.f32 0.0, %v2178
        %v2180 = vpop.f32.mrf.mxu0
        %v2181 = vpop.f32.mrf.mxu0
        %v2182 = vadd.f32 0.0, %v2181
        %v2183 = vpop.f32.mrf.mxu0
        %2184 = vdwg.mxu0
        %2187 = vrot.lane.b32.xlu0 %v2179, 32
        %v2188 = vpop.permute.xlu0 %2187
        %2189 = vrot.lane.b32.xlu0 %v2182, 32
        %v2190 = vpop.permute.xlu0 %2189
        %vm2193 = vcmask 523520
        %2194 = vst.msk [vmem:[#allocation4] sm:$0xff] %vm2193, %v2188
        %2195 = vst.msk [vmem:[#allocation4 + $0x8] sm:$0xff] %vm2193, %v2190
        %2196 = vrot.lane.b32.xlu0 %v1942, 64
        %v2197 = vpop.permute.xlu0 %2196
        %2198 = vrot.lane.b32.xlu0 %v1943, 64
        %v2199 = vpop.permute.xlu0 %2198
        %v2201 = vsel %vm1364, %v2197, 0
        %v2204 = vsel %vm1364, %v2199, 0
        %2206 = vmatprep.subr.bf16.mxu0 0
        %2207 = vmatpush1.bf16.xpose.msra.mxu0 0
        %2208 = vmatprep.subr.bf16.mxu0 0
        %2209 = vmatpush1.bf16.xpose.msra.mxu0 0
        %2210 = vmatprep.subr.bf16.mxu0 0
        %2211 = vmatpush1.bf16.xpose.msra.mxu0 0
        %2212 = vmatprep.subr.bf16.mxu0 0
        %2213 = vmatpush1.bf16.xpose.msra.mxu0 0
        %2214 = vmatprep.subr.bf16.mxu0 0
        %2215 = vmatpush1.bf16.xpose.msra.mxu0 0
        %2216 = vmatprep.subr.bf16.mxu0 0
        %2217 = vmatpush1.bf16.xpose.msra.mxu0 0
        %2218 = vmatprep.subr.bf16.mxu0 0
        %2219 = vmatpush1.bf16.xpose.msra.mxu0 0
        %2220 = vmatprep.subr.bf16.mxu0 0
        %2221 = vmatpush1.bf16.xpose.msra.mxu0 %v2204
        %2222 = vmatprep.subr.bf16.mxu0 0
        %2223 = vmatpush2.bf16.xpose.msra.mxu0 0
        %2224 = vmatprep.subr.bf16.mxu0 0
        %2225 = vmatpush2.bf16.xpose.msra.mxu0 0
        %2226 = vmatprep.subr.bf16.mxu0 0
        %2227 = vmatpush2.bf16.xpose.msra.mxu0 0
        %2228 = vmatprep.subr.bf16.mxu0 0
        %2229 = vmatpush2.bf16.xpose.msra.mxu0 0
        %2230 = vmatprep.subr.bf16.mxu0 0
        %2231 = vmatpush2.bf16.xpose.msra.mxu0 0
        %2232 = vmatprep.subr.bf16.mxu0 0
        %2233 = vmatpush2.bf16.xpose.msra.mxu0 0
        %2234 = vmatprep.subr.bf16.mxu0 0
        %2235 = vmatpush2.bf16.xpose.msra.mxu0 0
        %2236 = vmatprep.subr.bf16.mxu0 0
        %2237 = vmatpush2.bf16.xpose.msra.mxu0 0
        %2238 = vmatprep.mubr.bf16.mxu0 0
        %2239 = vmatmul.mubr.bf16.gmra.mxu0 %v2201
        %v2240 = vpop.f32.mrf.mxu0
        %v2241 = vadd.f32 %v1908, %v2240
        %v2242 = vpop.f32.mrf.mxu0
        %v2243 = vpop.f32.mrf.mxu0
        %v2244 = vadd.f32 %v1909, %v2243
        %v2245 = vpop.f32.mrf.mxu0
        %2246 = vdwg.mxu0
        %v2247 = vsel %vm1275, %v2241, -inf
        %2248 = vmax.xlane.f32.xlu0 %v2247
        %v2249 = vpop.xlane.xlu0 %2248
        %v2250 = vsel %vm1275, %v2244, -inf
        %2251 = vmax.xlane.f32.xlu0 %v2250
        %v2252 = vpop.xlane.xlu0 %2251
        %v2253 = vsub.f32 %v2241, %v2249
        %v2254 = vsub.f32 %v2244, %v2252
        %v2255 = vmul.f32 %v2253, 1.442695
        %v2256 = vpow.pop %v2255
        %v2257 = vmul.f32 %v2254, 1.442695
        %v2258 = vpow.pop %v2257
        %v2259 = vsel %vm1275, %v2256, 0.0
        %2260 = vadd.xlane.f32.xlu0 %v2259
        %v2261 = vpop.xlane.xlu0 %2260
        %v2262 = vsel %vm1275, %v2258, 0.0
        %2263 = vadd.xlane.f32.xlu0 %v2262
        %v2264 = vpop.xlane.xlu0 %2263
        %v2265 = vrcp.pop %v2261
        %v2266 = vrcp.pop %v2264
        %v2267 = vmul.f32 %v2256, %v2265
        %v2268 = vmul.f32 %v2258, %v2266
        %v2269 = vpack.c.bf16 %v2268, %v2267
        %2270 = vrot.lane.b32.xlu0 %v2014, 64
        %v2271 = vpop.permute.xlu0 %2270
        %v2274 = vsel %vm1275, %v2269, 0
        %2276 = vmatprep.subr.bf16.mxu0 0
        %2277 = vmatpush1.bf16.msra.mxu0 0
        %2278 = vmatprep.subr.bf16.mxu0 0
        %2279 = vmatpush1.bf16.msra.mxu0 0
        %2280 = vmatprep.subr.bf16.mxu0 0
        %2281 = vmatpush1.bf16.msra.mxu0 0
        %2282 = vmatprep.subr.bf16.mxu0 0
        %2283 = vmatpush1.bf16.msra.mxu0 0
        %2284 = vmatprep.subr.bf16.mxu0 0
        %2285 = vmatpush1.bf16.msra.mxu0 0
        %2286 = vmatprep.subr.bf16.mxu0 0
        %2287 = vmatpush1.bf16.msra.mxu0 0
        %2288 = vmatprep.subr.bf16.mxu0 0
        %2289 = vmatpush1.bf16.msra.mxu0 0
        %2290 = vmatprep.subr.bf16.mxu0 0
        %2291 = vmatpush1.bf16.msra.mxu0 %v2271
        %2292 = vmatprep.subr.bf16.mxu0 0
        %2293 = vmatpush2.bf16.msra.mxu0 0
        %2294 = vmatprep.subr.bf16.mxu0 0
        %2295 = vmatpush2.bf16.msra.mxu0 0
        %2296 = vmatprep.subr.bf16.mxu0 0
        %2297 = vmatpush2.bf16.msra.mxu0 0
        %2298 = vmatprep.subr.bf16.mxu0 0
        %2299 = vmatpush2.bf16.msra.mxu0 0
        %2300 = vmatprep.subr.bf16.mxu0 0
        %2301 = vmatpush2.bf16.msra.mxu0 0
        %2302 = vmatprep.subr.bf16.mxu0 0
        %2303 = vmatpush2.bf16.msra.mxu0 0
        %2304 = vmatprep.subr.bf16.mxu0 0
        %2305 = vmatpush2.bf16.msra.mxu0 0
        %2306 = vmatprep.subr.bf16.mxu0 0
        %2307 = vmatpush2.bf16.msra.mxu0 0
        %2308 = vmatprep.mubr.bf16.mxu0 0
        %2309 = vmatmul.mubr.bf16.gmra.mxu0 %v2274
        %v2310 = vpop.f32.mrf.mxu0
        %v2311 = vadd.f32 0.0, %v2310
        %v2312 = vpop.f32.mrf.mxu0
        %v2313 = vpop.f32.mrf.mxu0
        %v2314 = vadd.f32 0.0, %v2313
        %v2315 = vpop.f32.mrf.mxu0
        %2316 = vdwg.mxu0
        %2319 = vrot.lane.b32.xlu0 %v2311, 64
        %v2320 = vpop.permute.xlu0 %2319
        %2321 = vrot.lane.b32.xlu0 %v2314, 64
        %v2322 = vpop.permute.xlu0 %2321
        %vm2325 = vcmask 785920
        %2326 = vst.msk [vmem:[#allocation4] sm:$0xff] %vm2325, %v2320
        %2327 = vst.msk [vmem:[#allocation4 + $0x8] sm:$0xff] %vm2325, %v2322
        %2328 = vrot.lane.b32.xlu0 %v1942, 32
        %v2329 = vpop.permute.xlu0 %2328
        %2330 = vrot.lane.b32.xlu0 %v1943, 32
        %v2331 = vpop.permute.xlu0 %2330
        %v2333 = vsel %vm1364, %v2329, 0
        %v2336 = vsel %vm1364, %v2331, 0
        %2338 = vmatprep.subr.bf16.mxu0 0
        %2339 = vmatpush1.bf16.xpose.msra.mxu0 0
        %2340 = vmatprep.subr.bf16.mxu0 0
        %2341 = vmatpush1.bf16.xpose.msra.mxu0 0
        %2342 = vmatprep.subr.bf16.mxu0 0
        %2343 = vmatpush1.bf16.xpose.msra.mxu0 0
        %2344 = vmatprep.subr.bf16.mxu0 0
        %2345 = vmatpush1.bf16.xpose.msra.mxu0 0
        %2346 = vmatprep.subr.bf16.mxu0 0
        %2347 = vmatpush1.bf16.xpose.msra.mxu0 0
        %2348 = vmatprep.subr.bf16.mxu0 0
        %2349 = vmatpush1.bf16.xpose.msra.mxu0 0
        %2350 = vmatprep.subr.bf16.mxu0 0
        %2351 = vmatpush1.bf16.xpose.msra.mxu0 0
        %2352 = vmatprep.subr.bf16.mxu0 0
        %2353 = vmatpush1.bf16.xpose.msra.mxu0 %v2336
        %2354 = vmatprep.subr.bf16.mxu0 0
        %2355 = vmatpush2.bf16.xpose.msra.mxu0 0
        %2356 = vmatprep.subr.bf16.mxu0 0
        %2357 = vmatpush2.bf16.xpose.msra.mxu0 0
        %2358 = vmatprep.subr.bf16.mxu0 0
        %2359 = vmatpush2.bf16.xpose.msra.mxu0 0
        %2360 = vmatprep.subr.bf16.mxu0 0
        %2361 = vmatpush2.bf16.xpose.msra.mxu0 0
        %2362 = vmatprep.subr.bf16.mxu0 0
        %2363 = vmatpush2.bf16.xpose.msra.mxu0 0
        %2364 = vmatprep.subr.bf16.mxu0 0
        %2365 = vmatpush2.bf16.xpose.msra.mxu0 0
        %2366 = vmatprep.subr.bf16.mxu0 0
        %2367 = vmatpush2.bf16.xpose.msra.mxu0 0
        %2368 = vmatprep.subr.bf16.mxu0 0
        %2369 = vmatpush2.bf16.xpose.msra.mxu0 0
        %2370 = vmatprep.mubr.bf16.mxu0 0
        %2371 = vmatmul.mubr.bf16.gmra.mxu0 %v2333
        %v2372 = vpop.f32.mrf.mxu0
        %v2373 = vadd.f32 %v1908, %v2372
        %v2374 = vpop.f32.mrf.mxu0
        %v2375 = vpop.f32.mrf.mxu0
        %v2376 = vadd.f32 %v1909, %v2375
        %v2377 = vpop.f32.mrf.mxu0
        %2378 = vdwg.mxu0
        %v2379 = vsel %vm1275, %v2373, -inf
        %2380 = vmax.xlane.f32.xlu0 %v2379
        %v2381 = vpop.xlane.xlu0 %2380
        %v2382 = vsel %vm1275, %v2376, -inf
        %2383 = vmax.xlane.f32.xlu0 %v2382
        %v2384 = vpop.xlane.xlu0 %2383
        %v2385 = vsub.f32 %v2373, %v2381
        %v2386 = vsub.f32 %v2376, %v2384
        %v2387 = vmul.f32 %v2385, 1.442695
        %v2388 = vpow.pop %v2387
        %v2389 = vmul.f32 %v2386, 1.442695
        %v2390 = vpow.pop %v2389
        %v2391 = vsel %vm1275, %v2388, 0.0
        %2392 = vadd.xlane.f32.xlu0 %v2391
        %v2393 = vpop.xlane.xlu0 %2392
        %v2394 = vsel %vm1275, %v2390, 0.0
        %2395 = vadd.xlane.f32.xlu0 %v2394
        %v2396 = vpop.xlane.xlu0 %2395
        %v2397 = vrcp.pop %v2393
        %v2398 = vrcp.pop %v2396
        %v2399 = vmul.f32 %v2388, %v2397
        %v2400 = vmul.f32 %v2390, %v2398
        %v2401 = vpack.c.bf16 %v2400, %v2399
        %2402 = vrot.lane.b32.xlu0 %v2014, 32
        %v2403 = vpop.permute.xlu0 %2402
        %v2406 = vsel %vm1275, %v2401, 0
        %2408 = vmatprep.subr.bf16.mxu0 0
        %2409 = vmatpush1.bf16.msra.mxu0 0
        %2410 = vmatprep.subr.bf16.mxu0 0
        %2411 = vmatpush1.bf16.msra.mxu0 0
        %2412 = vmatprep.subr.bf16.mxu0 0
        %2413 = vmatpush1.bf16.msra.mxu0 0
        %2414 = vmatprep.subr.bf16.mxu0 0
        %2415 = vmatpush1.bf16.msra.mxu0 0
        %2416 = vmatprep.subr.bf16.mxu0 0
        %2417 = vmatpush1.bf16.msra.mxu0 0
        %2418 = vmatprep.subr.bf16.mxu0 0
        %2419 = vmatpush1.bf16.msra.mxu0 0
        %2420 = vmatprep.subr.bf16.mxu0 0
        %2421 = vmatpush1.bf16.msra.mxu0 0
        %2422 = vmatprep.subr.bf16.mxu0 0
        %2423 = vmatpush1.bf16.msra.mxu0 %v2403
        %2424 = vmatprep.subr.bf16.mxu0 0
        %2425 = vmatpush2.bf16.msra.mxu0 0
        %2426 = vmatprep.subr.bf16.mxu0 0
        %2427 = vmatpush2.bf16.msra.mxu0 0
        %2428 = vmatprep.subr.bf16.mxu0 0
        %2429 = vmatpush2.bf16.msra.mxu0 0
        %2430 = vmatprep.subr.bf16.mxu0 0
        %2431 = vmatpush2.bf16.msra.mxu0 0
        %2432 = vmatprep.subr.bf16.mxu0 0
        %2433 = vmatpush2.bf16.msra.mxu0 0
        %2434 = vmatprep.subr.bf16.mxu0 0
        %2435 = vmatpush2.bf16.msra.mxu0 0
        %2436 = vmatprep.subr.bf16.mxu0 0
        %2437 = vmatpush2.bf16.msra.mxu0 0
        %2438 = vmatprep.subr.bf16.mxu0 0
        %2439 = vmatpush2.bf16.msra.mxu0 0
        %2440 = vmatprep.mubr.bf16.mxu0 0
        %2441 = vmatmul.mubr.bf16.gmra.mxu0 %v2406
        %v2442 = vpop.f32.mrf.mxu0
        %v2443 = vadd.f32 0.0, %v2442
        %v2444 = vpop.f32.mrf.mxu0
        %v2445 = vpop.f32.mrf.mxu0
        %v2446 = vadd.f32 0.0, %v2445
        %v2447 = vpop.f32.mrf.mxu0
        %2448 = vdwg.mxu0
        %2451 = vrot.lane.b32.xlu0 %v2443, 96
        %v2452 = vpop.permute.xlu0 %2451
        %2453 = vrot.lane.b32.xlu0 %v2446, 96
        %v2454 = vpop.permute.xlu0 %2453
        %vm2457 = vcmask 1048320
        %2458 = vst.msk [vmem:[#allocation4] sm:$0xff] %vm2457, %v2452
        %2459 = vst.msk [vmem:[#allocation4 + $0x8] sm:$0xff] %vm2457, %v2454
        %v2460 = vpack.c.bf16 %v1840, %v1836
        %v2461 = vpack.c.bf16 %v1832, %v1828
        %v2463 = vsel %vm1364, %v2460, 0
        %v2466 = vsel %vm1364, %v2461, 0
        %2468 = vmatprep.subr.bf16.mxu0 0
        %2469 = vmatpush1.bf16.xpose.msra.mxu0 0
        %2470 = vmatprep.subr.bf16.mxu0 0
        %2471 = vmatpush1.bf16.xpose.msra.mxu0 0
        %2472 = vmatprep.subr.bf16.mxu0 0
        %2473 = vmatpush1.bf16.xpose.msra.mxu0 0
        %2474 = vmatprep.subr.bf16.mxu0 0
        %2475 = vmatpush1.bf16.xpose.msra.mxu0 0
        %2476 = vmatprep.subr.bf16.mxu0 0
        %2477 = vmatpush1.bf16.xpose.msra.mxu0 0
        %2478 = vmatprep.subr.bf16.mxu0 0
        %2479 = vmatpush1.bf16.xpose.msra.mxu0 0
        %2480 = vmatprep.subr.bf16.mxu0 0
        %2481 = vmatpush1.bf16.xpose.msra.mxu0 0
        %2482 = vmatprep.subr.bf16.mxu0 0
        %2483 = vmatpush1.bf16.xpose.msra.mxu0 %v2466
        %2484 = vmatprep.subr.bf16.mxu0 0
        %2485 = vmatpush2.bf16.xpose.msra.mxu0 0
        %2486 = vmatprep.subr.bf16.mxu0 0
        %2487 = vmatpush2.bf16.xpose.msra.mxu0 0
        %2488 = vmatprep.subr.bf16.mxu0 0
        %2489 = vmatpush2.bf16.xpose.msra.mxu0 0
        %2490 = vmatprep.subr.bf16.mxu0 0
        %2491 = vmatpush2.bf16.xpose.msra.mxu0 0
        %2492 = vmatprep.subr.bf16.mxu0 0
        %2493 = vmatpush2.bf16.xpose.msra.mxu0 0
        %2494 = vmatprep.subr.bf16.mxu0 0
        %2495 = vmatpush2.bf16.xpose.msra.mxu0 0
        %2496 = vmatprep.subr.bf16.mxu0 0
        %2497 = vmatpush2.bf16.xpose.msra.mxu0 0
        %2498 = vmatprep.subr.bf16.mxu0 0
        %2499 = vmatpush2.bf16.xpose.msra.mxu0 0
        %2500 = vmatprep.mubr.bf16.mxu0 0
        %2501 = vmatmul.mubr.bf16.gmra.mxu0 %v2463
        %v2502 = vpop.f32.mrf.mxu0
        %v2503 = vadd.f32 %v1926, %v2502
        %v2504 = vpop.f32.mrf.mxu0
        %v2505 = vpop.f32.mrf.mxu0
        %v2506 = vadd.f32 %v1927, %v2505
        %v2507 = vpop.f32.mrf.mxu0
        %2508 = vdwg.mxu0
        %v2509 = vsel %vm1275, %v2503, -inf
        %2510 = vmax.xlane.f32.xlu0 %v2509
        %v2511 = vpop.xlane.xlu0 %2510
        %v2512 = vsel %vm1275, %v2506, -inf
        %2513 = vmax.xlane.f32.xlu0 %v2512
        %v2514 = vpop.xlane.xlu0 %2513
        %v2515 = vsub.f32 %v2503, %v2511
        %v2516 = vsub.f32 %v2506, %v2514
        %v2517 = vmul.f32 %v2515, 1.442695
        %v2518 = vpow.pop %v2517
        %v2519 = vmul.f32 %v2516, 1.442695
        %v2520 = vpow.pop %v2519
        %v2521 = vsel %vm1275, %v2518, 0.0
        %2522 = vadd.xlane.f32.xlu0 %v2521
        %v2523 = vpop.xlane.xlu0 %2522
        %v2524 = vsel %vm1275, %v2520, 0.0
        %2525 = vadd.xlane.f32.xlu0 %v2524
        %v2526 = vpop.xlane.xlu0 %2525
        %v2527 = vrcp.pop %v2523
        %v2528 = vrcp.pop %v2526
        %v2529 = vmul.f32 %v2518, %v2527
        %v2530 = vmul.f32 %v2520, %v2528
        %v2531 = vpack.c.bf16 %v2530, %v2529
        %v2532 = vpack.c.bf16 %v1882, %v1879
        %v2534 = vsel %vm1275, %v2531, 0
        %2536 = vmatprep.subr.bf16.mxu0 0
        %2537 = vmatpush1.bf16.msra.mxu0 0
        %2538 = vmatprep.subr.bf16.mxu0 0
        %2539 = vmatpush1.bf16.msra.mxu0 0
        %2540 = vmatprep.subr.bf16.mxu0 0
        %2541 = vmatpush1.bf16.msra.mxu0 0
        %2542 = vmatprep.subr.bf16.mxu0 0
        %2543 = vmatpush1.bf16.msra.mxu0 0
        %2544 = vmatprep.subr.bf16.mxu0 0
        %2545 = vmatpush1.bf16.msra.mxu0 0
        %2546 = vmatprep.subr.bf16.mxu0 0
        %2547 = vmatpush1.bf16.msra.mxu0 0
        %2548 = vmatprep.subr.bf16.mxu0 0
        %2549 = vmatpush1.bf16.msra.mxu0 0
        %2550 = vmatprep.subr.bf16.mxu0 0
        %2551 = vmatpush1.bf16.msra.mxu0 %v2532
        %2552 = vmatprep.subr.bf16.mxu0 0
        %2553 = vmatpush2.bf16.msra.mxu0 0
        %2554 = vmatprep.subr.bf16.mxu0 0
        %2555 = vmatpush2.bf16.msra.mxu0 0
        %2556 = vmatprep.subr.bf16.mxu0 0
        %2557 = vmatpush2.bf16.msra.mxu0 0
        %2558 = vmatprep.subr.bf16.mxu0 0
        %2559 = vmatpush2.bf16.msra.mxu0 0
        %2560 = vmatprep.subr.bf16.mxu0 0
        %2561 = vmatpush2.bf16.msra.mxu0 0
        %2562 = vmatprep.subr.bf16.mxu0 0
        %2563 = vmatpush2.bf16.msra.mxu0 0
        %2564 = vmatprep.subr.bf16.mxu0 0
        %2565 = vmatpush2.bf16.msra.mxu0 0
        %2566 = vmatprep.subr.bf16.mxu0 0
        %2567 = vmatpush2.bf16.msra.mxu0 0
        %2568 = vmatprep.mubr.bf16.mxu0 0
        %2569 = vmatmul.mubr.bf16.gmra.mxu0 %v2534
        %v2570 = vpop.f32.mrf.mxu0
        %v2571 = vadd.f32 0.0, %v2570
        %v2572 = vpop.f32.mrf.mxu0
        %v2573 = vpop.f32.mrf.mxu0
        %v2574 = vadd.f32 0.0, %v2573
        %v2575 = vpop.f32.mrf.mxu0
        %2576 = vdwg.mxu0
        %2577 = vst.msk [vmem:[#allocation4 + $0x10] sm:$0xff] %vm1364, %v2571
        %2578 = vst.msk [vmem:[#allocation4 + $0x18] sm:$0xff] %vm1364, %v2574
        %2580 = vrot.lane.b32.xlu0 %v2460, 96
        %v2581 = vpop.permute.xlu0 %2580
        %2583 = vrot.lane.b32.xlu0 %v2461, 96
        %v2584 = vpop.permute.xlu0 %2583
        %v2586 = vsel %vm1364, %v2581, 0
        %v2589 = vsel %vm1364, %v2584, 0
        %2591 = vmatprep.subr.bf16.mxu0 0
        %2592 = vmatpush1.bf16.xpose.msra.mxu0 0
        %2593 = vmatprep.subr.bf16.mxu0 0
        %2594 = vmatpush1.bf16.xpose.msra.mxu0 0
        %2595 = vmatprep.subr.bf16.mxu0 0
        %2596 = vmatpush1.bf16.xpose.msra.mxu0 0
        %2597 = vmatprep.subr.bf16.mxu0 0
        %2598 = vmatpush1.bf16.xpose.msra.mxu0 0
        %2599 = vmatprep.subr.bf16.mxu0 0
        %2600 = vmatpush1.bf16.xpose.msra.mxu0 0
        %2601 = vmatprep.subr.bf16.mxu0 0
        %2602 = vmatpush1.bf16.xpose.msra.mxu0 0
        %2603 = vmatprep.subr.bf16.mxu0 0
        %2604 = vmatpush1.bf16.xpose.msra.mxu0 0
        %2605 = vmatprep.subr.bf16.mxu0 0
        %2606 = vmatpush1.bf16.xpose.msra.mxu0 %v2589
        %2607 = vmatprep.subr.bf16.mxu0 0
        %2608 = vmatpush2.bf16.xpose.msra.mxu0 0
        %2609 = vmatprep.subr.bf16.mxu0 0
        %2610 = vmatpush2.bf16.xpose.msra.mxu0 0
        %2611 = vmatprep.subr.bf16.mxu0 0
        %2612 = vmatpush2.bf16.xpose.msra.mxu0 0
        %2613 = vmatprep.subr.bf16.mxu0 0
        %2614 = vmatpush2.bf16.xpose.msra.mxu0 0
        %2615 = vmatprep.subr.bf16.mxu0 0
        %2616 = vmatpush2.bf16.xpose.msra.mxu0 0
        %2617 = vmatprep.subr.bf16.mxu0 0
        %2618 = vmatpush2.bf16.xpose.msra.mxu0 0
        %2619 = vmatprep.subr.bf16.mxu0 0
        %2620 = vmatpush2.bf16.xpose.msra.mxu0 0
        %2621 = vmatprep.subr.bf16.mxu0 0
        %2622 = vmatpush2.bf16.xpose.msra.mxu0 0
        %2623 = vmatprep.mubr.bf16.mxu0 0
        %2624 = vmatmul.mubr.bf16.gmra.mxu0 %v2586
        %v2625 = vpop.f32.mrf.mxu0
        %v2626 = vadd.f32 %v1926, %v2625
        %v2627 = vpop.f32.mrf.mxu0
        %v2628 = vpop.f32.mrf.mxu0
        %v2629 = vadd.f32 %v1927, %v2628
        %v2630 = vpop.f32.mrf.mxu0
        %2631 = vdwg.mxu0
        %v2632 = vsel %vm1275, %v2626, -inf
        %2633 = vmax.xlane.f32.xlu0 %v2632
        %v2634 = vpop.xlane.xlu0 %2633
        %v2635 = vsel %vm1275, %v2629, -inf
        %2636 = vmax.xlane.f32.xlu0 %v2635
        %v2637 = vpop.xlane.xlu0 %2636
        %v2638 = vsub.f32 %v2626, %v2634
        %v2639 = vsub.f32 %v2629, %v2637
        %v2640 = vmul.f32 %v2638, 1.442695
        %v2641 = vpow.pop %v2640
        %v2642 = vmul.f32 %v2639, 1.442695
        %v2643 = vpow.pop %v2642
        %v2644 = vsel %vm1275, %v2641, 0.0
        %2645 = vadd.xlane.f32.xlu0 %v2644
        %v2646 = vpop.xlane.xlu0 %2645
        %v2647 = vsel %vm1275, %v2643, 0.0
        %2648 = vadd.xlane.f32.xlu0 %v2647
        %v2649 = vpop.xlane.xlu0 %2648
        %v2650 = vrcp.pop %v2646
        %v2651 = vrcp.pop %v2649
        %v2652 = vmul.f32 %v2641, %v2650
        %v2653 = vmul.f32 %v2643, %v2651
        %v2654 = vpack.c.bf16 %v2653, %v2652
        %2656 = vrot.lane.b32.xlu0 %v2532, 96
        %v2657 = vpop.permute.xlu0 %2656
        %v2660 = vsel %vm1275, %v2654, 0
        %2662 = vmatprep.subr.bf16.mxu0 0
        %2663 = vmatpush1.bf16.msra.mxu0 0
        %2664 = vmatprep.subr.bf16.mxu0 0
        %2665 = vmatpush1.bf16.msra.mxu0 0
        %2666 = vmatprep.subr.bf16.mxu0 0
        %2667 = vmatpush1.bf16.msra.mxu0 0
        %2668 = vmatprep.subr.bf16.mxu0 0
        %2669 = vmatpush1.bf16.msra.mxu0 0
        %2670 = vmatprep.subr.bf16.mxu0 0
        %2671 = vmatpush1.bf16.msra.mxu0 0
        %2672 = vmatprep.subr.bf16.mxu0 0
        %2673 = vmatpush1.bf16.msra.mxu0 0
        %2674 = vmatprep.subr.bf16.mxu0 0
        %2675 = vmatpush1.bf16.msra.mxu0 0
        %2676 = vmatprep.subr.bf16.mxu0 0
        %2677 = vmatpush1.bf16.msra.mxu0 %v2657
        %2678 = vmatprep.subr.bf16.mxu0 0
        %2679 = vmatpush2.bf16.msra.mxu0 0
        %2680 = vmatprep.subr.bf16.mxu0 0
        %2681 = vmatpush2.bf16.msra.mxu0 0
        %2682 = vmatprep.subr.bf16.mxu0 0
        %2683 = vmatpush2.bf16.msra.mxu0 0
        %2684 = vmatprep.subr.bf16.mxu0 0
        %2685 = vmatpush2.bf16.msra.mxu0 0
        %2686 = vmatprep.subr.bf16.mxu0 0
        %2687 = vmatpush2.bf16.msra.mxu0 0
        %2688 = vmatprep.subr.bf16.mxu0 0
        %2689 = vmatpush2.bf16.msra.mxu0 0
        %2690 = vmatprep.subr.bf16.mxu0 0
        %2691 = vmatpush2.bf16.msra.mxu0 0
        %2692 = vmatprep.subr.bf16.mxu0 0
        %2693 = vmatpush2.bf16.msra.mxu0 0
        %2694 = vmatprep.mubr.bf16.mxu0 0
        %2695 = vmatmul.mubr.bf16.gmra.mxu0 %v2660
        %v2696 = vpop.f32.mrf.mxu0
        %v2697 = vadd.f32 0.0, %v2696
        %v2698 = vpop.f32.mrf.mxu0
        %v2699 = vpop.f32.mrf.mxu0
        %v2700 = vadd.f32 0.0, %v2699
        %v2701 = vpop.f32.mrf.mxu0
        %2702 = vdwg.mxu0
        %2705 = vrot.lane.b32.xlu0 %v2697, 32
        %v2706 = vpop.permute.xlu0 %2705
        %2707 = vrot.lane.b32.xlu0 %v2700, 32
        %v2708 = vpop.permute.xlu0 %2707
        %2711 = vst.msk [vmem:[#allocation4 + $0x10] sm:$0xff] %vm2193, %v2706
        %2712 = vst.msk [vmem:[#allocation4 + $0x18] sm:$0xff] %vm2193, %v2708
        %2713 = vrot.lane.b32.xlu0 %v2460, 64
        %v2714 = vpop.permute.xlu0 %2713
        %2715 = vrot.lane.b32.xlu0 %v2461, 64
        %v2716 = vpop.permute.xlu0 %2715
        %v2718 = vsel %vm1364, %v2714, 0
        %v2721 = vsel %vm1364, %v2716, 0
        %2723 = vmatprep.subr.bf16.mxu0 0
        %2724 = vmatpush1.bf16.xpose.msra.mxu0 0
        %2725 = vmatprep.subr.bf16.mxu0 0
        %2726 = vmatpush1.bf16.xpose.msra.mxu0 0
        %2727 = vmatprep.subr.bf16.mxu0 0
        %2728 = vmatpush1.bf16.xpose.msra.mxu0 0
        %2729 = vmatprep.subr.bf16.mxu0 0
        %2730 = vmatpush1.bf16.xpose.msra.mxu0 0
        %2731 = vmatprep.subr.bf16.mxu0 0
        %2732 = vmatpush1.bf16.xpose.msra.mxu0 0
        %2733 = vmatprep.subr.bf16.mxu0 0
        %2734 = vmatpush1.bf16.xpose.msra.mxu0 0
        %2735 = vmatprep.subr.bf16.mxu0 0
        %2736 = vmatpush1.bf16.xpose.msra.mxu0 0
        %2737 = vmatprep.subr.bf16.mxu0 0
        %2738 = vmatpush1.bf16.xpose.msra.mxu0 %v2721
        %2739 = vmatprep.subr.bf16.mxu0 0
        %2740 = vmatpush2.bf16.xpose.msra.mxu0 0
        %2741 = vmatprep.subr.bf16.mxu0 0
        %2742 = vmatpush2.bf16.xpose.msra.mxu0 0
        %2743 = vmatprep.subr.bf16.mxu0 0
        %2744 = vmatpush2.bf16.xpose.msra.mxu0 0
        %2745 = vmatprep.subr.bf16.mxu0 0
        %2746 = vmatpush2.bf16.xpose.msra.mxu0 0
        %2747 = vmatprep.subr.bf16.mxu0 0
        %2748 = vmatpush2.bf16.xpose.msra.mxu0 0
        %2749 = vmatprep.subr.bf16.mxu0 0
        %2750 = vmatpush2.bf16.xpose.msra.mxu0 0
        %2751 = vmatprep.subr.bf16.mxu0 0
        %2752 = vmatpush2.bf16.xpose.msra.mxu0 0
        %2753 = vmatprep.subr.bf16.mxu0 0
        %2754 = vmatpush2.bf16.xpose.msra.mxu0 0
        %2755 = vmatprep.mubr.bf16.mxu0 0
        %2756 = vmatmul.mubr.bf16.gmra.mxu0 %v2718
        %v2757 = vpop.f32.mrf.mxu0
        %v2758 = vadd.f32 %v1926, %v2757
        %v2759 = vpop.f32.mrf.mxu0
        %v2760 = vpop.f32.mrf.mxu0
        %v2761 = vadd.f32 %v1927, %v2760
        %v2762 = vpop.f32.mrf.mxu0
        %2763 = vdwg.mxu0
        %v2764 = vsel %vm1275, %v2758, -inf
        %2765 = vmax.xlane.f32.xlu0 %v2764
        %v2766 = vpop.xlane.xlu0 %2765
        %v2767 = vsel %vm1275, %v2761, -inf
        %2768 = vmax.xlane.f32.xlu0 %v2767
        %v2769 = vpop.xlane.xlu0 %2768
        %v2770 = vsub.f32 %v2758, %v2766
        %v2771 = vsub.f32 %v2761, %v2769
        %v2772 = vmul.f32 %v2770, 1.442695
        %v2773 = vpow.pop %v2772
        %v2774 = vmul.f32 %v2771, 1.442695
        %v2775 = vpow.pop %v2774
        %v2776 = vsel %vm1275, %v2773, 0.0
        %2777 = vadd.xlane.f32.xlu0 %v2776
        %v2778 = vpop.xlane.xlu0 %2777
        %v2779 = vsel %vm1275, %v2775, 0.0
        %2780 = vadd.xlane.f32.xlu0 %v2779
        %v2781 = vpop.xlane.xlu0 %2780
        %v2782 = vrcp.pop %v2778
        %v2783 = vrcp.pop %v2781
        %v2784 = vmul.f32 %v2773, %v2782
        %v2785 = vmul.f32 %v2775, %v2783
        %v2786 = vpack.c.bf16 %v2785, %v2784
        %2787 = vrot.lane.b32.xlu0 %v2532, 64
        %v2788 = vpop.permute.xlu0 %2787
        %v2791 = vsel %vm1275, %v2786, 0
        %2793 = vmatprep.subr.bf16.mxu0 0
        %2794 = vmatpush1.bf16.msra.mxu0 0
        %2795 = vmatprep.subr.bf16.mxu0 0
        %2796 = vmatpush1.bf16.msra.mxu0 0
        %2797 = vmatprep.subr.bf16.mxu0 0
        %2798 = vmatpush1.bf16.msra.mxu0 0
        %2799 = vmatprep.subr.bf16.mxu0 0
        %2800 = vmatpush1.bf16.msra.mxu0 0
        %2801 = vmatprep.subr.bf16.mxu0 0
        %2802 = vmatpush1.bf16.msra.mxu0 0
        %2803 = vmatprep.subr.bf16.mxu0 0
        %2804 = vmatpush1.bf16.msra.mxu0 0
        %2805 = vmatprep.subr.bf16.mxu0 0
        %2806 = vmatpush1.bf16.msra.mxu0 0
        %2807 = vmatprep.subr.bf16.mxu0 0
        %2808 = vmatpush1.bf16.msra.mxu0 %v2788
        %2809 = vmatprep.subr.bf16.mxu0 0
        %2810 = vmatpush2.bf16.msra.mxu0 0
        %2811 = vmatprep.subr.bf16.mxu0 0
        %2812 = vmatpush2.bf16.msra.mxu0 0
        %2813 = vmatprep.subr.bf16.mxu0 0
        %2814 = vmatpush2.bf16.msra.mxu0 0
        %2815 = vmatprep.subr.bf16.mxu0 0
        %2816 = vmatpush2.bf16.msra.mxu0 0
        %2817 = vmatprep.subr.bf16.mxu0 0
        %2818 = vmatpush2.bf16.msra.mxu0 0
        %2819 = vmatprep.subr.bf16.mxu0 0
        %2820 = vmatpush2.bf16.msra.mxu0 0
        %2821 = vmatprep.subr.bf16.mxu0 0
        %2822 = vmatpush2.bf16.msra.mxu0 0
        %2823 = vmatprep.subr.bf16.mxu0 0
        %2824 = vmatpush2.bf16.msra.mxu0 0
        %2825 = vmatprep.mubr.bf16.mxu0 0
        %2826 = vmatmul.mubr.bf16.gmra.mxu0 %v2791
        %v2827 = vpop.f32.mrf.mxu0
        %v2828 = vadd.f32 0.0, %v2827
        %v2829 = vpop.f32.mrf.mxu0
        %v2830 = vpop.f32.mrf.mxu0
        %v2831 = vadd.f32 0.0, %v2830
        %v2832 = vpop.f32.mrf.mxu0
        %2833 = vdwg.mxu0
        %2836 = vrot.lane.b32.xlu0 %v2828, 64
        %v2837 = vpop.permute.xlu0 %2836
        %2838 = vrot.lane.b32.xlu0 %v2831, 64
        %v2839 = vpop.permute.xlu0 %2838
        %2842 = vst.msk [vmem:[#allocation4 + $0x10] sm:$0xff] %vm2325, %v2837
        %2843 = vst.msk [vmem:[#allocation4 + $0x18] sm:$0xff] %vm2325, %v2839
        %2844 = vrot.lane.b32.xlu0 %v2460, 32
        %v2845 = vpop.permute.xlu0 %2844
        %2846 = vrot.lane.b32.xlu0 %v2461, 32
        %v2847 = vpop.permute.xlu0 %2846
        %v2849 = vsel %vm1364, %v2845, 0
        %v2852 = vsel %vm1364, %v2847, 0
        %2854 = vmatprep.subr.bf16.mxu0 0
        %2855 = vmatpush1.bf16.xpose.msra.mxu0 0
        %2856 = vmatprep.subr.bf16.mxu0 0
        %2857 = vmatpush1.bf16.xpose.msra.mxu0 0
        %2858 = vmatprep.subr.bf16.mxu0 0
        %2859 = vmatpush1.bf16.xpose.msra.mxu0 0
        %2860 = vmatprep.subr.bf16.mxu0 0
        %2861 = vmatpush1.bf16.xpose.msra.mxu0 0
        %2862 = vmatprep.subr.bf16.mxu0 0
        %2863 = vmatpush1.bf16.xpose.msra.mxu0 0
        %2864 = vmatprep.subr.bf16.mxu0 0
        %2865 = vmatpush1.bf16.xpose.msra.mxu0 0
        %2866 = vmatprep.subr.bf16.mxu0 0
        %2867 = vmatpush1.bf16.xpose.msra.mxu0 0
        %2868 = vmatprep.subr.bf16.mxu0 0
        %2869 = vmatpush1.bf16.xpose.msra.mxu0 %v2852
        %2870 = vmatprep.subr.bf16.mxu0 0
        %2871 = vmatpush2.bf16.xpose.msra.mxu0 0
        %2872 = vmatprep.subr.bf16.mxu0 0
        %2873 = vmatpush2.bf16.xpose.msra.mxu0 0
        %2874 = vmatprep.subr.bf16.mxu0 0
        %2875 = vmatpush2.bf16.xpose.msra.mxu0 0
        %2876 = vmatprep.subr.bf16.mxu0 0
        %2877 = vmatpush2.bf16.xpose.msra.mxu0 0
        %2878 = vmatprep.subr.bf16.mxu0 0
        %2879 = vmatpush2.bf16.xpose.msra.mxu0 0
        %2880 = vmatprep.subr.bf16.mxu0 0
        %2881 = vmatpush2.bf16.xpose.msra.mxu0 0
        %2882 = vmatprep.subr.bf16.mxu0 0
        %2883 = vmatpush2.bf16.xpose.msra.mxu0 0
        %2884 = vmatprep.subr.bf16.mxu0 0
        %2885 = vmatpush2.bf16.xpose.msra.mxu0 0
        %2886 = vmatprep.mubr.bf16.mxu0 0
        %2887 = vmatmul.mubr.bf16.gmra.mxu0 %v2849
        %v2888 = vpop.f32.mrf.mxu0
        %v2889 = vadd.f32 %v1926, %v2888
        %v2890 = vpop.f32.mrf.mxu0
        %v2891 = vpop.f32.mrf.mxu0
        %v2892 = vadd.f32 %v1927, %v2891
        %v2893 = vpop.f32.mrf.mxu0
        %2894 = vdwg.mxu0
        %v2895 = vsel %vm1275, %v2889, -inf
        %2896 = vmax.xlane.f32.xlu0 %v2895
        %v2897 = vpop.xlane.xlu0 %2896
        %v2898 = vsel %vm1275, %v2892, -inf
        %2899 = vmax.xlane.f32.xlu0 %v2898
        %v2900 = vpop.xlane.xlu0 %2899
        %v2901 = vsub.f32 %v2889, %v2897
        %v2902 = vsub.f32 %v2892, %v2900
        %v2903 = vmul.f32 %v2901, 1.442695
        %v2904 = vpow.pop %v2903
        %v2905 = vmul.f32 %v2902, 1.442695
        %v2906 = vpow.pop %v2905
        %v2907 = vsel %vm1275, %v2904, 0.0
        %2908 = vadd.xlane.f32.xlu0 %v2907
        %v2909 = vpop.xlane.xlu0 %2908
        %v2910 = vsel %vm1275, %v2906, 0.0
        %2911 = vadd.xlane.f32.xlu0 %v2910
        %v2912 = vpop.xlane.xlu0 %2911
        %v2913 = vrcp.pop %v2909
        %v2914 = vrcp.pop %v2912
        %v2915 = vmul.f32 %v2904, %v2913
        %v2916 = vmul.f32 %v2906, %v2914
        %v2917 = vpack.c.bf16 %v2916, %v2915
        %2918 = vrot.lane.b32.xlu0 %v2532, 32
        %v2919 = vpop.permute.xlu0 %2918
        %v2922 = vsel %vm1275, %v2917, 0
        %2924 = vmatprep.subr.bf16.mxu0 0
        %2925 = vmatpush1.bf16.msra.mxu0 0
        %2926 = vmatprep.subr.bf16.mxu0 0
        %2927 = vmatpush1.bf16.msra.mxu0 0
        %2928 = vmatprep.subr.bf16.mxu0 0
        %2929 = vmatpush1.bf16.msra.mxu0 0
        %2930 = vmatprep.subr.bf16.mxu0 0
        %2931 = vmatpush1.bf16.msra.mxu0 0
        %2932 = vmatprep.subr.bf16.mxu0 0
        %2933 = vmatpush1.bf16.msra.mxu0 0
        %2934 = vmatprep.subr.bf16.mxu0 0
        %2935 = vmatpush1.bf16.msra.mxu0 0
        %2936 = vmatprep.subr.bf16.mxu0 0
        %2937 = vmatpush1.bf16.msra.mxu0 0
        %2938 = vmatprep.subr.bf16.mxu0 0
        %2939 = vmatpush1.bf16.msra.mxu0 %v2919
        %2940 = vmatprep.subr.bf16.mxu0 0
        %2941 = vmatpush2.bf16.msra.mxu0 0
        %2942 = vmatprep.subr.bf16.mxu0 0
        %2943 = vmatpush2.bf16.msra.mxu0 0
        %2944 = vmatprep.subr.bf16.mxu0 0
        %2945 = vmatpush2.bf16.msra.mxu0 0
        %2946 = vmatprep.subr.bf16.mxu0 0
        %2947 = vmatpush2.bf16.msra.mxu0 0
        %2948 = vmatprep.subr.bf16.mxu0 0
        %2949 = vmatpush2.bf16.msra.mxu0 0
        %2950 = vmatprep.subr.bf16.mxu0 0
        %2951 = vmatpush2.bf16.msra.mxu0 0
        %2952 = vmatprep.subr.bf16.mxu0 0
        %2953 = vmatpush2.bf16.msra.mxu0 0
        %2954 = vmatprep.subr.bf16.mxu0 0
        %2955 = vmatpush2.bf16.msra.mxu0 0
        %2956 = vmatprep.mubr.bf16.mxu0 0
        %2957 = vmatmul.mubr.bf16.gmra.mxu0 %v2922
        %v2958 = vpop.f32.mrf.mxu0
        %v2959 = vadd.f32 0.0, %v2958
        %v2960 = vpop.f32.mrf.mxu0
        %v2961 = vpop.f32.mrf.mxu0
        %v2962 = vadd.f32 0.0, %v2961
        %v2963 = vpop.f32.mrf.mxu0
        %2964 = vdwg.mxu0
        %2967 = vrot.lane.b32.xlu0 %v2959, 96
        %v2968 = vpop.permute.xlu0 %2967
        %2969 = vrot.lane.b32.xlu0 %v2962, 96
        %v2970 = vpop.permute.xlu0 %2969
        %2973 = vst.msk [vmem:[#allocation4 + $0x10] sm:$0xff] %vm2457, %v2968
        %2974 = vst.msk [vmem:[#allocation4 + $0x18] sm:$0xff] %vm2457, %v2970
        %v2975 = vld [vmem:[#allocation4] sm:$0xff]
        %v2976 = vld [vmem:[#allocation4 + $0x8] sm:$0xff]
        %v2977 = vld [vmem:[#allocation4 + $0x10] sm:$0xff]
        %v2978 = vld [vmem:[#allocation4 + $0x18] sm:$0xff]
        %v2979 = vpack.c.bf16 %v2976, %v2975
        %v2980 = vpack.c.bf16 %v2978, %v2977
        %v2981 = vpack.c.bf16 %v1234, %v1233
        %v2982 = vpack.c.bf16 %v1236, %v1235
        %v2983 = vpack.c.bf16 %v1238, %v1237
        %v2984 = vpack.c.bf16 %v1240, %v1239
        %v2985 = vpack.c.bf16 %v1242, %v1241
        %v2986 = vpack.c.bf16 %v1244, %v1243
        %v2987 = vpack.c.bf16 %v1246, %v1245
        %v2988 = vpack.c.bf16 %v1248, %v1247
        %v2990 = vlaneseq
        %v2991 = vshrl.u32 %v2990, 7
        %v2992 = vsub.s32 0, %v2991
        %v2993 = vrot.slane %v1249, %v2992
        %2995 = vmatprep.subr.bf16.mxu0 0
        %2996 = vmatpush1.bf16.msra.mxu0 %v2988
        %2997 = vmatprep.subr.bf16.mxu0 0
        %2998 = vmatpush1.bf16.msra.mxu0 %v2987
        %2999 = vmatprep.subr.bf16.mxu0 0
        %3000 = vmatpush1.bf16.msra.mxu0 %v2986
        %3001 = vmatprep.subr.bf16.mxu0 0
        %3002 = vmatpush1.bf16.msra.mxu0 %v2985
        %3003 = vmatprep.subr.bf16.mxu0 0
        %3004 = vmatpush1.bf16.msra.mxu0 %v2984
        %3005 = vmatprep.subr.bf16.mxu0 0
        %3006 = vmatpush1.bf16.msra.mxu0 %v2983
        %3007 = vmatprep.subr.bf16.mxu0 0
        %3008 = vmatpush1.bf16.msra.mxu0 %v2982
        %3009 = vmatprep.subr.bf16.mxu0 0
        %3010 = vmatpush1.bf16.msra.mxu0 %v2981
        %3011 = vmatprep.subr.bf16.mxu0 0
        %3012 = vmatpush2.bf16.msra.mxu0 0
        %3013 = vmatprep.subr.bf16.mxu0 0
        %3014 = vmatpush2.bf16.msra.mxu0 0
        %3015 = vmatprep.subr.bf16.mxu0 0
        %3016 = vmatpush2.bf16.msra.mxu0 0
        %3017 = vmatprep.subr.bf16.mxu0 0
        %3018 = vmatpush2.bf16.msra.mxu0 0
        %3019 = vmatprep.subr.bf16.mxu0 0
        %3020 = vmatpush2.bf16.msra.mxu0 0
        %3021 = vmatprep.subr.bf16.mxu0 0
        %3022 = vmatpush2.bf16.msra.mxu0 0
        %3023 = vmatprep.subr.bf16.mxu0 0
        %3024 = vmatpush2.bf16.msra.mxu0 0
        %3025 = vmatprep.subr.bf16.mxu0 0
        %3026 = vmatpush2.bf16.msra.mxu0 0
        %3027 = vmatprep.mubr.bf16.mxu0 0
        %3028 = vmatmul.mubr.bf16.gmra.mxu0 %v2979
        %v3029 = vpop.f32.mrf.mxu0
        %v3030 = vadd.f32 %v2993, %v3029
        %v3031 = vpop.f32.mrf.mxu0
        %v3032 = vpop.f32.mrf.mxu0
        %v3033 = vadd.f32 %v2993, %v3032
        %v3034 = vpop.f32.mrf.mxu0
        %3035 = vmatprep.mubr.bf16.mxu0 0
        %3036 = vmatmul.mubr.bf16.gmra.mxu0 %v2980
        %v3037 = vpop.f32.mrf.mxu0
        %v3038 = vadd.f32 %v2993, %v3037
        %v3039 = vpop.f32.mrf.mxu0
        %v3040 = vpop.f32.mrf.mxu0
        %v3041 = vadd.f32 %v2993, %v3040
        %v3042 = vpop.f32.mrf.mxu0
        %3043 = vdwg.mxu0
        %3044 = vadd.xlane.f32.xlu0 %v3030
        %v3045 = vpop.xlane.xlu0 %3044
        %3046 = vadd.xlane.f32.xlu0 %v3033
        %v3047 = vpop.xlane.xlu0 %3046
        %3048 = vadd.xlane.f32.xlu0 %v3038
        %v3049 = vpop.xlane.xlu0 %3048
        %3050 = vadd.xlane.f32.xlu0 %v3041
        %v3051 = vpop.xlane.xlu0 %3050
        %v3052 = vrcp.pop 128.0
        %v3053 = vmul.f32 %v3045, %v3052
        %v3054 = vmul.f32 %v3047, %v3052
        %v3055 = vmul.f32 %v3049, %v3052
        %v3056 = vmul.f32 %v3051, %v3052
        %v3057 = vsub.f32 %v3030, %v3053
        %v3058 = vsub.f32 %v3033, %v3054
        %v3059 = vsub.f32 %v3038, %v3055
        %v3060 = vsub.f32 %v3041, %v3056
        %v3061 = vmul.f32 %v3057, %v3057
        %v3062 = vmul.f32 %v3058, %v3058
        %v3063 = vmul.f32 %v3059, %v3059
        %v3064 = vmul.f32 %v3060, %v3060
        %3065 = vadd.xlane.f32.xlu0 %v3061
        %v3066 = vpop.xlane.xlu0 %3065
        %3067 = vadd.xlane.f32.xlu0 %v3062
        %v3068 = vpop.xlane.xlu0 %3067
        %3069 = vadd.xlane.f32.xlu0 %v3063
        %v3070 = vpop.xlane.xlu0 %3069
        %3071 = vadd.xlane.f32.xlu0 %v3064
        %v3072 = vpop.xlane.xlu0 %3071
        %v3073 = vmul.f32 %v3066, %v3052
        %v3074 = vmul.f32 %v3068, %v3052
        %v3075 = vmul.f32 %v3070, %v3052
        %v3076 = vmul.f32 %v3072, %v3052
        %v3077 = vadd.f32 %v3073, 1e-05
        %v3078 = vadd.f32 %v3074, 1e-05
        %v3079 = vadd.f32 %v3075, 1e-05
        %v3080 = vadd.f32 %v3076, 1e-05
        %v3081 = vrsqrt.pop %v3077
        %v3082 = vrsqrt.pop %v3078
        %v3083 = vrsqrt.pop %v3079
        %v3084 = vrsqrt.pop %v3080
        %v3085 = vmul.f32 %v3057, %v3081
        %v3086 = vmul.f32 %v3058, %v3082
        %v3087 = vmul.f32 %v3059, %v3083
        %v3088 = vmul.f32 %v3060, %v3084
        %v3090 = vlaneseq
        %v3091 = vshrl.u32 %v3090, 7
        %v3092 = vsub.s32 0, %v3091
        %v3093 = vrot.slane %v1250, %v3092
        %v3095 = vmul.f32 %v3085, %v3093
        %v3096 = vmul.f32 %v3086, %v3093
        %v3097 = vmul.f32 %v3087, %v3093
        %v3098 = vmul.f32 %v3088, %v3093
        %v3100 = vlaneseq
        %v3101 = vshrl.u32 %v3100, 7
        %v3102 = vsub.s32 0, %v3101
        %v3103 = vrot.slane %v1251, %v3102
        %v3105 = vadd.f32 %v3095, %v3103
        %v3106 = vadd.f32 %v3096, %v3103
        %v3107 = vadd.f32 %v3097, %v3103
        %v3108 = vadd.f32 %v3098, %v3103
        %3109 = vst [vmem:[#allocation2] sm:$0xff] %v3105
        %3110 = vst [vmem:[#allocation2 + $0x8] sm:$0xff] %v3106
        %3111 = vst [vmem:[#allocation3] sm:$0xff] %v3107
        %3112 = vst [vmem:[#allocation3 + $0x8] sm:$0xff] %v3108
        %p3113 = scmp.eq.s32.totalorder %s43, 1
        // Predicated region
        $region173: #{tpu_custom_call.1} parent=123 // pred_check
          %p3114 = pneg %p3113
        $region174: #{tpu_custom_call.1} parent=123 // pred_check_branch
          %3116 = sbr.rel (%p3114) target = $region176
        $region175: #{tpu_custom_call.1} parent=123 // pred_region
          %v3117 = vld [vmem:[%s22] sm:$0x1]
          %v3118 = vld [vmem:[#allocation5] sm:$0x1]
          %v3119 = vld [vmem:[#allocation2] sm:$0xff]
          %v3120 = vld [vmem:[#allocation2 + $0x8] sm:$0xff]
          %v3121 = vld [vmem:[#allocation11] sm:$0x1]
          %v3123 = vlaneseq
          %v3124 = vshrl.u32 %v3123, 7
          %v3125 = vsub.s32 0, %v3124
          %v3126 = vrot.slane %v3117, %v3125
          %v3128 = vmul.f32 %v3119, %v3126
          %v3129 = vmul.f32 %v3120, %v3126
          %3130 = vadd.xlane.f32.xlu0 %v3128
          %v3131 = vpop.xlane.xlu0 %3130
          %3132 = vadd.xlane.f32.xlu0 %v3129
          %v3133 = vpop.xlane.xlu0 %3132
          %v3135 = vlaneseq
          %v3136 = vshrl.u32 %v3135, 7
          %v3137 = vsub.s32 0, %v3136
          %v3138 = vrot.slane %v3118, %v3137
          %v3140 = vadd.f32 %v3131, %v3138
          %v3141 = vadd.f32 %v3133, %v3138
          %v3142 = vxor.u32 %v3140, 2147483648
          %v3143 = vxor.u32 %v3141, 2147483648
          %v3144 = vmul.f32 %v3142, 1.442695
          %v3145 = vpow.pop %v3144
          %v3146 = vmul.f32 %v3143, 1.442695
          %v3147 = vpow.pop %v3146
          %v3148 = vadd.f32 %v3145, 1.0
          %v3149 = vadd.f32 %v3147, 1.0
          %v3150 = vrcp.pop %v3148
          %v3151 = vmul.f32 1.0, %v3150
          %v3152 = vrcp.pop %v3149
          %v3153 = vmul.f32 1.0, %v3152
          %v3154 = vmul.f32 %v3151, 1.442695
          %v3155 = vpow.pop %v3154
          %v3156 = vmul.f32 %v3153, 1.442695
          %v3157 = vpow.pop %v3156
          %v3158 = vpack.c.bf16 %v3157, %v3155
          %v3160 = vsel %vm1275, %v3121, 0
          %3162 = vmatprep.subr.bf16.mxu0 0
          %3163 = vmatpush1.bf16.msra.mxu0 0
          %3164 = vmatprep.subr.bf16.mxu0 0
          %3165 = vmatpush1.bf16.msra.mxu0 0
          %3166 = vmatprep.subr.bf16.mxu0 0
          %3167 = vmatpush1.bf16.msra.mxu0 0
          %3168 = vmatprep.subr.bf16.mxu0 0
          %3169 = vmatpush1.bf16.msra.mxu0 0
          %3170 = vmatprep.subr.bf16.mxu0 0
          %3171 = vmatpush1.bf16.msra.mxu0 0
          %3172 = vmatprep.subr.bf16.mxu0 0
          %3173 = vmatpush1.bf16.msra.mxu0 0
          %3174 = vmatprep.subr.bf16.mxu0 0
          %3175 = vmatpush1.bf16.msra.mxu0 0
          %3176 = vmatprep.subr.bf16.mxu0 0
          %3177 = vmatpush1.bf16.msra.mxu0 %v3158
          %3178 = vmatprep.subr.bf16.mxu0 0
          %3179 = vmatpush2.bf16.msra.mxu0 0
          %3180 = vmatprep.subr.bf16.mxu0 0
          %3181 = vmatpush2.bf16.msra.mxu0 0
          %3182 = vmatprep.subr.bf16.mxu0 0
          %3183 = vmatpush2.bf16.msra.mxu0 0
          %3184 = vmatprep.subr.bf16.mxu0 0
          %3185 = vmatpush2.bf16.msra.mxu0 0
          %3186 = vmatprep.subr.bf16.mxu0 0
          %3187 = vmatpush2.bf16.msra.mxu0 0
          %3188 = vmatprep.subr.bf16.mxu0 0
          %3189 = vmatpush2.bf16.msra.mxu0 0
          %3190 = vmatprep.subr.bf16.mxu0 0
          %3191 = vmatpush2.bf16.msra.mxu0 0
          %3192 = vmatprep.subr.bf16.mxu0 0
          %3193 = vmatpush2.bf16.msra.mxu0 0
          %3194 = vmatprep.mubr.bf16.mxu0 0
          %3195 = vmatmul.mubr.bf16.gmra.mxu0 %v3160
          %v3196 = vpop.f32.mrf.mxu0
          %v3197 = vadd.f32 0.0, %v3196
          %v3198 = vpop.f32.mrf.mxu0
          %v3199 = vpop.f32.mrf.mxu0
          %v3200 = vpop.f32.mrf.mxu0
          %3201 = vdwg.mxu0
          %3203 = vset.pattern.permute.xlu0 0
          %3204 = vperm.xlu0 %3203, %v3155
          %v3205 = vpop.permute.xlu0 %3204
          %3208 = vset.pattern.permute.xlu0 0
          %3209 = vperm.xlu0 %3208, %v3157
          %v3210 = vpop.permute.xlu0 %3209
          %v3212 = vmul.f32 %v3205, %v3119
          %v3213 = vmul.f32 %v3210, %v3120
          %v3214 = vpack.c.bf16 %v3213, %v3212
          %3215 = vmatprep.subr.bf16.mxu0 0
          %3216 = vmatpush1.bf16.msra.mxu0 0
          %3217 = vmatprep.subr.bf16.mxu0 0
          %3218 = vmatpush1.bf16.msra.mxu0 0
          %3219 = vmatprep.subr.bf16.mxu0 0
          %3220 = vmatpush1.bf16.msra.mxu0 0
          %3221 = vmatprep.subr.bf16.mxu0 0
          %3222 = vmatpush1.bf16.msra.mxu0 0
          %3223 = vmatprep.subr.bf16.mxu0 0
          %3224 = vmatpush1.bf16.msra.mxu0 0
          %3225 = vmatprep.subr.bf16.mxu0 0
          %3226 = vmatpush1.bf16.msra.mxu0 0
          %3227 = vmatprep.subr.bf16.mxu0 0
          %3228 = vmatpush1.bf16.msra.mxu0 0
          %3229 = vmatprep.subr.bf16.mxu0 0
          %3230 = vmatpush1.bf16.msra.mxu0 %v3214
          %3231 = vmatprep.subr.bf16.mxu0 0
          %3232 = vmatpush2.bf16.msra.mxu0 0
          %3233 = vmatprep.subr.bf16.mxu0 0
          %3234 = vmatpush2.bf16.msra.mxu0 0
          %3235 = vmatprep.subr.bf16.mxu0 0
          %3236 = vmatpush2.bf16.msra.mxu0 0
          %3237 = vmatprep.subr.bf16.mxu0 0
          %3238 = vmatpush2.bf16.msra.mxu0 0
          %3239 = vmatprep.subr.bf16.mxu0 0
          %3240 = vmatpush2.bf16.msra.mxu0 0
          %3241 = vmatprep.subr.bf16.mxu0 0
          %3242 = vmatpush2.bf16.msra.mxu0 0
          %3243 = vmatprep.subr.bf16.mxu0 0
          %3244 = vmatpush2.bf16.msra.mxu0 0
          %3245 = vmatprep.subr.bf16.mxu0 0
          %3246 = vmatpush2.bf16.msra.mxu0 0
          %3247 = vmatprep.mubr.bf16.mxu0 0
          %3248 = vmatmul.mubr.bf16.gmra.mxu0 %v3160
          %v3249 = vpop.f32.mrf.mxu0
          %v3250 = vadd.f32 0.0, %v3249
          %v3251 = vpop.f32.mrf.mxu0
          %v3252 = vpop.f32.mrf.mxu0
          %v3253 = vpop.f32.mrf.mxu0
          %3254 = vdwg.mxu0
          %v3255 = vmax.f32 %v3197, 1e-16
          %3257 = vset.pattern.permute.xlu0 0
          %3258 = vperm.xlu0 %3257, %v3255
          %v3259 = vpop.permute.xlu0 %3258
          %v3261 = vrcp.pop %v3259
          %v3262 = vmul.f32 %v3250, %v3261
          %v3263 = vld [vmem:[#allocation3] sm:$0xff]
          %v3264 = vld [vmem:[#allocation3 + $0x8] sm:$0xff]
          %v3265 = vld [vmem:[#allocation12] sm:$0x1]
          %v3266 = vmul.f32 %v3263, %v3126
          %v3267 = vmul.f32 %v3264, %v3126
          %3268 = vadd.xlane.f32.xlu0 %v3266
          %v3269 = vpop.xlane.xlu0 %3268
          %3270 = vadd.xlane.f32.xlu0 %v3267
          %v3271 = vpop.xlane.xlu0 %3270
          %v3272 = vadd.f32 %v3269, %v3138
          %v3273 = vadd.f32 %v3271, %v3138
          %v3274 = vxor.u32 %v3272, 2147483648
          %v3275 = vxor.u32 %v3273, 2147483648
          %v3276 = vmul.f32 %v3274, 1.442695
          %v3277 = vpow.pop %v3276
          %v3278 = vmul.f32 %v3275, 1.442695
          %v3279 = vpow.pop %v3278
          %v3280 = vadd.f32 %v3277, 1.0
          %v3281 = vadd.f32 %v3279, 1.0
          %v3282 = vrcp.pop %v3280
          %v3283 = vmul.f32 1.0, %v3282
          %v3284 = vrcp.pop %v3281
          %v3285 = vmul.f32 1.0, %v3284
          %v3286 = vmul.f32 %v3283, 1.442695
          %v3287 = vpow.pop %v3286
          %v3288 = vmul.f32 %v3285, 1.442695
          %v3289 = vpow.pop %v3288
          %v3290 = vpack.c.bf16 %v3289, %v3287
          %v3292 = vsel %vm1275, %v3265, 0
          %3294 = vmatprep.subr.bf16.mxu0 0
          %3295 = vmatpush1.bf16.msra.mxu0 0
          %3296 = vmatprep.subr.bf16.mxu0 0
          %3297 = vmatpush1.bf16.msra.mxu0 0
          %3298 = vmatprep.subr.bf16.mxu0 0
          %3299 = vmatpush1.bf16.msra.mxu0 0
          %3300 = vmatprep.subr.bf16.mxu0 0
          %3301 = vmatpush1.bf16.msra.mxu0 0
          %3302 = vmatprep.subr.bf16.mxu0 0
          %3303 = vmatpush1.bf16.msra.mxu0 0
          %3304 = vmatprep.subr.bf16.mxu0 0
          %3305 = vmatpush1.bf16.msra.mxu0 0
          %3306 = vmatprep.subr.bf16.mxu0 0
          %3307 = vmatpush1.bf16.msra.mxu0 0
          %3308 = vmatprep.subr.bf16.mxu0 0
          %3309 = vmatpush1.bf16.msra.mxu0 %v3290
          %3310 = vmatprep.subr.bf16.mxu0 0
          %3311 = vmatpush2.bf16.msra.mxu0 0
          %3312 = vmatprep.subr.bf16.mxu0 0
          %3313 = vmatpush2.bf16.msra.mxu0 0
          %3314 = vmatprep.subr.bf16.mxu0 0
          %3315 = vmatpush2.bf16.msra.mxu0 0
          %3316 = vmatprep.subr.bf16.mxu0 0
          %3317 = vmatpush2.bf16.msra.mxu0 0
          %3318 = vmatprep.subr.bf16.mxu0 0
          %3319 = vmatpush2.bf16.msra.mxu0 0
          %3320 = vmatprep.subr.bf16.mxu0 0
          %3321 = vmatpush2.bf16.msra.mxu0 0
          %3322 = vmatprep.subr.bf16.mxu0 0
          %3323 = vmatpush2.bf16.msra.mxu0 0
          %3324 = vmatprep.subr.bf16.mxu0 0
          %3325 = vmatpush2.bf16.msra.mxu0 0
          %3326 = vmatprep.mubr.bf16.mxu0 0
          %3327 = vmatmul.mubr.bf16.gmra.mxu0 %v3292
          %v3328 = vpop.f32.mrf.mxu0
          %v3329 = vadd.f32 0.0, %v3328
          %v3330 = vpop.f32.mrf.mxu0
          %v3331 = vpop.f32.mrf.mxu0
          %v3332 = vpop.f32.mrf.mxu0
          %3333 = vdwg.mxu0
          %3335 = vset.pattern.permute.xlu0 0
          %3336 = vperm.xlu0 %3335, %v3287
          %v3337 = vpop.permute.xlu0 %3336
          %3340 = vset.pattern.permute.xlu0 0
          %3341 = vperm.xlu0 %3340, %v3289
          %v3342 = vpop.permute.xlu0 %3341
          %v3344 = vmul.f32 %v3337, %v3263
          %v3345 = vmul.f32 %v3342, %v3264
          %v3346 = vpack.c.bf16 %v3345, %v3344
          %3347 = vmatprep.subr.bf16.mxu0 0
          %3348 = vmatpush1.bf16.msra.mxu0 0
          %3349 = vmatprep.subr.bf16.mxu0 0
          %3350 = vmatpush1.bf16.msra.mxu0 0
          %3351 = vmatprep.subr.bf16.mxu0 0
          %3352 = vmatpush1.bf16.msra.mxu0 0
          %3353 = vmatprep.subr.bf16.mxu0 0
          %3354 = vmatpush1.bf16.msra.mxu0 0
          %3355 = vmatprep.subr.bf16.mxu0 0
          %3356 = vmatpush1.bf16.msra.mxu0 0
          %3357 = vmatprep.subr.bf16.mxu0 0
          %3358 = vmatpush1.bf16.msra.mxu0 0
          %3359 = vmatprep.subr.bf16.mxu0 0
          %3360 = vmatpush1.bf16.msra.mxu0 0
          %3361 = vmatprep.subr.bf16.mxu0 0
          %3362 = vmatpush1.bf16.msra.mxu0 %v3346
          %3363 = vmatprep.subr.bf16.mxu0 0
          %3364 = vmatpush2.bf16.msra.mxu0 0
          %3365 = vmatprep.subr.bf16.mxu0 0
          %3366 = vmatpush2.bf16.msra.mxu0 0
          %3367 = vmatprep.subr.bf16.mxu0 0
          %3368 = vmatpush2.bf16.msra.mxu0 0
          %3369 = vmatprep.subr.bf16.mxu0 0
          %3370 = vmatpush2.bf16.msra.mxu0 0
          %3371 = vmatprep.subr.bf16.mxu0 0
          %3372 = vmatpush2.bf16.msra.mxu0 0
          %3373 = vmatprep.subr.bf16.mxu0 0
          %3374 = vmatpush2.bf16.msra.mxu0 0
          %3375 = vmatprep.subr.bf16.mxu0 0
          %3376 = vmatpush2.bf16.msra.mxu0 0
          %3377 = vmatprep.subr.bf16.mxu0 0
          %3378 = vmatpush2.bf16.msra.mxu0 0
          %3379 = vmatprep.mubr.bf16.mxu0 0
          %3380 = vmatmul.mubr.bf16.gmra.mxu0 %v3292
          %v3381 = vpop.f32.mrf.mxu0
          %v3382 = vadd.f32 0.0, %v3381
          %v3383 = vpop.f32.mrf.mxu0
          %v3384 = vpop.f32.mrf.mxu0
          %v3385 = vpop.f32.mrf.mxu0
          %3386 = vdwg.mxu0
          %v3387 = vmax.f32 %v3329, 1e-16
          %3389 = vset.pattern.permute.xlu0 0
          %3390 = vperm.xlu0 %3389, %v3387
          %v3391 = vpop.permute.xlu0 %3390
          %v3393 = vrcp.pop %v3391
          %v3394 = vmul.f32 %v3382, %v3393
          %v3395 = vld [vmem:[%s24] sm:$0xff]
          %v3396 = vld [vmem:[%s24 + $0x8] sm:$0xff]
          %v3397 = vld [vmem:[%s24 + $0x10] sm:$0xff]
          %v3398 = vld [vmem:[%s24 + $0x18] sm:$0xff]
          %v3399 = vld [vmem:[%s24 + $0x20] sm:$0xff]
          %v3400 = vld [vmem:[%s24 + $0x28] sm:$0xff]
          %v3401 = vld [vmem:[%s24 + $0x30] sm:$0xff]
          %v3402 = vld [vmem:[%s24 + $0x38] sm:$0xff]
          %v3403 = vld [vmem:[%s24 + $0x40] sm:$0xff]
          %v3404 = vld [vmem:[%s24 + $0x48] sm:$0xff]
          %v3405 = vld [vmem:[%s24 + $0x50] sm:$0xff]
          %v3406 = vld [vmem:[%s24 + $0x58] sm:$0xff]
          %v3407 = vld [vmem:[%s24 + $0x60] sm:$0xff]
          %v3408 = vld [vmem:[%s24 + $0x68] sm:$0xff]
          %v3409 = vld [vmem:[%s24 + $0x70] sm:$0xff]
          %v3410 = vld [vmem:[%s24 + $0x78] sm:$0xff]
          %v3411 = vld [vmem:[%s24 + $0x80] sm:$0xff]
          %v3412 = vld [vmem:[%s24 + $0x88] sm:$0xff]
          %v3413 = vld [vmem:[%s24 + $0x90] sm:$0xff]
          %v3414 = vld [vmem:[%s24 + $0x98] sm:$0xff]
          %v3415 = vld [vmem:[%s24 + $0xa0] sm:$0xff]
          %v3416 = vld [vmem:[%s24 + $0xa8] sm:$0xff]
          %v3417 = vld [vmem:[%s24 + $0xb0] sm:$0xff]
          %v3418 = vld [vmem:[%s24 + $0xb8] sm:$0xff]
          %v3419 = vld [vmem:[%s24 + $0xc0] sm:$0xff]
          %v3420 = vld [vmem:[%s24 + $0xc8] sm:$0xff]
          %v3421 = vld [vmem:[%s24 + $0xd0] sm:$0xff]
          %v3422 = vld [vmem:[%s24 + $0xd8] sm:$0xff]
          %v3423 = vld [vmem:[%s24 + $0xe0] sm:$0xff]
          %v3424 = vld [vmem:[%s24 + $0xe8] sm:$0xff]
          %v3425 = vld [vmem:[%s24 + $0xf0] sm:$0xff]
          %v3426 = vld [vmem:[%s24 + $0xf8] sm:$0xff]
          %v3427 = vpack.c.bf16 %v3262, %v3262
          %v3428 = vpack.c.bf16 %v3394, %v3394
          %v3429 = vpack.c.bf16 %v3396, %v3395
          %v3430 = vpack.c.bf16 %v3398, %v3397
          %v3431 = vpack.c.bf16 %v3400, %v3399
          %v3432 = vpack.c.bf16 %v3402, %v3401
          %v3433 = vpack.c.bf16 %v3404, %v3403
          %v3434 = vpack.c.bf16 %v3406, %v3405
          %v3435 = vpack.c.bf16 %v3408, %v3407
          %v3436 = vpack.c.bf16 %v3410, %v3409
          %v3437 = vpack.c.bf16 %v3412, %v3411
          %v3438 = vpack.c.bf16 %v3414, %v3413
          %v3439 = vpack.c.bf16 %v3416, %v3415
          %v3440 = vpack.c.bf16 %v3418, %v3417
          %v3441 = vpack.c.bf16 %v3420, %v3419
          %v3442 = vpack.c.bf16 %v3422, %v3421
          %v3443 = vpack.c.bf16 %v3424, %v3423
          %v3444 = vpack.c.bf16 %v3426, %v3425
          %v3445 = vld [vmem:[%s25] sm:$0x1]
          %v3447 = vlaneseq
          %v3448 = vshrl.u32 %v3447, 7
          %v3449 = vsub.s32 0, %v3448
          %v3450 = vrot.slane %v3445, %v3449
          %3452 = vmatprep.subr.bf16.mxu0 0
          %3453 = vmatpush1.bf16.msra.mxu0 %v3436
          %3454 = vmatprep.subr.bf16.mxu0 0
          %3455 = vmatpush1.bf16.msra.mxu0 %v3435
          %3456 = vmatprep.subr.bf16.mxu0 0
          %3457 = vmatpush1.bf16.msra.mxu0 %v3434
          %3458 = vmatprep.subr.bf16.mxu0 0
          %3459 = vmatpush1.bf16.msra.mxu0 %v3433
          %3460 = vmatprep.subr.bf16.mxu0 0
          %3461 = vmatpush1.bf16.msra.mxu0 %v3432
          %3462 = vmatprep.subr.bf16.mxu0 0
          %3463 = vmatpush1.bf16.msra.mxu0 %v3431
          %3464 = vmatprep.subr.bf16.mxu0 0
          %3465 = vmatpush1.bf16.msra.mxu0 %v3430
          %3466 = vmatprep.subr.bf16.mxu0 0
          %3467 = vmatpush1.bf16.msra.mxu0 %v3429
          %3468 = vmatprep.subr.bf16.mxu0 0
          %3469 = vmatpush2.bf16.msra.mxu0 %v3444
          %3470 = vmatprep.subr.bf16.mxu0 0
          %3471 = vmatpush2.bf16.msra.mxu0 %v3443
          %3472 = vmatprep.subr.bf16.mxu0 0
          %3473 = vmatpush2.bf16.msra.mxu0 %v3442
          %3474 = vmatprep.subr.bf16.mxu0 0
          %3475 = vmatpush2.bf16.msra.mxu0 %v3441
          %3476 = vmatprep.subr.bf16.mxu0 0
          %3477 = vmatpush2.bf16.msra.mxu0 %v3440
          %3478 = vmatprep.subr.bf16.mxu0 0
          %3479 = vmatpush2.bf16.msra.mxu0 %v3439
          %3480 = vmatprep.subr.bf16.mxu0 0
          %3481 = vmatpush2.bf16.msra.mxu0 %v3438
          %3482 = vmatprep.subr.bf16.mxu0 0
          %3483 = vmatpush2.bf16.msra.mxu0 %v3437
          %3484 = vmatprep.mubr.bf16.mxu0 %v3428
          %3485 = vmatmul.mubr.bf16.gmra.mxu0 %v3427
          %v3486 = vpop.f32.mrf.mxu0
          %v3487 = vadd.f32 %v3450, %v3486
          %v3488 = vpop.f32.mrf.mxu0
          %v3489 = vpop.f32.mrf.mxu0
          %v3490 = vpop.f32.mrf.mxu0
          %3491 = vdwg.mxu0
          %vm3492 = vcmask 9216
          %v3493 = vsel %vm3492, %v3487, -inf
          %3494 = vmax.xlane.f32.xlu0 %v3493
          %v3495 = vpop.xlane.xlu0 %3494
          %v3496 = vsub.f32 %v3487, %v3495
          %v3497 = vmul.f32 %v3496, 1.442695
          %v3498 = vpow.pop %v3497
          %v3499 = vsel %vm3492, %v3498, 0.0
          %3500 = vadd.xlane.f32.xlu0 %v3499
          %v3501 = vpop.xlane.xlu0 %3500
          %v3502 = vrcp.pop %v3501
          %v3503 = vmul.f32 %v3498, %v3502
          %3504 = vst.msk [vmem:[#allocation21] sm:$0x3] %vm3492, %v3503
        $region176: #{tpu_custom_call.1} parent=123 // pred_fallthru
          _
        // Predicated region
        $region177: #{tpu_custom_call.1} parent=123 // pred_check
          %p3505 = pneg %p652
        $region178: #{tpu_custom_call.1} parent=123 // pred_check_branch
          %3507 = sbr.rel (%p3505) target = $region180
        $region179: #{tpu_custom_call.1} parent=123 // pred_region
          %s3509 = ssub.s32 32, 32
          %3510 = vsyncadd [#allocation8], %s3509
          %s3512 = sshll.u32 [#allocation21], 4
          %s3513 = int_to_ptr.vmem [resolvable:$true] %s3512
          %3515 = dma.vmem_to_hbm [thread:$0]  %s3513, 32, %s26, [#allocation8]
        $region180: #{tpu_custom_call.1} parent=123 // pred_fallthru
          _
        // Predicated region
        $region181: #{tpu_custom_call.1} parent=123 // pred_check
          %p3516 = pneg %p652
        $region182: #{tpu_custom_call.1} parent=123 // pred_check_branch
          %3518 = sbr.rel (%p3516) target = $region184
        $region183: #{tpu_custom_call.1} parent=123 // pred_region
          %3519 = dma.done [#allocation8], 32
        $region184: #{tpu_custom_call.1} parent=123 // pred_fallthru
          _
      $region124: #{tpu_custom_call.1} parent=5 // pred_fallthru
        _
      %p3520 = scmp.le.s32.totalorder 2, %s38
      // Predicated region
      $region185: #{tpu_custom_call.1} parent=5 // pred_check
        %p3521 = pneg %p3520
      $region186: #{tpu_custom_call.1} parent=5 // pred_check_branch
        %3523 = sbr.rel (%p3521) target = $region188
      $region187: #{tpu_custom_call.1} parent=5 // pred_region
        %s3524 = ssub.s32 %s38, 2
      $region188: #{tpu_custom_call.1} parent=5 // pred_fallthru
        _
    $region6: #{tpu_custom_call.1} parent=1 // loop_footer
      %s42 = sadd.s32 1, %s38
    $region7: #{tpu_custom_call.1} parent=1 // loop_footer_branch
      %37 = sbr.rel target = $region3
    $region8: #{tpu_custom_call.1} parent=1 // loop_exit
      _
    %3525 = vsyncpa [#allocation7], 1
    %s3526 = scalar_lea.sflag [#allocation7], 1
    %3527 = vsyncpa %s3526, 1
    %3528 = vsyncpa [#allocation10], 1
    %3529 = vsyncpa [#allocation13], 1
    %3530 = vsyncpa [#allocation8], 1
    %s3531 = scalar_lea.sflag [#allocation8], 1
    %3532 = vsyncpa %s3531, 1

</llo_original>
